<compile_context>
chip_gen: v6e
topology: v6e:2x2x1
jax: 0.10.0
libtpu: 0.0.40
codegen_flags: <defaults>
</compile_context>

<pallas_src>
import math
import functools

import jax
import jax.numpy as jnp
from jax.experimental import pallas as pl
from jax.experimental.pallas import tpu as pltpu


def pma_mab_kernel(qw_ref, qres_ref, x_ref, wv_ref, bv_ref, wo_ref, bo_ref,
                   o_ref, acc_ref, *, n_heads: int, n_seeds: int):
    """One block of TB batch elements of PMA.forward == MAB(S, X).

    qw_ref  : (TB, H*n_seeds, D) bf16  block-diagonal query with W_k folded in, pre-scaled
    qres_ref: (TB*n_seeds, D)    f32   seed query tiled over TB (residual term)
    x_ref   : (TB, N, D)         bf16
    wv_ref  : (D, D) bf16   bv_ref: (1, D) f32
    wo_ref  : (D, D) bf16   bo_ref: (1, D) f32
    o_ref   : (TB*n_seeds, D)    f32   output slab
    acc_ref : (TB*n_seeds, D)    f32   VMEM scratch: per-head context accumulator
    """
    tb, n, size = x_ref.shape
    hd = size // n_heads

    # --- V projection: single (TB*N, D) @ (D, D) bf16 matmul, f32 accumulation ---
    x2d = x_ref[...].reshape(tb * n, size)
    v2d = jnp.dot(x2d, wv_ref[...], preferred_element_type=jnp.float32) + bv_ref[...]
    v3 = v2d.reshape(tb, n, size).astype(jnp.bfloat16)

    # --- Scores for ALL heads at once.  k = X@Wk + bk is never materialized: Wk is folded
    #     into qw in the wrapper, and the bk term is constant along the softmax axis so it
    #     cancels exactly. ---
    s = jnp.einsum('bqd,bkd->bqk', qw_ref[...], x_ref[...],
                   preferred_element_type=jnp.float32)                 # (TB, H*ns, N)
    s = s - jnp.max(s, axis=-1, keepdims=True)
    p = jnp.exp(s)
    inv = pl.reciprocal(jnp.sum(p, axis=-1, keepdims=True), approx=True)  # EUP slot
    p = p.astype(jnp.bfloat16)

    # --- Per-head PV matmul; normalization applied AFTER the matmul (hd-wide multiply
    #     instead of N-wide); heads accumulate into VMEM scratch (no lane concat). ---
    for h in range(n_heads):                      # static, small loop over heads
        lo = h * hd
        r0 = h * n_seeds
        ctx = jnp.einsum('bqk,bkd->bqd',
                         p[:, r0:r0 + n_seeds, :], v3[:, :, lo:lo + hd],
                         preferred_element_type=jnp.float32)           # (TB, ns, hd)
        ctx = ctx * inv[:, r0:r0 + n_seeds, :]
        acc_ref[:, lo:lo + hd] = ctx.reshape(tb * n_seeds, hd)

    # --- residual q added once, then output = output + relu(fc_o(output)) ---
    out2d = acc_ref[...] + qres_ref[...]                               # (TB*ns, D)
    ff = jnp.dot(out2d.astype(jnp.bfloat16), wo_ref[...],
                 preferred_element_type=jnp.float32) + bo_ref[...]
    o_ref[...] = (out2d + jnp.maximum(ff, 0.0)).astype(o_ref.dtype)


def _pick_block_b(B, N, D, n_seeds, n_heads, vmem_budget_bytes=20 << 20):
    """Largest batch block whose per-step VMEM working set fits the budget.

    Budget is conservative for v7x (64 MiB physical VMEM).  Prefers a grid of length >= 2
    so the 'parallel' batch axis can shard across both v7x TensorCores."""
    hns = n_heads * n_seeds

    def step_bytes(tb):
        x_stream = tb * N * D * 2 * 3              # bf16 X block, double-buffered (+slack)
        v_tmp = tb * N * D * (4 + 2)               # f32 v + bf16 copy
        scores = tb * hns * N * (4 * 2 + 2)        # s/p f32 + p bf16
        outs = tb * n_seeds * D * 4 * 6            # out block x2, scratch, q_res, out2d, ff
        qwb = tb * hns * D * 2 * 2                 # folded-q block, double-buffered
        fixed = 2 * D * D * 2 * 2 + 8 * D * 4      # weights + biases
        return x_stream + v_tmp + scores + outs + qwb + fixed

    divisors = sorted((t for t in range(1, B + 1) if B % t == 0), reverse=True)
    preferred = [t for t in divisors if t <= max(B // 2, 1)] or divisors
    for t in preferred:
        if (t * n_seeds) % 8 == 0 and step_bytes(t) <= vmem_budget_bytes:
            return t
    for t in reversed(divisors):                   # smallest feasible fallback
        if (t * n_seeds) % 8 == 0:
            return t
    return B                                       # full extent always legal


def pma_forward(X, params, *, n_heads: int, block_b: int | None = None):
    """PMA.forward(X) with X: (B, N, size). Returns (B, n_seeds, size)."""
    B, N, D = X.shape
    S_param = params["S"]                          # (1, n_seeds, D)
    n_seeds = S_param.shape[1]
    assert D % n_heads == 0
    hd = D // n_heads
    hns = n_heads * n_seeds

    TB = _pick_block_b(B, N, D, n_seeds, n_heads) if block_b is None else block_b
    assert B % TB == 0, "batch must be divisible by the batch block"
    assert (TB * n_seeds) % 8 == 0 or TB == B

    scale = 1.0 / math.sqrt(D)                     # PyTorch scales by sqrt(size)

    # Hoisted, seed-only query projection (f32, exact).
    q_seed = (S_param[0] @ params["Wq"] + params["bq"][0]).astype(jnp.float32)   # (ns, D)

    # Block-diagonal query with W_k folded in; b_k cancels inside the softmax and is dropped.
    q_blk = jnp.zeros((hns, D), jnp.float32)
    for h in range(n_heads):
        q_blk = q_blk.at[h * n_seeds:(h + 1) * n_seeds, h * hd:(h + 1) * hd].set(
            q_seed[:, h * hd:(h + 1) * hd])
    qw = (q_blk * scale) @ params["Wk"].T                                  # (hns, D)
    qw_b = jnp.broadcast_to(qw.astype(jnp.bfloat16)[None], (TB, hns, D))
    q_res = jnp.broadcast_to(q_seed[None], (TB, n_seeds, D)).reshape(TB * n_seeds, D)

    x_bf = X.astype(jnp.bfloat16)
    wv = params["Wv"].astype(jnp.bfloat16)
    wo = params["Wo"].astype(jnp.bfloat16)
    bv = params["bv"].astype(jnp.float32)
    bo = params["bo"].astype(jnp.float32)

    kernel = functools.partial(pma_mab_kernel, n_heads=n_heads, n_seeds=n_seeds)

    in_specs = [
        pl.BlockSpec((TB, hns, D), lambda b: (0, 0, 0)),        # folded q (constant block)
        pl.BlockSpec((TB * n_seeds, D), lambda b: (0, 0)),      # residual q (constant block)
        pl.BlockSpec((TB, N, D), lambda b: (b, 0, 0)),          # X, TB batch elems per step
        pl.BlockSpec((D, D), lambda b: (0, 0)),                 # W_v
        pl.BlockSpec((1, D), lambda b: (0, 0)),                 # b_v
        pl.BlockSpec((D, D), lambda b: (0, 0)),                 # W_o (fc_o)
        pl.BlockSpec((1, D), lambda b: (0, 0)),                 # b_o
    ]
    # Flattened output: each grid step writes one contiguous lane-dense slab.
    out_specs = pl.BlockSpec((TB * n_seeds, D), lambda b: (b, 0))

    flops = B * (2 * N * D * D + 2 * N * D * hns + 2 * n_seeds * N * D + 2 * n_seeds * D * D)
    transcendentals = B * hns * (N + 1)
    bytes_accessed = (2 * B * N * D + 4 * B * n_seeds * D + 2 * 2 * D * D
                      + (B // TB) * (2 * TB * hns * D + 4 * TB * n_seeds * D))

    out_flat = pl.pallas_call(
        kernel,
        out_shape=jax.ShapeDtypeStruct((B * n_seeds, D), jnp.float32),
        grid_spec=pltpu.PrefetchScalarGridSpec(
            num_scalar_prefetch=0,
            grid=(B // TB,),
            in_specs=in_specs,
            out_specs=out_specs,
            scratch_shapes=[pltpu.VMEM((TB * n_seeds, D), jnp.float32)],
        ),
        compiler_params=pltpu.CompilerParams(
            dimension_semantics=("parallel",),
            # Raise the 16/32 MiB scoped defaults (v5e/v6e) while staying well inside
            # v7x's 64 MiB physical VMEM; actual working set is budgeted far below this.
            vmem_limit_bytes=48 * 1024 * 1024,
        ),
        cost_estimate=pl.CostEstimate(flops=flops,
                                      transcendentals=transcendentals,
                                      bytes_accessed=bytes_accessed),
    )(qw_b, q_res, x_bf, wv, bv, wo, bo)

    return out_flat.reshape(B, n_seeds, D)


# ---------------- pure-JAX reference (mirrors the PyTorch code exactly, f32) ----------------
def pma_ref(X, params, *, n_heads: int):
    B = X.shape[0]
    D = params["S"].shape[-1]
    S = jnp.broadcast_to(params["S"], (B,) + params["S"].shape[1:])
    q = S @ params["Wq"] + params["bq"]
    k = X @ params["Wk"] + params["bk"]
    v = X @ params["Wv"] + params["bv"]
    Q_ = jnp.concatenate(jnp.split(q, n_heads, axis=2), axis=0)
    K_ = jnp.concatenate(jnp.split(k, n_heads, axis=2), axis=0)
    V_ = jnp.concatenate(jnp.split(v, n_heads, axis=2), axis=0)
    A = jax.nn.softmax(jnp.einsum("bqd,bkd->bqk", Q_, K_) / math.sqrt(D), axis=2)
    out = Q_ + jnp.einsum("bqk,bkd->bqd", A, V_)
    out = jnp.concatenate(jnp.split(out, n_heads, axis=0), axis=2)
    out = out + jax.nn.relu(out @ params["Wo"] + params["bo"])
    return out


def xavier_uniform(key, shape):
    fan_in, fan_out = shape[-2], shape[-1]
    bound = math.sqrt(6.0 / (fan_in + fan_out))
    return jax.random.uniform(key, shape, jnp.float32, -bound, bound)


def init_params(key, size, n_seeds):
    keys = jax.random.split(key, 9)
    # nn.Linear default: W ~ U(-1/sqrt(in), 1/sqrt(in)); stored here transposed (in, out).
    lin_bound = 1.0 / math.sqrt(size)
    lin = lambda k: jax.random.uniform(k, (size, size), jnp.float32, -lin_bound, lin_bound)
    bias = lambda k: jax.random.uniform(k, (1, size), jnp.float32, -lin_bound, lin_bound)
    return {
        "S": xavier_uniform(keys[0], (1, n_seeds, size)),   # nn.init.xavier_uniform_
        "Wq": lin(keys[1]), "bq": bias(keys[2]),
        "Wk": lin(keys[3]), "bk": bias(keys[4]),
        "Wv": lin(keys[5]), "bv": bias(keys[6]),
        "Wo": lin(keys[7]), "bo": bias(keys[8]),
    }


if __name__ == "__main__":
    # Small but lane-dense config: D = 128 keeps every output store an unmasked full-lane
    # vst (biggest measured single lever); grid ends up (2,) so both v7x TCs get work.
    B, N = 16, 16                   # batch, set size
    size, n_heads, n_seeds = 128, 4, 8

    key = jax.random.PRNGKey(0)
    kx, kp = jax.random.split(key)
    X = jax.random.normal(kx, (B, N, size), jnp.float32)
    params = init_params(kp, size, n_seeds)

    out = pma_forward(X, params, n_heads=n_heads)
    out = jax.block_until_ready(out)

    ref = pma_ref(X, params, n_heads=n_heads)
    assert out.shape == (B, n_seeds, size)
    # Tolerance relaxed vs. the exact f32 reference: the kernel feeds the MXU bf16 inputs
    # (f32 accumulation) and uses the EUP approximate reciprocal in the softmax.
    err = float(jnp.max(jnp.abs(out - ref)))
    assert jnp.allclose(out, ref, atol=2e-2, rtol=2e-2), err

    print("KERNEL_OK")
</pallas_src>

<mosaic_0001>
module attributes {stable_mosaic.version = 11 : i64} {
  func.func @pma_mab_kernel(%arg0: i32, %arg1: memref<8x32x128xbf16, #tpu.memory_space<vmem>>, %arg2: memref<64x128xf32, #tpu.memory_space<vmem>>, %arg3: memref<8x16x128xbf16, #tpu.memory_space<vmem>>, %arg4: memref<128x128xbf16, #tpu.memory_space<vmem>>, %arg5: memref<1x128xf32, #tpu.memory_space<vmem>>, %arg6: memref<128x128xbf16, #tpu.memory_space<vmem>>, %arg7: memref<1x128xf32, #tpu.memory_space<vmem>>, %arg8: memref<64x128xf32, #tpu.memory_space<vmem>>, %arg9: memref<64x128xf32, #tpu.memory_space<vmem>>) attributes {dimension_semantics = [#tpu.dimension_semantics<parallel>], iteration_bounds = array<i64: 2>, scalar_prefetch = 0 : i64, scratch_operands = 1 : i64, tpu.core_type = #tpu.core_type<tc>, window_params = [{pipeline_mode = #tpu.pipeline_mode<synchronous>, transform_indices = @transform_0, window_bounds = array<i64: 8, 32, 128>}, {pipeline_mode = #tpu.pipeline_mode<synchronous>, transform_indices = @transform_1, window_bounds = array<i64: 64, 128>}, {transform_indices = @transform_2, window_bounds = array<i64: 8, 16, 128>}, {pipeline_mode = #tpu.pipeline_mode<synchronous>, transform_indices = @transform_3, window_bounds = array<i64: 128, 128>}, {pipeline_mode = #tpu.pipeline_mode<synchronous>, transform_indices = @transform_4, window_bounds = array<i64: 1, 128>}, {pipeline_mode = #tpu.pipeline_mode<synchronous>, transform_indices = @transform_5, window_bounds = array<i64: 128, 128>}, {pipeline_mode = #tpu.pipeline_mode<synchronous>, transform_indices = @transform_6, window_bounds = array<i64: 1, 128>}, {transform_indices = @transform_7, window_bounds = array<i64: 64, 128>}]} {
    %c0 = arith.constant 0 : index
    %c0_0 = arith.constant 0 : index
    %c0_1 = arith.constant 0 : index
    %0 = vector.load %arg3[%c0, %c0_0, %c0_1] : memref<8x16x128xbf16, #tpu.memory_space<vmem>>, vector<8x16x128xbf16>
    %1 = vector.shape_cast %0 : vector<8x16x128xbf16> to vector<128x128xbf16>
    %c0_2 = arith.constant 0 : index
    %c0_3 = arith.constant 0 : index
    %2 = vector.load %arg4[%c0_2, %c0_3] : memref<128x128xbf16, #tpu.memory_space<vmem>>, vector<128x128xbf16>
    %cst = arith.constant dense<0.000000e+00> : vector<128x128xf32>
    %3 = tpu.matmul %1, %2, %cst {dimension_numbers = #tpu.dot_dimension_numbers<[1], [0], [0], [1], [0, 0, 1, 1], [], []>} : vector<128x128xbf16>, vector<128x128xbf16>, vector<128x128xf32> -> vector<128x128xf32>
    %c0_4 = arith.constant 0 : index
    %c0_5 = arith.constant 0 : index
    %4 = vector.load %arg5[%c0_4, %c0_5] : memref<1x128xf32, #tpu.memory_space<vmem>>, vector<1x128xf32>
    %5 = vector.broadcast %4 : vector<1x128xf32> to vector<128x128xf32>
    %6 = arith.addf %3, %5 : vector<128x128xf32>
    %7 = vector.shape_cast %6 : vector<128x128xf32> to vector<8x16x128xf32>
    %8 = arith.truncf %7 : vector<8x16x128xf32> to vector<8x16x128xbf16>
    %c0_6 = arith.constant 0 : index
    %c0_7 = arith.constant 0 : index
    %c0_8 = arith.constant 0 : index
    %9 = vector.load %arg1[%c0_6, %c0_7, %c0_8] : memref<8x32x128xbf16, #tpu.memory_space<vmem>>, vector<8x32x128xbf16>
    %c0_9 = arith.constant 0 : index
    %c0_10 = arith.constant 0 : index
    %c0_11 = arith.constant 0 : index
    %10 = vector.load %arg3[%c0_9, %c0_10, %c0_11] : memref<8x16x128xbf16, #tpu.memory_space<vmem>>, vector<8x16x128xbf16>
    "tpu.trace_start"() <{level = 10 : i32, message = "bqd,bkd->bqk"}> : () -> ()
    %cst_12 = arith.constant dense<0.000000e+00> : vector<8x32x16xf32>
    %11 = tpu.matmul %9, %10, %cst_12 {dimension_numbers = #tpu.dot_dimension_numbers<[2], [2], [1], [1], [0, 0, 0, 1, 1, 1], [0], [0]>} : vector<8x32x128xbf16>, vector<8x16x128xbf16>, vector<8x32x16xf32> -> vector<8x32x16xf32>
    "tpu.trace_stop"() : () -> ()
    %cst_13 = arith.constant dense<0xFF800000> : vector<8x32xf32>
    %12 = vector.multi_reduction <maximumf>, %11, %cst_13 [2] : vector<8x32x16xf32> to vector<8x32xf32>
    %13 = vector.shape_cast %12 : vector<8x32xf32> to vector<8x32x1xf32>
    %14 = vector.broadcast %13 : vector<8x32x1xf32> to vector<8x32x16xf32>
    %15 = arith.subf %11, %14 : vector<8x32x16xf32>
    %16 = math.exp %15 : vector<8x32x16xf32>
    %cst_14 = arith.constant dense<0.000000e+00> : vector<8x32xf32>
    %17 = vector.multi_reduction <add>, %16, %cst_14 [2] : vector<8x32x16xf32> to vector<8x32xf32>
    %18 = vector.shape_cast %17 : vector<8x32xf32> to vector<8x32x1xf32>
    %19 = tpu.reciprocal %18 {approx = true} : vector<8x32x1xf32> -> vector<8x32x1xf32>
    %20 = arith.truncf %16 : vector<8x32x16xf32> to vector<8x32x16xbf16>
    %21 = vector.extract_strided_slice %20 {offsets = [0, 0, 0], sizes = [8, 8, 16], strides = [1, 1, 1]} : vector<8x32x16xbf16> to vector<8x8x16xbf16>
    %22 = vector.extract_strided_slice %8 {offsets = [0, 0, 0], sizes = [8, 16, 32], strides = [1, 1, 1]} : vector<8x16x128xbf16> to vector<8x16x32xbf16>
    "tpu.trace_start"() <{level = 10 : i32, message = "bqk,bkd->bqd"}> : () -> ()
    %cst_15 = arith.constant dense<0.000000e+00> : vector<8x8x32xf32>
    %23 = tpu.matmul %21, %22, %cst_15 {dimension_numbers = #tpu.dot_dimension_numbers<[2], [1], [1], [2], [0, 0, 0, 1, 1, 2], [0], [0]>} : vector<8x8x16xbf16>, vector<8x16x32xbf16>, vector<8x8x32xf32> -> vector<8x8x32xf32>
    "tpu.trace_stop"() : () -> ()
    %24 = vector.extract_strided_slice %19 {offsets = [0, 0, 0], sizes = [8, 8, 1], strides = [1, 1, 1]} : vector<8x32x1xf32> to vector<8x8x1xf32>
    %25 = vector.broadcast %24 : vector<8x8x1xf32> to vector<8x8x32xf32>
    %26 = arith.mulf %23, %25 : vector<8x8x32xf32>
    %27 = vector.shape_cast %26 : vector<8x8x32xf32> to vector<64x32xf32>
    %c0_16 = arith.constant 0 : index
    %c0_17 = arith.constant 0 : index
    %28 = vector.load %arg9[%c0_16, %c0_17] : memref<64x128xf32, #tpu.memory_space<vmem>>, vector<64x32xf32>
    tpu.vector_store %arg9[%c0_16, %c0_17], %27 {strides = array<i32>} : memref<64x128xf32, #tpu.memory_space<vmem>>, vector<64x32xf32>,
    %29 = vector.extract_strided_slice %20 {offsets = [0, 8, 0], sizes = [8, 8, 16], strides = [1, 1, 1]} : vector<8x32x16xbf16> to vector<8x8x16xbf16>
    %30 = vector.extract_strided_slice %8 {offsets = [0, 0, 32], sizes = [8, 16, 32], strides = [1, 1, 1]} : vector<8x16x128xbf16> to vector<8x16x32xbf16>
    "tpu.trace_start"() <{level = 10 : i32, message = "bqk,bkd->bqd"}> : () -> ()
    %cst_18 = arith.constant dense<0.000000e+00> : vector<8x8x32xf32>
    %31 = tpu.matmul %29, %30, %cst_18 {dimension_numbers = #tpu.dot_dimension_numbers<[2], [1], [1], [2], [0, 0, 0, 1, 1, 2], [0], [0]>} : vector<8x8x16xbf16>, vector<8x16x32xbf16>, vector<8x8x32xf32> -> vector<8x8x32xf32>
    "tpu.trace_stop"() : () -> ()
    %32 = vector.extract_strided_slice %19 {offsets = [0, 8, 0], sizes = [8, 8, 1], strides = [1, 1, 1]} : vector<8x32x1xf32> to vector<8x8x1xf32>
    %33 = vector.broadcast %32 : vector<8x8x1xf32> to vector<8x8x32xf32>
    %34 = arith.mulf %31, %33 : vector<8x8x32xf32>
    %35 = vector.shape_cast %34 : vector<8x8x32xf32> to vector<64x32xf32>
    %c0_19 = arith.constant 0 : index
    %c32 = arith.constant 32 : index
    %36 = vector.load %arg9[%c0_19, %c32] : memref<64x128xf32, #tpu.memory_space<vmem>>, vector<64x32xf32>
    tpu.vector_store %arg9[%c0_19, %c32], %35 {strides = array<i32>} : memref<64x128xf32, #tpu.memory_space<vmem>>, vector<64x32xf32>,
    %37 = vector.extract_strided_slice %20 {offsets = [0, 16, 0], sizes = [8, 8, 16], strides = [1, 1, 1]} : vector<8x32x16xbf16> to vector<8x8x16xbf16>
    %38 = vector.extract_strided_slice %8 {offsets = [0, 0, 64], sizes = [8, 16, 32], strides = [1, 1, 1]} : vector<8x16x128xbf16> to vector<8x16x32xbf16>
    "tpu.trace_start"() <{level = 10 : i32, message = "bqk,bkd->bqd"}> : () -> ()
    %cst_20 = arith.constant dense<0.000000e+00> : vector<8x8x32xf32>
    %39 = tpu.matmul %37, %38, %cst_20 {dimension_numbers = #tpu.dot_dimension_numbers<[2], [1], [1], [2], [0, 0, 0, 1, 1, 2], [0], [0]>} : vector<8x8x16xbf16>, vector<8x16x32xbf16>, vector<8x8x32xf32> -> vector<8x8x32xf32>
    "tpu.trace_stop"() : () -> ()
    %40 = vector.extract_strided_slice %19 {offsets = [0, 16, 0], sizes = [8, 8, 1], strides = [1, 1, 1]} : vector<8x32x1xf32> to vector<8x8x1xf32>
    %41 = vector.broadcast %40 : vector<8x8x1xf32> to vector<8x8x32xf32>
    %42 = arith.mulf %39, %41 : vector<8x8x32xf32>
    %43 = vector.shape_cast %42 : vector<8x8x32xf32> to vector<64x32xf32>
    %c0_21 = arith.constant 0 : index
    %c64 = arith.constant 64 : index
    %44 = vector.load %arg9[%c0_21, %c64] : memref<64x128xf32, #tpu.memory_space<vmem>>, vector<64x32xf32>
    tpu.vector_store %arg9[%c0_21, %c64], %43 {strides = array<i32>} : memref<64x128xf32, #tpu.memory_space<vmem>>, vector<64x32xf32>,
    %45 = vector.extract_strided_slice %20 {offsets = [0, 24, 0], sizes = [8, 8, 16], strides = [1, 1, 1]} : vector<8x32x16xbf16> to vector<8x8x16xbf16>
    %46 = vector.extract_strided_slice %8 {offsets = [0, 0, 96], sizes = [8, 16, 32], strides = [1, 1, 1]} : vector<8x16x128xbf16> to vector<8x16x32xbf16>
    "tpu.trace_start"() <{level = 10 : i32, message = "bqk,bkd->bqd"}> : () -> ()
    %cst_22 = arith.constant dense<0.000000e+00> : vector<8x8x32xf32>
    %47 = tpu.matmul %45, %46, %cst_22 {dimension_numbers = #tpu.dot_dimension_numbers<[2], [1], [1], [2], [0, 0, 0, 1, 1, 2], [0], [0]>} : vector<8x8x16xbf16>, vector<8x16x32xbf16>, vector<8x8x32xf32> -> vector<8x8x32xf32>
    "tpu.trace_stop"() : () -> ()
    %48 = vector.extract_strided_slice %19 {offsets = [0, 24, 0], sizes = [8, 8, 1], strides = [1, 1, 1]} : vector<8x32x1xf32> to vector<8x8x1xf32>
    %49 = vector.broadcast %48 : vector<8x8x1xf32> to vector<8x8x32xf32>
    %50 = arith.mulf %47, %49 : vector<8x8x32xf32>
    %51 = vector.shape_cast %50 : vector<8x8x32xf32> to vector<64x32xf32>
    %c0_23 = arith.constant 0 : index
    %c96 = arith.constant 96 : index
    %52 = vector.load %arg9[%c0_23, %c96] : memref<64x128xf32, #tpu.memory_space<vmem>>, vector<64x32xf32>
    tpu.vector_store %arg9[%c0_23, %c96], %51 {strides = array<i32>} : memref<64x128xf32, #tpu.memory_space<vmem>>, vector<64x32xf32>,
    %c0_24 = arith.constant 0 : index
    %c0_25 = arith.constant 0 : index
    %53 = vector.load %arg9[%c0_24, %c0_25] : memref<64x128xf32, #tpu.memory_space<vmem>>, vector<64x128xf32>
    %c0_26 = arith.constant 0 : index
    %c0_27 = arith.constant 0 : index
    %54 = vector.load %arg2[%c0_26, %c0_27] : memref<64x128xf32, #tpu.memory_space<vmem>>, vector<64x128xf32>
    %55 = arith.addf %53, %54 : vector<64x128xf32>
    %56 = arith.truncf %55 : vector<64x128xf32> to vector<64x128xbf16>
    %c0_28 = arith.constant 0 : index
    %c0_29 = arith.constant 0 : index
    %57 = vector.load %arg6[%c0_28, %c0_29] : memref<128x128xbf16, #tpu.memory_space<vmem>>, vector<128x128xbf16>
    %cst_30 = arith.constant dense<0.000000e+00> : vector<64x128xf32>
    %58 = tpu.matmul %56, %57, %cst_30 {dimension_numbers = #tpu.dot_dimension_numbers<[1], [0], [0], [1], [0, 0, 1, 1], [], []>} : vector<64x128xbf16>, vector<128x128xbf16>, vector<64x128xf32> -> vector<64x128xf32>
    %c0_31 = arith.constant 0 : index
    %c0_32 = arith.constant 0 : index
    %59 = vector.load %arg7[%c0_31, %c0_32] : memref<1x128xf32, #tpu.memory_space<vmem>>, vector<1x128xf32>
    %60 = vector.broadcast %59 : vector<1x128xf32> to vector<64x128xf32>
    %61 = arith.addf %58, %60 : vector<64x128xf32>
    %cst_33 = arith.constant 0.000000e+00 : f32
    %62 = vector.broadcast %cst_33 : f32 to vector<64x128xf32>
    %63 = arith.maximumf %61, %62 : vector<64x128xf32>
    %64 = arith.addf %55, %63 : vector<64x128xf32>
    %c0_34 = arith.constant 0 : index
    %c0_35 = arith.constant 0 : index
    %65 = vector.load %arg8[%c0_34, %c0_35] : memref<64x128xf32, #tpu.memory_space<vmem>>, vector<64x128xf32>
    tpu.vector_store %arg8[%c0_34, %c0_35], %64 {strides = array<i32>} : memref<64x128xf32, #tpu.memory_space<vmem>>, vector<64x128xf32>,
    return
  }
  func.func @transform_0(%arg0: i32) -> (i32, i32, i32) {
    %c0_i32 = arith.constant 0 : i32
    %c0_i32_0 = arith.constant 0 : i32
    %c0_i32_1 = arith.constant 0 : i32
    %c0_i32_2 = arith.constant 0 : i32
    return %c0_i32, %c0_i32_0, %c0_i32_1 : i32, i32, i32
  }
  func.func @transform_1(%arg0: i32) -> (i32, i32) {
    %c0_i32 = arith.constant 0 : i32
    %c0_i32_0 = arith.constant 0 : i32
    %c0_i32_1 = arith.constant 0 : i32
    return %c0_i32, %c0_i32_0 : i32, i32
  }
  func.func @transform_2(%arg0: i32) -> (i32, i32, i32) {
    %c0_i32 = arith.constant 0 : i32
    %c0_i32_0 = arith.constant 0 : i32
    %c0_i32_1 = arith.constant 0 : i32
    return %arg0, %c0_i32, %c0_i32_0 : i32, i32, i32
  }
  func.func @transform_3(%arg0: i32) -> (i32, i32) {
    %c0_i32 = arith.constant 0 : i32
    %c0_i32_0 = arith.constant 0 : i32
    %c0_i32_1 = arith.constant 0 : i32
    return %c0_i32, %c0_i32_0 : i32, i32
  }
  func.func @transform_4(%arg0: i32) -> (i32, i32) {
    %c0_i32 = arith.constant 0 : i32
    %c0_i32_0 = arith.constant 0 : i32
    %c0_i32_1 = arith.constant 0 : i32
    return %c0_i32, %c0_i32_0 : i32, i32
  }
  func.func @transform_5(%arg0: i32) -> (i32, i32) {
    %c0_i32 = arith.constant 0 : i32
    %c0_i32_0 = arith.constant 0 : i32
    %c0_i32_1 = arith.constant 0 : i32
    return %c0_i32, %c0_i32_0 : i32, i32
  }
  func.func @transform_6(%arg0: i32) -> (i32, i32) {
    %c0_i32 = arith.constant 0 : i32
    %c0_i32_0 = arith.constant 0 : i32
    %c0_i32_1 = arith.constant 0 : i32
    return %c0_i32, %c0_i32_0 : i32, i32
  }
  func.func @transform_7(%arg0: i32) -> (i32, i32) {
    %c0_i32 = arith.constant 0 : i32
    %c0_i32_0 = arith.constant 0 : i32
    return %arg0, %c0_i32 : i32, i32
  }
}

</mosaic_0001>

<llo_original>
// kernel: tpu_custom_call.1
$region0: #{tpu_custom_call.1}
  #allocation0 [shape = 'u32[]', space=smem, size = 0x4, offset = 0x4, fixed_abs, tag = 'smem constant byte address 0x4 - core index']
  #allocation1 [shape = 'u32[144,128]{1,0:T(1,128)}', space=vmem, size = 0x12000, scoped, tag = 'internal scratch']
  #allocation2 [shape = 'f32[64,128]{1,0:T(8,128)}', space=vmem, size = 0x8000, scoped, tag = 'scratch operand']
  %s0 = inlined_call_operand.hbm [shape: bf16[8,32,128], index: 0, kind: input, shape index: {}]
  %s1 = inlined_call_operand.hbm [shape: f32[64,128], index: 1, kind: input, shape index: {}]
  %s2 = inlined_call_operand.hbm [shape: bf16[16,16,128], index: 2, kind: input, shape index: {}]
  %s3 = inlined_call_operand.hbm [shape: bf16[128,128], index: 3, kind: input, shape index: {}]
  %s4 = inlined_call_operand.vmem [shape: f32[1,128], index: 4, kind: input, shape index: {}]
  %s5 = inlined_call_operand.hbm [shape: bf16[128,128], index: 5, kind: input, shape index: {}]
  %s6 = inlined_call_operand.vmem [shape: f32[1,128], index: 6, kind: input, shape index: {}]
  %s7 = inlined_call_operand.hbm [shape: f32[128,128], index: 7, kind: output, shape index: {}]
  %s8 = sld [smem:[#allocation0]]
  $region81: #{tpu_custom_call.1} parent=0
    _
  %s10 = ssub.s32 1, %s8
  %s11 = scalar_select 0, %s10, %s8
  $region1: #{tpu_custom_call.1} parent=0
    #allocation3 [shape = 'u8[65536]{0}', space=vmem, size = 0x10000, scoped, tag = 'input window, operand 0, single buffered']
    #allocation4 [shape = 's32[2]{0}', space=sflag, size = 0x8, scoped, tag = 'scoped memory for tpu_custom_call.1']
    #allocation5 [shape = 's32[2]{0}', space=sflag, size = 0x8, scoped, tag = 'scoped memory for tpu_custom_call.1']
    #allocation6 [shape = 'u8[32768]{0}', space=vmem, size = 0x8000, scoped, tag = 'input window, operand 1, single buffered']
    #allocation7 [shape = 's32[1]{0}', space=sflag, size = 0x4, scoped, tag = 'scoped memory for tpu_custom_call.1']
    #allocation8 [shape = 'u8[65536]{0}', space=vmem, size = 0x10000, scoped, tag = 'input window, operand 2']
    #allocation9 [shape = 'u8[32768]{0}', space=vmem, size = 0x8000, scoped, tag = 'input window, operand 3, single buffered']
    #allocation10 [shape = 'u8[32768]{0}', space=vmem, size = 0x8000, scoped, tag = 'input window, operand 5, single buffered']
    #allocation11 [shape = 's32[1]{0}', space=sflag, size = 0x4, scoped, tag = 'scoped memory for tpu_custom_call.1']
    #allocation12 [shape = 'u8[65536]{0}', space=vmem, size = 0x10000, scoped, tag = 'output window, operand 0']
    %12 = vsyncpa [#allocation4], 0
    %13 = vsyncpa [#allocation7], 0
    %14 = vsyncpa [#allocation11], 0
    %15 = vsyncpa [#allocation5], 0
    %s16 = scalar_lea.sflag [#allocation5], 1
    %17 = vsyncpa %s16, 0
    loop: start=0, step=1, limit=4
    $region2: #{tpu_custom_call.1} parent=1 // loop_pre_header
      _
    $region3: #{tpu_custom_call.1} parent=1 // loop_header
      %s19 = sphi 0, %s23
      %p20 = scmp.ge.s32.totalorder %s19, 4
      %s27 = sphi 0, %s27
      %s29 = sphi 0, %s27
      %s30 = sphi 0, %s29
      %s44 = sphi 0, %s30
      %s48 = sphi 0, %s48
      %s50 = sphi 0, %s48
      %s51 = sphi 0, %s50
      %s65 = sphi 0, %s51
      %s71 = sphi 0, %s73
      %s74 = sphi 0, %s71
      %s75 = sphi 0, %s74
      %s91 = sphi 0, %s75
      %s95 = sphi 0, %s95
      %s97 = sphi 0, %s95
      %s98 = sphi 0, %s97
      %s112 = sphi 0, %s98
      %s116 = sphi 0, %s116
      %s118 = sphi 0, %s116
      %s119 = sphi 0, %s118
      %s133 = sphi 0, %s119
      %s137 = sphi 0, %s137
      %s139 = sphi 0, %s137
      %s140 = sphi 0, %s139
      %s154 = sphi 0, %s140
      %s158 = sphi 0, %s158
      %s160 = sphi 0, %s158
      %s161 = sphi 0, %s160
      %s175 = sphi 0, %s161
      %s181 = sphi 0, %s183
      %s184 = sphi 0, %s181
      %s185 = sphi 0, %s184
      %s201 = sphi 0, %s185
    $region4: #{tpu_custom_call.1} parent=1 // loop_header_branch
      %22 = sbr.rel (%p20) target = $region8
    $region5: #{tpu_custom_call.1} parent=1 // loop_body
      %s24 = ssub.s32 %s19, 1
      %s25 = ssub.s32 %s19, 2
      %s26 = sadd.s32 %s19, 1
      %s28 = sadd.s32 %s27, 1
      %p31 = scmp.eq.s32.totalorder %s19, 1
      %p32 = scmp.ne.s32.totalorder %s27, %s29
      %p33 = scmp.eq.s32.totalorder %s19, 0
      %p34 = por %p32, %p33
      %p35 = scmp.ne.s32.totalorder %s27, %s29
      %p36 = scmp.eq.s32.totalorder %s24, 1
      %p37 = por %p35, %p36
      %p38 = scmp.ne.s32.totalorder %s29, %s30
      %p39 = scmp.eq.s32.totalorder %s24, 0
      %p40 = por %p38, %p39
      %p41 = scmp.ne.s32.totalorder %s29, %s30
      %p42 = scmp.eq.s32.totalorder %s25, 1
      %p43 = por %p41, %p42
      %p45 = scmp.ne.s32.totalorder %s30, %s44
      %p46 = scmp.eq.s32.totalorder %s25, 0
      %p47 = por %p45, %p46
      %s49 = sadd.s32 %s48, 1
      %p52 = scmp.eq.s32.totalorder %s19, 1
      %p53 = scmp.ne.s32.totalorder %s48, %s50
      %p54 = scmp.eq.s32.totalorder %s19, 0
      %p55 = por %p53, %p54
      %p56 = scmp.ne.s32.totalorder %s48, %s50
      %p57 = scmp.eq.s32.totalorder %s24, 1
      %p58 = por %p56, %p57
      %p59 = scmp.ne.s32.totalorder %s50, %s51
      %p60 = scmp.eq.s32.totalorder %s24, 0
      %p61 = por %p59, %p60
      %p62 = scmp.ne.s32.totalorder %s50, %s51
      %p63 = scmp.eq.s32.totalorder %s25, 1
      %p64 = por %p62, %p63
      %p66 = scmp.ne.s32.totalorder %s51, %s65
      %p67 = scmp.eq.s32.totalorder %s25, 0
      %p68 = por %p66, %p67
      %s69 = ssub.s32 %s19, %s26
      %p70 = scmp.eq.s32.totalorder %s69, 0
      %s72 = sadd.s32 %s71, 1
      %s73 = scalar_select %p70, %s71, %s72
      %p76 = pneg %p70
      %p77 = scmp.eq.s32.totalorder %s19, 1
      %p78 = por %p76, %p77
      %p79 = scmp.ne.s32.totalorder %s71, %s74
      %p80 = scmp.eq.s32.totalorder %s19, 0
      %p81 = por %p79, %p80
      %p82 = scmp.ne.s32.totalorder %s71, %s74
      %p83 = scmp.eq.s32.totalorder %s24, 1
      %p84 = por %p82, %p83
      %p85 = scmp.ne.s32.totalorder %s74, %s75
      %p86 = scmp.eq.s32.totalorder %s24, 0
      %p87 = por %p85, %p86
      %p88 = scmp.ne.s32.totalorder %s74, %s75
      %p89 = scmp.eq.s32.totalorder %s25, 1
      %p90 = por %p88, %p89
      %p92 = scmp.ne.s32.totalorder %s75, %s91
      %p93 = scmp.eq.s32.totalorder %s25, 0
      %p94 = por %p92, %p93
      %s96 = sadd.s32 %s95, 1
      %p99 = scmp.eq.s32.totalorder %s19, 1
      %p100 = scmp.ne.s32.totalorder %s95, %s97
      %p101 = scmp.eq.s32.totalorder %s19, 0
      %p102 = por %p100, %p101
      %p103 = scmp.ne.s32.totalorder %s95, %s97
      %p104 = scmp.eq.s32.totalorder %s24, 1
      %p105 = por %p103, %p104
      %p106 = scmp.ne.s32.totalorder %s97, %s98
      %p107 = scmp.eq.s32.totalorder %s24, 0
      %p108 = por %p106, %p107
      %p109 = scmp.ne.s32.totalorder %s97, %s98
      %p110 = scmp.eq.s32.totalorder %s25, 1
      %p111 = por %p109, %p110
      %p113 = scmp.ne.s32.totalorder %s98, %s112
      %p114 = scmp.eq.s32.totalorder %s25, 0
      %p115 = por %p113, %p114
      %s117 = sadd.s32 %s116, 1
      %p120 = scmp.eq.s32.totalorder %s19, 1
      %p121 = scmp.ne.s32.totalorder %s116, %s118
      %p122 = scmp.eq.s32.totalorder %s19, 0
      %p123 = por %p121, %p122
      %p124 = scmp.ne.s32.totalorder %s116, %s118
      %p125 = scmp.eq.s32.totalorder %s24, 1
      %p126 = por %p124, %p125
      %p127 = scmp.ne.s32.totalorder %s118, %s119
      %p128 = scmp.eq.s32.totalorder %s24, 0
      %p129 = por %p127, %p128
      %p130 = scmp.ne.s32.totalorder %s118, %s119
      %p131 = scmp.eq.s32.totalorder %s25, 1
      %p132 = por %p130, %p131
      %p134 = scmp.ne.s32.totalorder %s119, %s133
      %p135 = scmp.eq.s32.totalorder %s25, 0
      %p136 = por %p134, %p135
      %s138 = sadd.s32 %s137, 1
      %p141 = scmp.eq.s32.totalorder %s19, 1
      %p142 = scmp.ne.s32.totalorder %s137, %s139
      %p143 = scmp.eq.s32.totalorder %s19, 0
      %p144 = por %p142, %p143
      %p145 = scmp.ne.s32.totalorder %s137, %s139
      %p146 = scmp.eq.s32.totalorder %s24, 1
      %p147 = por %p145, %p146
      %p148 = scmp.ne.s32.totalorder %s139, %s140
      %p149 = scmp.eq.s32.totalorder %s24, 0
      %p150 = por %p148, %p149
      %p151 = scmp.ne.s32.totalorder %s139, %s140
      %p152 = scmp.eq.s32.totalorder %s25, 1
      %p153 = por %p151, %p152
      %p155 = scmp.ne.s32.totalorder %s140, %s154
      %p156 = scmp.eq.s32.totalorder %s25, 0
      %p157 = por %p155, %p156
      %s159 = sadd.s32 %s158, 1
      %p162 = scmp.eq.s32.totalorder %s19, 1
      %p163 = scmp.ne.s32.totalorder %s158, %s160
      %p164 = scmp.eq.s32.totalorder %s19, 0
      %p165 = por %p163, %p164
      %p166 = scmp.ne.s32.totalorder %s158, %s160
      %p167 = scmp.eq.s32.totalorder %s24, 1
      %p168 = por %p166, %p167
      %p169 = scmp.ne.s32.totalorder %s160, %s161
      %p170 = scmp.eq.s32.totalorder %s24, 0
      %p171 = por %p169, %p170
      %p172 = scmp.ne.s32.totalorder %s160, %s161
      %p173 = scmp.eq.s32.totalorder %s25, 1
      %p174 = por %p172, %p173
      %p176 = scmp.ne.s32.totalorder %s161, %s175
      %p177 = scmp.eq.s32.totalorder %s25, 0
      %p178 = por %p176, %p177
      %s179 = ssub.s32 %s19, %s26
      %p180 = scmp.eq.s32.totalorder %s179, 0
      %s182 = sadd.s32 %s181, 1
      %s183 = scalar_select %p180, %s181, %s182
      %p186 = pneg %p180
      %p187 = scmp.eq.s32.totalorder %s19, 1
      %p188 = por %p186, %p187
      %p189 = scmp.ne.s32.totalorder %s181, %s184
      %p190 = scmp.eq.s32.totalorder %s19, 0
      %p191 = por %p189, %p190
      %p192 = scmp.ne.s32.totalorder %s181, %s184
      %p193 = scmp.eq.s32.totalorder %s24, 1
      %p194 = por %p192, %p193
      %p195 = scmp.ne.s32.totalorder %s184, %s185
      %p196 = scmp.eq.s32.totalorder %s24, 0
      %p197 = por %p195, %p196
      %p198 = scmp.ne.s32.totalorder %s184, %s185
      %p199 = scmp.eq.s32.totalorder %s25, 1
      %p200 = por %p198, %p199
      %p202 = scmp.ne.s32.totalorder %s185, %s201
      %p203 = scmp.eq.s32.totalorder %s25, 0
      %p204 = por %p202, %p203
      %p205 = scmp.le.s32.totalorder 1, %s19
      %p206 = scmp.lt.s32.totalorder %s19, 3
      %p207 = pnand %p205, %p206
      %p208 = pneg %p207
      // Predicated region
      $region9: #{tpu_custom_call.1} parent=5 // pred_check
        _
      $region10: #{tpu_custom_call.1} parent=5 // pred_check_branch
        %210 = sbr.rel (%p207) target = $region12
      $region11: #{tpu_custom_call.1} parent=5 // pred_region
        %s211 = ssub.s32 %s19, 1
        // Predicated region
        $region13: #{tpu_custom_call.1} parent=11 // pred_check
          %p212 = pneg %p40
        $region14: #{tpu_custom_call.1} parent=11 // pred_check_branch
          %214 = sbr.rel (%p212) target = $region16
        $region15: #{tpu_custom_call.1} parent=11 // pred_region
          %s216 = ssub.s32 2048, 2048
          %217 = vsyncadd [#allocation4], %s216
          %s218 = sshll.u32 [#allocation3], 4
          %s219 = int_to_ptr.vmem [resolvable:$true] %s218
          %224 = dma.hbm_to_vmem [thread:$0]  %s0, 2048, %s219, [#allocation4], 64, 64, 4
        $region16: #{tpu_custom_call.1} parent=11 // pred_fallthru
          _
        // Predicated region
        $region17: #{tpu_custom_call.1} parent=11 // pred_check
          %p225 = pneg %p61
        $region18: #{tpu_custom_call.1} parent=11 // pred_check_branch
          %227 = sbr.rel (%p225) target = $region20
        $region19: #{tpu_custom_call.1} parent=11 // pred_region
          %s229 = ssub.s32 1024, 1024
          %230 = vsyncadd [#allocation7], %s229
          %s231 = sshll.u32 [#allocation6], 4
          %s232 = int_to_ptr.vmem [resolvable:$true] %s231
          %237 = dma.hbm_to_vmem [thread:$0]  %s1, 1024, %s232, [#allocation7], 128, 128, 8
        $region20: #{tpu_custom_call.1} parent=11 // pred_fallthru
          _
        // Predicated region
        $region21: #{tpu_custom_call.1} parent=11 // pred_check
          %p238 = pneg %p108
        $region22: #{tpu_custom_call.1} parent=11 // pred_check_branch
          %240 = sbr.rel (%p238) target = $region24
        $region23: #{tpu_custom_call.1} parent=11 // pred_region
          %s242 = ssub.s32 1024, 1024
          %243 = vsyncadd [#allocation7], %s242
          %s244 = sshll.u32 [#allocation9], 4
          %s245 = int_to_ptr.vmem [resolvable:$true] %s244
          %250 = dma.hbm_to_vmem [thread:$0]  %s3, 1024, %s245, [#allocation7], 64, 64, 4
        $region24: #{tpu_custom_call.1} parent=11 // pred_fallthru
          _
        // Predicated region
        $region25: #{tpu_custom_call.1} parent=11 // pred_check
          %p251 = pneg %p129
        $region26: #{tpu_custom_call.1} parent=11 // pred_check_branch
          %253 = sbr.rel (%p251) target = $region28
        $region27: #{tpu_custom_call.1} parent=11 // pred_region
          _
        $region28: #{tpu_custom_call.1} parent=11 // pred_fallthru
          _
        // Predicated region
        $region29: #{tpu_custom_call.1} parent=11 // pred_check
          %p254 = pneg %p150
        $region30: #{tpu_custom_call.1} parent=11 // pred_check_branch
          %256 = sbr.rel (%p254) target = $region32
        $region31: #{tpu_custom_call.1} parent=11 // pred_region
          %s258 = ssub.s32 1024, 1024
          %259 = vsyncadd [#allocation11], %s258
          %s260 = sshll.u32 [#allocation10], 4
          %s261 = int_to_ptr.vmem [resolvable:$true] %s260
          %266 = dma.hbm_to_vmem [thread:$0]  %s5, 1024, %s261, [#allocation11], 64, 64, 4
        $region32: #{tpu_custom_call.1} parent=11 // pred_fallthru
          _
        // Predicated region
        $region33: #{tpu_custom_call.1} parent=11 // pred_check
          %p267 = pneg %p171
        $region34: #{tpu_custom_call.1} parent=11 // pred_check_branch
          %269 = sbr.rel (%p267) target = $region36
        $region35: #{tpu_custom_call.1} parent=11 // pred_region
          _
        $region36: #{tpu_custom_call.1} parent=11 // pred_fallthru
          _
      $region12: #{tpu_custom_call.1} parent=5 // pred_fallthru
        _
      %p270 = scmp.lt.s32.totalorder %s19, 2
      // Predicated region
      $region37: #{tpu_custom_call.1} parent=5 // pred_check
        %p271 = pneg %p270
      $region38: #{tpu_custom_call.1} parent=5 // pred_check_branch
        %273 = sbr.rel (%p271) target = $region40
      $region39: #{tpu_custom_call.1} parent=5 // pred_region
        // Predicated region
        $region41: #{tpu_custom_call.1} parent=39 // pred_check
          %p274 = pneg %p81
        $region42: #{tpu_custom_call.1} parent=39 // pred_check_branch
          %276 = sbr.rel (%p274) target = $region44
        $region43: #{tpu_custom_call.1} parent=39 // pred_region
          %s277 = sand.u32 %s19, 1
          %s278 = scalar_lea.sflag [#allocation4], %s277
          %s279 = sand.u32 %s71, 1
          %s280 = smul.addr %s279, 64
          %s281 = scalar_lea.vmem [#allocation8], %s280
          %s282 = smul.u32 8, %s19
          %s284 = ssub.s32 1024, 1024
          %285 = vsyncadd %s278, %s284
          %s286 = smul.addr %s282, 2
          %s287 = smul.addr %s286, 64
          %s288 = scalar_lea.hbm %s2, %s287
          %s289 = sshll.u32 %s281, 4
          %s290 = int_to_ptr.vmem [resolvable:$true] %s289
          %295 = dma.hbm_to_vmem [thread:$0]  %s288, 1024, %s290, %s278, 64, 64, 4
        $region44: #{tpu_custom_call.1} parent=39 // pred_fallthru
          _
      $region40: #{tpu_custom_call.1} parent=5 // pred_fallthru
        _
      %p296 = scmp.le.s32.totalorder 1, %s19
      %p297 = scmp.lt.s32.totalorder %s19, 3
      %p298 = pnand %p296, %p297
      %p299 = pneg %p298
      // Predicated region
      $region45: #{tpu_custom_call.1} parent=5 // pred_check
        _
      $region46: #{tpu_custom_call.1} parent=5 // pred_check_branch
        %301 = sbr.rel (%p298) target = $region48
      $region47: #{tpu_custom_call.1} parent=5 // pred_region
        %s302 = ssub.s32 %s19, 1
        // Predicated region
        $region49: #{tpu_custom_call.1} parent=47 // pred_check
          %p303 = pneg %p40
        $region50: #{tpu_custom_call.1} parent=47 // pred_check_branch
          %305 = sbr.rel (%p303) target = $region52
        $region51: #{tpu_custom_call.1} parent=47 // pred_region
          %306 = dma.done [#allocation4], 2048
        $region52: #{tpu_custom_call.1} parent=47 // pred_fallthru
          _
        // Predicated region
        $region53: #{tpu_custom_call.1} parent=47 // pred_check
          %p307 = pneg %p61
        $region54: #{tpu_custom_call.1} parent=47 // pred_check_branch
          %309 = sbr.rel (%p307) target = $region56
        $region55: #{tpu_custom_call.1} parent=47 // pred_region
          %310 = dma.done [#allocation7], 1024
        $region56: #{tpu_custom_call.1} parent=47 // pred_fallthru
          _
        %s311 = sand.u32 %s24, 1
        %s312 = scalar_lea.sflag [#allocation4], %s311
        %s313 = sand.u32 %s74, 1
        %s314 = smul.addr %s313, 64
        %s315 = scalar_lea.vmem [#allocation8], %s314
        // Predicated region
        $region57: #{tpu_custom_call.1} parent=47 // pred_check
          %p316 = pneg %p87
        $region58: #{tpu_custom_call.1} parent=47 // pred_check_branch
          %318 = sbr.rel (%p316) target = $region60
        $region59: #{tpu_custom_call.1} parent=47 // pred_region
          %319 = dma.done %s312, 1024
        $region60: #{tpu_custom_call.1} parent=47 // pred_fallthru
          _
        // Predicated region
        $region61: #{tpu_custom_call.1} parent=47 // pred_check
          %p320 = pneg %p108
        $region62: #{tpu_custom_call.1} parent=47 // pred_check_branch
          %322 = sbr.rel (%p320) target = $region64
        $region63: #{tpu_custom_call.1} parent=47 // pred_region
          %323 = dma.done [#allocation7], 1024
        $region64: #{tpu_custom_call.1} parent=47 // pred_fallthru
          _
        // Predicated region
        $region65: #{tpu_custom_call.1} parent=47 // pred_check
          %p324 = pneg %p150
        $region66: #{tpu_custom_call.1} parent=47 // pred_check_branch
          %326 = sbr.rel (%p324) target = $region68
        $region67: #{tpu_custom_call.1} parent=47 // pred_region
          %327 = dma.done [#allocation11], 1024
        $region68: #{tpu_custom_call.1} parent=47 // pred_fallthru
          _
        %p328 = pneg %p40
        %p329 = pneg %p37
        %p330 = pneg %p61
        %p331 = pneg %p58
        %s332 = sand.u32 %s24, 1
        %s333 = scalar_lea.sflag [#allocation4], %s332
        %s334 = sand.u32 %s74, 1
        %s335 = smul.addr %s334, 64
        %s336 = scalar_lea.vmem [#allocation8], %s335
        %p337 = pneg %p87
        %p338 = pneg %p84
        %p339 = pneg %p108
        %p340 = pneg %p105
        %p341 = pneg %p129
        %p342 = pneg %p126
        %p343 = pneg %p150
        %p344 = pneg %p147
        %p345 = pneg %p171
        %p346 = pneg %p168
        %p347 = pneg %p197
        %p348 = pneg %p194
        %s349 = sand.u32 %s184, 1
        %s350 = scalar_lea.sflag [#allocation5], %s349
        %s351 = sand.u32 %s184, 1
        %s352 = smul.addr %s351, 64
        %s353 = scalar_lea.vmem [#allocation12], %s352
        %s354 = smul.u32 8, %s24
        %s355 = smul.u32 8, %s24
        %v357 = vld [vmem:[%s315] sm:$0xf]
        %v358 = vld [vmem:[%s315 + $0x4] sm:$0xf]
        %v359 = vld [vmem:[%s315 + $0x8] sm:$0xf]
        %v360 = vld [vmem:[%s315 + $0xc] sm:$0xf]
        %v361 = vld [vmem:[%s315 + $0x10] sm:$0xf]
        %v362 = vld [vmem:[%s315 + $0x14] sm:$0xf]
        %v363 = vld [vmem:[%s315 + $0x18] sm:$0xf]
        %v364 = vld [vmem:[%s315 + $0x1c] sm:$0xf]
        %v365 = vld [vmem:[%s315 + $0x20] sm:$0xf]
        %v366 = vld [vmem:[%s315 + $0x24] sm:$0xf]
        %v367 = vld [vmem:[%s315 + $0x28] sm:$0xf]
        %v368 = vld [vmem:[%s315 + $0x2c] sm:$0xf]
        %v369 = vld [vmem:[%s315 + $0x30] sm:$0xf]
        %v370 = vld [vmem:[%s315 + $0x34] sm:$0xf]
        %v371 = vld [vmem:[%s315 + $0x38] sm:$0xf]
        %v372 = vld [vmem:[%s315 + $0x3c] sm:$0xf]
        %v373 = vld [vmem:[#allocation9] sm:$0xf]
        %v374 = vld [vmem:[#allocation9 + $0x4] sm:$0xf]
        %v375 = vld [vmem:[#allocation9 + $0x8] sm:$0xf]
        %v376 = vld [vmem:[#allocation9 + $0xc] sm:$0xf]
        %v377 = vld [vmem:[#allocation9 + $0x10] sm:$0xf]
        %v378 = vld [vmem:[#allocation9 + $0x14] sm:$0xf]
        %v379 = vld [vmem:[#allocation9 + $0x18] sm:$0xf]
        %v380 = vld [vmem:[#allocation9 + $0x1c] sm:$0xf]
        %v381 = vld [vmem:[#allocation9 + $0x20] sm:$0xf]
        %v382 = vld [vmem:[#allocation9 + $0x24] sm:$0xf]
        %v383 = vld [vmem:[#allocation9 + $0x28] sm:$0xf]
        %v384 = vld [vmem:[#allocation9 + $0x2c] sm:$0xf]
        %v385 = vld [vmem:[#allocation9 + $0x30] sm:$0xf]
        %v386 = vld [vmem:[#allocation9 + $0x34] sm:$0xf]
        %v387 = vld [vmem:[#allocation9 + $0x38] sm:$0xf]
        %v388 = vld [vmem:[#allocation9 + $0x3c] sm:$0xf]
        %v389 = vld [vmem:[%s4] sm:$0x1]
        %v391 = vlaneseq
        %v392 = vshrl.u32 %v391, 7
        %v393 = vsub.s32 0, %v392
        %v394 = vrot.slane %v389, %v393
        %v412 = vunpack.c.l.b16 %v357
        %v413 = vunpack.c.l.b16 %v358
        %v414 = vunpack.c.l.b16 %v359
        %v415 = vunpack.c.l.b16 %v360
        %v416 = vunpack.c.l.b16 %v361
        %v417 = vunpack.c.l.b16 %v362
        %v418 = vunpack.c.l.b16 %v363
        %v419 = vunpack.c.l.b16 %v364
        %v420 = vunpack.c.l.b16 %v365
        %v421 = vunpack.c.l.b16 %v366
        %v422 = vunpack.c.l.b16 %v367
        %v423 = vunpack.c.l.b16 %v368
        %v424 = vunpack.c.l.b16 %v369
        %v425 = vunpack.c.l.b16 %v370
        %v426 = vunpack.c.l.b16 %v371
        %v427 = vunpack.c.l.b16 %v372
        %v428 = vpack.c.b16 %v413, %v412
        %v429 = vpack.c.b16 %v415, %v414
        %v430 = vpack.c.b16 %v417, %v416
        %v431 = vpack.c.b16 %v419, %v418
        %v432 = vpack.c.b16 %v421, %v420
        %v433 = vpack.c.b16 %v423, %v422
        %v434 = vpack.c.b16 %v425, %v424
        %v435 = vpack.c.b16 %v427, %v426
        %v460 = vunpack.c.l.b16 %v373
        %v461 = vunpack.c.l.b16 %v374
        %v462 = vunpack.c.l.b16 %v375
        %v463 = vunpack.c.l.b16 %v376
        %v464 = vunpack.c.l.b16 %v377
        %v465 = vunpack.c.l.b16 %v378
        %v466 = vunpack.c.l.b16 %v379
        %v467 = vunpack.c.l.b16 %v380
        %v468 = vunpack.c.l.b16 %v381
        %v469 = vunpack.c.l.b16 %v382
        %v470 = vunpack.c.l.b16 %v383
        %v471 = vunpack.c.l.b16 %v384
        %v472 = vunpack.c.l.b16 %v385
        %v473 = vunpack.c.l.b16 %v386
        %v474 = vunpack.c.l.b16 %v387
        %v475 = vunpack.c.l.b16 %v388
        %v476 = vpack.c.b16 %v461, %v460
        %v477 = vpack.c.b16 %v463, %v462
        %v478 = vpack.c.b16 %v465, %v464
        %v479 = vpack.c.b16 %v467, %v466
        %v480 = vpack.c.b16 %v469, %v468
        %v481 = vpack.c.b16 %v471, %v470
        %v482 = vpack.c.b16 %v473, %v472
        %v483 = vpack.c.b16 %v475, %v474
        %492 = vmatprep.subr.bf16.mxu0 0
        %493 = vmatpush1.bf16.msra.mxu0 %v483
        %494 = vmatprep.subr.bf16.mxu0 0
        %495 = vmatpush1.bf16.msra.mxu0 %v482
        %496 = vmatprep.subr.bf16.mxu0 0
        %497 = vmatpush1.bf16.msra.mxu0 %v481
        %498 = vmatprep.subr.bf16.mxu0 0
        %499 = vmatpush1.bf16.msra.mxu0 %v480
        %500 = vmatprep.subr.bf16.mxu0 0
        %501 = vmatpush1.bf16.msra.mxu0 %v479
        %502 = vmatprep.subr.bf16.mxu0 0
        %503 = vmatpush1.bf16.msra.mxu0 %v478
        %504 = vmatprep.subr.bf16.mxu0 0
        %505 = vmatpush1.bf16.msra.mxu0 %v477
        %506 = vmatprep.subr.bf16.mxu0 0
        %507 = vmatpush1.bf16.msra.mxu0 %v476
        %508 = vmatprep.subr.bf16.mxu0 0
        %509 = vmatpush2.bf16.msra.mxu0 0
        %510 = vmatprep.subr.bf16.mxu0 0
        %511 = vmatpush2.bf16.msra.mxu0 0
        %512 = vmatprep.subr.bf16.mxu0 0
        %513 = vmatpush2.bf16.msra.mxu0 0
        %514 = vmatprep.subr.bf16.mxu0 0
        %515 = vmatpush2.bf16.msra.mxu0 0
        %516 = vmatprep.subr.bf16.mxu0 0
        %517 = vmatpush2.bf16.msra.mxu0 0
        %518 = vmatprep.subr.bf16.mxu0 0
        %519 = vmatpush2.bf16.msra.mxu0 0
        %520 = vmatprep.subr.bf16.mxu0 0
        %521 = vmatpush2.bf16.msra.mxu0 0
        %522 = vmatprep.subr.bf16.mxu0 0
        %523 = vmatpush2.bf16.msra.mxu0 0
        %524 = vmatprep.mubr.bf16.mxu0 0
        %525 = vmatmul.mubr.bf16.gmra.mxu0 %v428
        %v526 = vpop.f32.mrf.mxu0
        %v527 = vadd.f32 %v394, %v526
        %v528 = vpop.f32.mrf.mxu0
        %v529 = vpop.f32.mrf.mxu0
        %v530 = vadd.f32 %v394, %v529
        %v531 = vpop.f32.mrf.mxu0
        %532 = vmatprep.mubr.bf16.mxu0 0
        %533 = vmatmul.mubr.bf16.gmra.mxu0 %v429
        %v534 = vpop.f32.mrf.mxu0
        %v535 = vadd.f32 %v394, %v534
        %v536 = vpop.f32.mrf.mxu0
        %v537 = vpop.f32.mrf.mxu0
        %v538 = vadd.f32 %v394, %v537
        %v539 = vpop.f32.mrf.mxu0
        %540 = vmatprep.mubr.bf16.mxu0 0
        %541 = vmatmul.mubr.bf16.gmra.mxu0 %v430
        %v542 = vpop.f32.mrf.mxu0
        %v543 = vadd.f32 %v394, %v542
        %v544 = vpop.f32.mrf.mxu0
        %v545 = vpop.f32.mrf.mxu0
        %v546 = vadd.f32 %v394, %v545
        %v547 = vpop.f32.mrf.mxu0
        %548 = vmatprep.mubr.bf16.mxu0 0
        %549 = vmatmul.mubr.bf16.gmra.mxu0 %v431
        %v550 = vpop.f32.mrf.mxu0
        %v551 = vadd.f32 %v394, %v550
        %v552 = vpop.f32.mrf.mxu0
        %v553 = vpop.f32.mrf.mxu0
        %v554 = vadd.f32 %v394, %v553
        %v555 = vpop.f32.mrf.mxu0
        %556 = vmatprep.mubr.bf16.mxu0 0
        %557 = vmatmul.mubr.bf16.gmra.mxu0 %v432
        %v558 = vpop.f32.mrf.mxu0
        %v559 = vadd.f32 %v394, %v558
        %v560 = vpop.f32.mrf.mxu0
        %v561 = vpop.f32.mrf.mxu0
        %v562 = vadd.f32 %v394, %v561
        %v563 = vpop.f32.mrf.mxu0
        %564 = vmatprep.mubr.bf16.mxu0 0
        %565 = vmatmul.mubr.bf16.gmra.mxu0 %v433
        %v566 = vpop.f32.mrf.mxu0
        %v567 = vadd.f32 %v394, %v566
        %v568 = vpop.f32.mrf.mxu0
        %v569 = vpop.f32.mrf.mxu0
        %v570 = vadd.f32 %v394, %v569
        %v571 = vpop.f32.mrf.mxu0
        %572 = vmatprep.mubr.bf16.mxu0 0
        %573 = vmatmul.mubr.bf16.gmra.mxu0 %v434
        %v574 = vpop.f32.mrf.mxu0
        %v575 = vadd.f32 %v394, %v574
        %v576 = vpop.f32.mrf.mxu0
        %v577 = vpop.f32.mrf.mxu0
        %v578 = vadd.f32 %v394, %v577
        %v579 = vpop.f32.mrf.mxu0
        %580 = vmatprep.mubr.bf16.mxu0 0
        %581 = vmatmul.mubr.bf16.gmra.mxu0 %v435
        %v582 = vpop.f32.mrf.mxu0
        %v583 = vadd.f32 %v394, %v582
        %v584 = vpop.f32.mrf.mxu0
        %v585 = vpop.f32.mrf.mxu0
        %v586 = vadd.f32 %v394, %v585
        %v587 = vpop.f32.mrf.mxu0
        %588 = vdwg.mxu0
        %v589 = vpack.c.bf16 %v530, %v527
        %v590 = vpack.c.bf16 %v538, %v535
        %v591 = vpack.c.bf16 %v546, %v543
        %v592 = vpack.c.bf16 %v554, %v551
        %v593 = vpack.c.bf16 %v562, %v559
        %v594 = vpack.c.bf16 %v570, %v567
        %v595 = vpack.c.bf16 %v578, %v575
        %v596 = vpack.c.bf16 %v586, %v583
        %v597 = vld [vmem:[#allocation3] sm:$0xf]
        %v598 = vld [vmem:[#allocation3 + $0x4] sm:$0xf]
        %v599 = vld [vmem:[#allocation3 + $0x8] sm:$0xf]
        %v600 = vld [vmem:[#allocation3 + $0xc] sm:$0xf]
        %v601 = vld [vmem:[#allocation3 + $0x10] sm:$0xf]
        %v602 = vld [vmem:[#allocation3 + $0x14] sm:$0xf]
        %v603 = vld [vmem:[#allocation3 + $0x18] sm:$0xf]
        %v604 = vld [vmem:[#allocation3 + $0x1c] sm:$0xf]
        %v605 = vld [vmem:[#allocation3 + $0x20] sm:$0xf]
        %v606 = vld [vmem:[#allocation3 + $0x24] sm:$0xf]
        %v607 = vld [vmem:[#allocation3 + $0x28] sm:$0xf]
        %v608 = vld [vmem:[#allocation3 + $0x2c] sm:$0xf]
        %v609 = vld [vmem:[#allocation3 + $0x30] sm:$0xf]
        %v610 = vld [vmem:[#allocation3 + $0x34] sm:$0xf]
        %v611 = vld [vmem:[#allocation3 + $0x38] sm:$0xf]
        %v612 = vld [vmem:[#allocation3 + $0x3c] sm:$0xf]
        %v613 = vld [vmem:[#allocation3 + $0x40] sm:$0xf]
        %v614 = vld [vmem:[#allocation3 + $0x44] sm:$0xf]
        %v615 = vld [vmem:[#allocation3 + $0x48] sm:$0xf]
        %v616 = vld [vmem:[#allocation3 + $0x4c] sm:$0xf]
        %v617 = vld [vmem:[#allocation3 + $0x50] sm:$0xf]
        %v618 = vld [vmem:[#allocation3 + $0x54] sm:$0xf]
        %v619 = vld [vmem:[#allocation3 + $0x58] sm:$0xf]
        %v620 = vld [vmem:[#allocation3 + $0x5c] sm:$0xf]
        %v621 = vld [vmem:[#allocation3 + $0x60] sm:$0xf]
        %v622 = vld [vmem:[#allocation3 + $0x64] sm:$0xf]
        %v623 = vld [vmem:[#allocation3 + $0x68] sm:$0xf]
        %v624 = vld [vmem:[#allocation3 + $0x6c] sm:$0xf]
        %v625 = vld [vmem:[#allocation3 + $0x70] sm:$0xf]
        %v626 = vld [vmem:[#allocation3 + $0x74] sm:$0xf]
        %v627 = vld [vmem:[#allocation3 + $0x78] sm:$0xf]
        %v628 = vld [vmem:[#allocation3 + $0x7c] sm:$0xf]
        %v633 = vunpack.c.l.b16 %v597
        %v634 = vunpack.c.l.b16 %v598
        %v635 = vunpack.c.l.b16 %v599
        %v636 = vunpack.c.l.b16 %v600
        %v637 = vpack.c.b16 %v634, %v633
        %v638 = vpack.c.b16 %v636, %v635
        %641 = vmatprep.subr.bf16.mxu0 0
        %642 = vmatpush1.bf16.xpose.msra.mxu0 0
        %643 = vmatprep.subr.bf16.mxu0 0
        %644 = vmatpush1.bf16.xpose.msra.mxu0 0
        %645 = vmatprep.subr.bf16.mxu0 0
        %646 = vmatpush1.bf16.xpose.msra.mxu0 0
        %647 = vmatprep.subr.bf16.mxu0 0
        %648 = vmatpush1.bf16.xpose.msra.mxu0 0
        %649 = vmatprep.subr.bf16.mxu0 0
        %650 = vmatpush1.bf16.xpose.msra.mxu0 0
        %651 = vmatprep.subr.bf16.mxu0 0
        %652 = vmatpush1.bf16.xpose.msra.mxu0 0
        %653 = vmatprep.subr.bf16.mxu0 0
        %654 = vmatpush1.bf16.xpose.msra.mxu0 0
        %655 = vmatprep.subr.bf16.mxu0 0
        %656 = vmatpush1.bf16.xpose.msra.mxu0 %v428
        %657 = vmatprep.subr.bf16.mxu0 0
        %658 = vmatpush2.bf16.xpose.msra.mxu0 0
        %659 = vmatprep.subr.bf16.mxu0 0
        %660 = vmatpush2.bf16.xpose.msra.mxu0 0
        %661 = vmatprep.subr.bf16.mxu0 0
        %662 = vmatpush2.bf16.xpose.msra.mxu0 0
        %663 = vmatprep.subr.bf16.mxu0 0
        %664 = vmatpush2.bf16.xpose.msra.mxu0 0
        %665 = vmatprep.subr.bf16.mxu0 0
        %666 = vmatpush2.bf16.xpose.msra.mxu0 0
        %667 = vmatprep.subr.bf16.mxu0 0
        %668 = vmatpush2.bf16.xpose.msra.mxu0 0
        %669 = vmatprep.subr.bf16.mxu0 0
        %670 = vmatpush2.bf16.xpose.msra.mxu0 0
        %671 = vmatprep.subr.bf16.mxu0 0
        %672 = vmatpush2.bf16.xpose.msra.mxu0 0
        %673 = vmatprep.mubr.bf16.mxu0 0
        %674 = vmatmul.mubr.bf16.gmra.mxu0 %v637
        %v675 = vpop.f32.mrf.mxu0
        %v676 = vadd.f32 0.0, %v675
        %v677 = vpop.f32.mrf.mxu0
        %v678 = vpop.f32.mrf.mxu0
        %v679 = vadd.f32 0.0, %v678
        %v680 = vpop.f32.mrf.mxu0
        %681 = vmatprep.mubr.bf16.mxu0 0
        %682 = vmatmul.mubr.bf16.gmra.mxu0 %v638
        %v683 = vpop.f32.mrf.mxu0
        %v684 = vadd.f32 0.0, %v683
        %v685 = vpop.f32.mrf.mxu0
        %v686 = vpop.f32.mrf.mxu0
        %v687 = vadd.f32 0.0, %v686
        %v688 = vpop.f32.mrf.mxu0
        %689 = vdwg.mxu0
        %v694 = vunpack.c.l.b16 %v601
        %v695 = vunpack.c.l.b16 %v602
        %v696 = vunpack.c.l.b16 %v603
        %v697 = vunpack.c.l.b16 %v604
        %v698 = vpack.c.b16 %v695, %v694
        %v699 = vpack.c.b16 %v697, %v696
        %702 = vmatprep.subr.bf16.mxu0 0
        %703 = vmatpush1.bf16.xpose.msra.mxu0 0
        %704 = vmatprep.subr.bf16.mxu0 0
        %705 = vmatpush1.bf16.xpose.msra.mxu0 0
        %706 = vmatprep.subr.bf16.mxu0 0
        %707 = vmatpush1.bf16.xpose.msra.mxu0 0
        %708 = vmatprep.subr.bf16.mxu0 0
        %709 = vmatpush1.bf16.xpose.msra.mxu0 0
        %710 = vmatprep.subr.bf16.mxu0 0
        %711 = vmatpush1.bf16.xpose.msra.mxu0 0
        %712 = vmatprep.subr.bf16.mxu0 0
        %713 = vmatpush1.bf16.xpose.msra.mxu0 0
        %714 = vmatprep.subr.bf16.mxu0 0
        %715 = vmatpush1.bf16.xpose.msra.mxu0 0
        %716 = vmatprep.subr.bf16.mxu0 0
        %717 = vmatpush1.bf16.xpose.msra.mxu0 %v429
        %718 = vmatprep.subr.bf16.mxu0 0
        %719 = vmatpush2.bf16.xpose.msra.mxu0 0
        %720 = vmatprep.subr.bf16.mxu0 0
        %721 = vmatpush2.bf16.xpose.msra.mxu0 0
        %722 = vmatprep.subr.bf16.mxu0 0
        %723 = vmatpush2.bf16.xpose.msra.mxu0 0
        %724 = vmatprep.subr.bf16.mxu0 0
        %725 = vmatpush2.bf16.xpose.msra.mxu0 0
        %726 = vmatprep.subr.bf16.mxu0 0
        %727 = vmatpush2.bf16.xpose.msra.mxu0 0
        %728 = vmatprep.subr.bf16.mxu0 0
        %729 = vmatpush2.bf16.xpose.msra.mxu0 0
        %730 = vmatprep.subr.bf16.mxu0 0
        %731 = vmatpush2.bf16.xpose.msra.mxu0 0
        %732 = vmatprep.subr.bf16.mxu0 0
        %733 = vmatpush2.bf16.xpose.msra.mxu0 0
        %734 = vmatprep.mubr.bf16.mxu0 0
        %735 = vmatmul.mubr.bf16.gmra.mxu0 %v698
        %v736 = vpop.f32.mrf.mxu0
        %v737 = vadd.f32 0.0, %v736
        %v738 = vpop.f32.mrf.mxu0
        %v739 = vpop.f32.mrf.mxu0
        %v740 = vadd.f32 0.0, %v739
        %v741 = vpop.f32.mrf.mxu0
        %742 = vmatprep.mubr.bf16.mxu0 0
        %743 = vmatmul.mubr.bf16.gmra.mxu0 %v699
        %v744 = vpop.f32.mrf.mxu0
        %v745 = vadd.f32 0.0, %v744
        %v746 = vpop.f32.mrf.mxu0
        %v747 = vpop.f32.mrf.mxu0
        %v748 = vadd.f32 0.0, %v747
        %v749 = vpop.f32.mrf.mxu0
        %750 = vdwg.mxu0
        %v755 = vunpack.c.l.b16 %v605
        %v756 = vunpack.c.l.b16 %v606
        %v757 = vunpack.c.l.b16 %v607
        %v758 = vunpack.c.l.b16 %v608
        %v759 = vpack.c.b16 %v756, %v755
        %v760 = vpack.c.b16 %v758, %v757
        %763 = vmatprep.subr.bf16.mxu0 0
        %764 = vmatpush1.bf16.xpose.msra.mxu0 0
        %765 = vmatprep.subr.bf16.mxu0 0
        %766 = vmatpush1.bf16.xpose.msra.mxu0 0
        %767 = vmatprep.subr.bf16.mxu0 0
        %768 = vmatpush1.bf16.xpose.msra.mxu0 0
        %769 = vmatprep.subr.bf16.mxu0 0
        %770 = vmatpush1.bf16.xpose.msra.mxu0 0
        %771 = vmatprep.subr.bf16.mxu0 0
        %772 = vmatpush1.bf16.xpose.msra.mxu0 0
        %773 = vmatprep.subr.bf16.mxu0 0
        %774 = vmatpush1.bf16.xpose.msra.mxu0 0
        %775 = vmatprep.subr.bf16.mxu0 0
        %776 = vmatpush1.bf16.xpose.msra.mxu0 0
        %777 = vmatprep.subr.bf16.mxu0 0
        %778 = vmatpush1.bf16.xpose.msra.mxu0 %v430
        %779 = vmatprep.subr.bf16.mxu0 0
        %780 = vmatpush2.bf16.xpose.msra.mxu0 0
        %781 = vmatprep.subr.bf16.mxu0 0
        %782 = vmatpush2.bf16.xpose.msra.mxu0 0
        %783 = vmatprep.subr.bf16.mxu0 0
        %784 = vmatpush2.bf16.xpose.msra.mxu0 0
        %785 = vmatprep.subr.bf16.mxu0 0
        %786 = vmatpush2.bf16.xpose.msra.mxu0 0
        %787 = vmatprep.subr.bf16.mxu0 0
        %788 = vmatpush2.bf16.xpose.msra.mxu0 0
        %789 = vmatprep.subr.bf16.mxu0 0
        %790 = vmatpush2.bf16.xpose.msra.mxu0 0
        %791 = vmatprep.subr.bf16.mxu0 0
        %792 = vmatpush2.bf16.xpose.msra.mxu0 0
        %793 = vmatprep.subr.bf16.mxu0 0
        %794 = vmatpush2.bf16.xpose.msra.mxu0 0
        %795 = vmatprep.mubr.bf16.mxu0 0
        %796 = vmatmul.mubr.bf16.gmra.mxu0 %v759
        %v797 = vpop.f32.mrf.mxu0
        %v798 = vadd.f32 0.0, %v797
        %v799 = vpop.f32.mrf.mxu0
        %v800 = vpop.f32.mrf.mxu0
        %v801 = vadd.f32 0.0, %v800
        %v802 = vpop.f32.mrf.mxu0
        %803 = vmatprep.mubr.bf16.mxu0 0
        %804 = vmatmul.mubr.bf16.gmra.mxu0 %v760
        %v805 = vpop.f32.mrf.mxu0
        %v806 = vadd.f32 0.0, %v805
        %v807 = vpop.f32.mrf.mxu0
        %v808 = vpop.f32.mrf.mxu0
        %v809 = vadd.f32 0.0, %v808
        %v810 = vpop.f32.mrf.mxu0
        %811 = vdwg.mxu0
        %v816 = vunpack.c.l.b16 %v609
        %v817 = vunpack.c.l.b16 %v610
        %v818 = vunpack.c.l.b16 %v611
        %v819 = vunpack.c.l.b16 %v612
        %v820 = vpack.c.b16 %v817, %v816
        %v821 = vpack.c.b16 %v819, %v818
        %824 = vmatprep.subr.bf16.mxu0 0
        %825 = vmatpush1.bf16.xpose.msra.mxu0 0
        %826 = vmatprep.subr.bf16.mxu0 0
        %827 = vmatpush1.bf16.xpose.msra.mxu0 0
        %828 = vmatprep.subr.bf16.mxu0 0
        %829 = vmatpush1.bf16.xpose.msra.mxu0 0
        %830 = vmatprep.subr.bf16.mxu0 0
        %831 = vmatpush1.bf16.xpose.msra.mxu0 0
        %832 = vmatprep.subr.bf16.mxu0 0
        %833 = vmatpush1.bf16.xpose.msra.mxu0 0
        %834 = vmatprep.subr.bf16.mxu0 0
        %835 = vmatpush1.bf16.xpose.msra.mxu0 0
        %836 = vmatprep.subr.bf16.mxu0 0
        %837 = vmatpush1.bf16.xpose.msra.mxu0 0
        %838 = vmatprep.subr.bf16.mxu0 0
        %839 = vmatpush1.bf16.xpose.msra.mxu0 %v431
        %840 = vmatprep.subr.bf16.mxu0 0
        %841 = vmatpush2.bf16.xpose.msra.mxu0 0
        %842 = vmatprep.subr.bf16.mxu0 0
        %843 = vmatpush2.bf16.xpose.msra.mxu0 0
        %844 = vmatprep.subr.bf16.mxu0 0
        %845 = vmatpush2.bf16.xpose.msra.mxu0 0
        %846 = vmatprep.subr.bf16.mxu0 0
        %847 = vmatpush2.bf16.xpose.msra.mxu0 0
        %848 = vmatprep.subr.bf16.mxu0 0
        %849 = vmatpush2.bf16.xpose.msra.mxu0 0
        %850 = vmatprep.subr.bf16.mxu0 0
        %851 = vmatpush2.bf16.xpose.msra.mxu0 0
        %852 = vmatprep.subr.bf16.mxu0 0
        %853 = vmatpush2.bf16.xpose.msra.mxu0 0
        %854 = vmatprep.subr.bf16.mxu0 0
        %855 = vmatpush2.bf16.xpose.msra.mxu0 0
        %856 = vmatprep.mubr.bf16.mxu0 0
        %857 = vmatmul.mubr.bf16.gmra.mxu0 %v820
        %v858 = vpop.f32.mrf.mxu0
        %v859 = vadd.f32 0.0, %v858
        %v860 = vpop.f32.mrf.mxu0
        %v861 = vpop.f32.mrf.mxu0
        %v862 = vadd.f32 0.0, %v861
        %v863 = vpop.f32.mrf.mxu0
        %864 = vmatprep.mubr.bf16.mxu0 0
        %865 = vmatmul.mubr.bf16.gmra.mxu0 %v821
        %v866 = vpop.f32.mrf.mxu0
        %v867 = vadd.f32 0.0, %v866
        %v868 = vpop.f32.mrf.mxu0
        %v869 = vpop.f32.mrf.mxu0
        %v870 = vadd.f32 0.0, %v869
        %v871 = vpop.f32.mrf.mxu0
        %872 = vdwg.mxu0
        %v877 = vunpack.c.l.b16 %v613
        %v878 = vunpack.c.l.b16 %v614
        %v879 = vunpack.c.l.b16 %v615
        %v880 = vunpack.c.l.b16 %v616
        %v881 = vpack.c.b16 %v878, %v877
        %v882 = vpack.c.b16 %v880, %v879
        %885 = vmatprep.subr.bf16.mxu0 0
        %886 = vmatpush1.bf16.xpose.msra.mxu0 0
        %887 = vmatprep.subr.bf16.mxu0 0
        %888 = vmatpush1.bf16.xpose.msra.mxu0 0
        %889 = vmatprep.subr.bf16.mxu0 0
        %890 = vmatpush1.bf16.xpose.msra.mxu0 0
        %891 = vmatprep.subr.bf16.mxu0 0
        %892 = vmatpush1.bf16.xpose.msra.mxu0 0
        %893 = vmatprep.subr.bf16.mxu0 0
        %894 = vmatpush1.bf16.xpose.msra.mxu0 0
        %895 = vmatprep.subr.bf16.mxu0 0
        %896 = vmatpush1.bf16.xpose.msra.mxu0 0
        %897 = vmatprep.subr.bf16.mxu0 0
        %898 = vmatpush1.bf16.xpose.msra.mxu0 0
        %899 = vmatprep.subr.bf16.mxu0 0
        %900 = vmatpush1.bf16.xpose.msra.mxu0 %v432
        %901 = vmatprep.subr.bf16.mxu0 0
        %902 = vmatpush2.bf16.xpose.msra.mxu0 0
        %903 = vmatprep.subr.bf16.mxu0 0
        %904 = vmatpush2.bf16.xpose.msra.mxu0 0
        %905 = vmatprep.subr.bf16.mxu0 0
        %906 = vmatpush2.bf16.xpose.msra.mxu0 0
        %907 = vmatprep.subr.bf16.mxu0 0
        %908 = vmatpush2.bf16.xpose.msra.mxu0 0
        %909 = vmatprep.subr.bf16.mxu0 0
        %910 = vmatpush2.bf16.xpose.msra.mxu0 0
        %911 = vmatprep.subr.bf16.mxu0 0
        %912 = vmatpush2.bf16.xpose.msra.mxu0 0
        %913 = vmatprep.subr.bf16.mxu0 0
        %914 = vmatpush2.bf16.xpose.msra.mxu0 0
        %915 = vmatprep.subr.bf16.mxu0 0
        %916 = vmatpush2.bf16.xpose.msra.mxu0 0
        %917 = vmatprep.mubr.bf16.mxu0 0
        %918 = vmatmul.mubr.bf16.gmra.mxu0 %v881
        %v919 = vpop.f32.mrf.mxu0
        %v920 = vadd.f32 0.0, %v919
        %v921 = vpop.f32.mrf.mxu0
        %v922 = vpop.f32.mrf.mxu0
        %v923 = vadd.f32 0.0, %v922
        %v924 = vpop.f32.mrf.mxu0
        %925 = vmatprep.mubr.bf16.mxu0 0
        %926 = vmatmul.mubr.bf16.gmra.mxu0 %v882
        %v927 = vpop.f32.mrf.mxu0
        %v928 = vadd.f32 0.0, %v927
        %v929 = vpop.f32.mrf.mxu0
        %v930 = vpop.f32.mrf.mxu0
        %v931 = vadd.f32 0.0, %v930
        %v932 = vpop.f32.mrf.mxu0
        %933 = vdwg.mxu0
        %v938 = vunpack.c.l.b16 %v617
        %v939 = vunpack.c.l.b16 %v618
        %v940 = vunpack.c.l.b16 %v619
        %v941 = vunpack.c.l.b16 %v620
        %v942 = vpack.c.b16 %v939, %v938
        %v943 = vpack.c.b16 %v941, %v940
        %946 = vmatprep.subr.bf16.mxu0 0
        %947 = vmatpush1.bf16.xpose.msra.mxu0 0
        %948 = vmatprep.subr.bf16.mxu0 0
        %949 = vmatpush1.bf16.xpose.msra.mxu0 0
        %950 = vmatprep.subr.bf16.mxu0 0
        %951 = vmatpush1.bf16.xpose.msra.mxu0 0
        %952 = vmatprep.subr.bf16.mxu0 0
        %953 = vmatpush1.bf16.xpose.msra.mxu0 0
        %954 = vmatprep.subr.bf16.mxu0 0
        %955 = vmatpush1.bf16.xpose.msra.mxu0 0
        %956 = vmatprep.subr.bf16.mxu0 0
        %957 = vmatpush1.bf16.xpose.msra.mxu0 0
        %958 = vmatprep.subr.bf16.mxu0 0
        %959 = vmatpush1.bf16.xpose.msra.mxu0 0
        %960 = vmatprep.subr.bf16.mxu0 0
        %961 = vmatpush1.bf16.xpose.msra.mxu0 %v433
        %962 = vmatprep.subr.bf16.mxu0 0
        %963 = vmatpush2.bf16.xpose.msra.mxu0 0
        %964 = vmatprep.subr.bf16.mxu0 0
        %965 = vmatpush2.bf16.xpose.msra.mxu0 0
        %966 = vmatprep.subr.bf16.mxu0 0
        %967 = vmatpush2.bf16.xpose.msra.mxu0 0
        %968 = vmatprep.subr.bf16.mxu0 0
        %969 = vmatpush2.bf16.xpose.msra.mxu0 0
        %970 = vmatprep.subr.bf16.mxu0 0
        %971 = vmatpush2.bf16.xpose.msra.mxu0 0
        %972 = vmatprep.subr.bf16.mxu0 0
        %973 = vmatpush2.bf16.xpose.msra.mxu0 0
        %974 = vmatprep.subr.bf16.mxu0 0
        %975 = vmatpush2.bf16.xpose.msra.mxu0 0
        %976 = vmatprep.subr.bf16.mxu0 0
        %977 = vmatpush2.bf16.xpose.msra.mxu0 0
        %978 = vmatprep.mubr.bf16.mxu0 0
        %979 = vmatmul.mubr.bf16.gmra.mxu0 %v942
        %v980 = vpop.f32.mrf.mxu0
        %v981 = vadd.f32 0.0, %v980
        %v982 = vpop.f32.mrf.mxu0
        %v983 = vpop.f32.mrf.mxu0
        %v984 = vadd.f32 0.0, %v983
        %v985 = vpop.f32.mrf.mxu0
        %986 = vmatprep.mubr.bf16.mxu0 0
        %987 = vmatmul.mubr.bf16.gmra.mxu0 %v943
        %v988 = vpop.f32.mrf.mxu0
        %v989 = vadd.f32 0.0, %v988
        %v990 = vpop.f32.mrf.mxu0
        %v991 = vpop.f32.mrf.mxu0
        %v992 = vadd.f32 0.0, %v991
        %v993 = vpop.f32.mrf.mxu0
        %994 = vdwg.mxu0
        %v999 = vunpack.c.l.b16 %v621
        %v1000 = vunpack.c.l.b16 %v622
        %v1001 = vunpack.c.l.b16 %v623
        %v1002 = vunpack.c.l.b16 %v624
        %v1003 = vpack.c.b16 %v1000, %v999
        %v1004 = vpack.c.b16 %v1002, %v1001
        %1007 = vmatprep.subr.bf16.mxu0 0
        %1008 = vmatpush1.bf16.xpose.msra.mxu0 0
        %1009 = vmatprep.subr.bf16.mxu0 0
        %1010 = vmatpush1.bf16.xpose.msra.mxu0 0
        %1011 = vmatprep.subr.bf16.mxu0 0
        %1012 = vmatpush1.bf16.xpose.msra.mxu0 0
        %1013 = vmatprep.subr.bf16.mxu0 0
        %1014 = vmatpush1.bf16.xpose.msra.mxu0 0
        %1015 = vmatprep.subr.bf16.mxu0 0
        %1016 = vmatpush1.bf16.xpose.msra.mxu0 0
        %1017 = vmatprep.subr.bf16.mxu0 0
        %1018 = vmatpush1.bf16.xpose.msra.mxu0 0
        %1019 = vmatprep.subr.bf16.mxu0 0
        %1020 = vmatpush1.bf16.xpose.msra.mxu0 0
        %1021 = vmatprep.subr.bf16.mxu0 0
        %1022 = vmatpush1.bf16.xpose.msra.mxu0 %v434
        %1023 = vmatprep.subr.bf16.mxu0 0
        %1024 = vmatpush2.bf16.xpose.msra.mxu0 0
        %1025 = vmatprep.subr.bf16.mxu0 0
        %1026 = vmatpush2.bf16.xpose.msra.mxu0 0
        %1027 = vmatprep.subr.bf16.mxu0 0
        %1028 = vmatpush2.bf16.xpose.msra.mxu0 0
        %1029 = vmatprep.subr.bf16.mxu0 0
        %1030 = vmatpush2.bf16.xpose.msra.mxu0 0
        %1031 = vmatprep.subr.bf16.mxu0 0
        %1032 = vmatpush2.bf16.xpose.msra.mxu0 0
        %1033 = vmatprep.subr.bf16.mxu0 0
        %1034 = vmatpush2.bf16.xpose.msra.mxu0 0
        %1035 = vmatprep.subr.bf16.mxu0 0
        %1036 = vmatpush2.bf16.xpose.msra.mxu0 0
        %1037 = vmatprep.subr.bf16.mxu0 0
        %1038 = vmatpush2.bf16.xpose.msra.mxu0 0
        %1039 = vmatprep.mubr.bf16.mxu0 0
        %1040 = vmatmul.mubr.bf16.gmra.mxu0 %v1003
        %v1041 = vpop.f32.mrf.mxu0
        %v1042 = vadd.f32 0.0, %v1041
        %v1043 = vpop.f32.mrf.mxu0
        %v1044 = vpop.f32.mrf.mxu0
        %v1045 = vadd.f32 0.0, %v1044
        %v1046 = vpop.f32.mrf.mxu0
        %1047 = vmatprep.mubr.bf16.mxu0 0
        %1048 = vmatmul.mubr.bf16.gmra.mxu0 %v1004
        %v1049 = vpop.f32.mrf.mxu0
        %v1050 = vadd.f32 0.0, %v1049
        %v1051 = vpop.f32.mrf.mxu0
        %v1052 = vpop.f32.mrf.mxu0
        %v1053 = vadd.f32 0.0, %v1052
        %v1054 = vpop.f32.mrf.mxu0
        %1055 = vdwg.mxu0
        %v1060 = vunpack.c.l.b16 %v625
        %v1061 = vunpack.c.l.b16 %v626
        %v1062 = vunpack.c.l.b16 %v627
        %v1063 = vunpack.c.l.b16 %v628
        %v1064 = vpack.c.b16 %v1061, %v1060
        %v1065 = vpack.c.b16 %v1063, %v1062
        %1068 = vmatprep.subr.bf16.mxu0 0
        %1069 = vmatpush1.bf16.xpose.msra.mxu0 0
        %1070 = vmatprep.subr.bf16.mxu0 0
        %1071 = vmatpush1.bf16.xpose.msra.mxu0 0
        %1072 = vmatprep.subr.bf16.mxu0 0
        %1073 = vmatpush1.bf16.xpose.msra.mxu0 0
        %1074 = vmatprep.subr.bf16.mxu0 0
        %1075 = vmatpush1.bf16.xpose.msra.mxu0 0
        %1076 = vmatprep.subr.bf16.mxu0 0
        %1077 = vmatpush1.bf16.xpose.msra.mxu0 0
        %1078 = vmatprep.subr.bf16.mxu0 0
        %1079 = vmatpush1.bf16.xpose.msra.mxu0 0
        %1080 = vmatprep.subr.bf16.mxu0 0
        %1081 = vmatpush1.bf16.xpose.msra.mxu0 0
        %1082 = vmatprep.subr.bf16.mxu0 0
        %1083 = vmatpush1.bf16.xpose.msra.mxu0 %v435
        %1084 = vmatprep.subr.bf16.mxu0 0
        %1085 = vmatpush2.bf16.xpose.msra.mxu0 0
        %1086 = vmatprep.subr.bf16.mxu0 0
        %1087 = vmatpush2.bf16.xpose.msra.mxu0 0
        %1088 = vmatprep.subr.bf16.mxu0 0
        %1089 = vmatpush2.bf16.xpose.msra.mxu0 0
        %1090 = vmatprep.subr.bf16.mxu0 0
        %1091 = vmatpush2.bf16.xpose.msra.mxu0 0
        %1092 = vmatprep.subr.bf16.mxu0 0
        %1093 = vmatpush2.bf16.xpose.msra.mxu0 0
        %1094 = vmatprep.subr.bf16.mxu0 0
        %1095 = vmatpush2.bf16.xpose.msra.mxu0 0
        %1096 = vmatprep.subr.bf16.mxu0 0
        %1097 = vmatpush2.bf16.xpose.msra.mxu0 0
        %1098 = vmatprep.subr.bf16.mxu0 0
        %1099 = vmatpush2.bf16.xpose.msra.mxu0 0
        %1100 = vmatprep.mubr.bf16.mxu0 0
        %1101 = vmatmul.mubr.bf16.gmra.mxu0 %v1064
        %v1102 = vpop.f32.mrf.mxu0
        %v1103 = vadd.f32 0.0, %v1102
        %v1104 = vpop.f32.mrf.mxu0
        %v1105 = vpop.f32.mrf.mxu0
        %v1106 = vadd.f32 0.0, %v1105
        %v1107 = vpop.f32.mrf.mxu0
        %1108 = vmatprep.mubr.bf16.mxu0 0
        %1109 = vmatmul.mubr.bf16.gmra.mxu0 %v1065
        %v1110 = vpop.f32.mrf.mxu0
        %v1111 = vadd.f32 0.0, %v1110
        %v1112 = vpop.f32.mrf.mxu0
        %v1113 = vpop.f32.mrf.mxu0
        %v1114 = vadd.f32 0.0, %v1113
        %v1115 = vpop.f32.mrf.mxu0
        %1116 = vdwg.mxu0
        %vm1117 = vcmask 130048
        %v1118 = vsel %vm1117, %v676, -inf
        %1119 = vmax.xlane.f32.xlu0 %v1118
        %v1120 = vpop.xlane.xlu0 %1119
        %v1121 = vsel %vm1117, %v679, -inf
        %1122 = vmax.xlane.f32.xlu0 %v1121
        %v1123 = vpop.xlane.xlu0 %1122
        %v1124 = vsel %vm1117, %v684, -inf
        %1125 = vmax.xlane.f32.xlu0 %v1124
        %v1126 = vpop.xlane.xlu0 %1125
        %v1127 = vsel %vm1117, %v687, -inf
        %1128 = vmax.xlane.f32.xlu0 %v1127
        %v1129 = vpop.xlane.xlu0 %1128
        %v1130 = vsel %vm1117, %v737, -inf
        %1131 = vmax.xlane.f32.xlu0 %v1130
        %v1132 = vpop.xlane.xlu0 %1131
        %v1133 = vsel %vm1117, %v740, -inf
        %1134 = vmax.xlane.f32.xlu0 %v1133
        %v1135 = vpop.xlane.xlu0 %1134
        %v1136 = vsel %vm1117, %v745, -inf
        %1137 = vmax.xlane.f32.xlu0 %v1136
        %v1138 = vpop.xlane.xlu0 %1137
        %v1139 = vsel %vm1117, %v748, -inf
        %1140 = vmax.xlane.f32.xlu0 %v1139
        %v1141 = vpop.xlane.xlu0 %1140
        %v1142 = vsel %vm1117, %v798, -inf
        %1143 = vmax.xlane.f32.xlu0 %v1142
        %v1144 = vpop.xlane.xlu0 %1143
        %v1145 = vsel %vm1117, %v801, -inf
        %1146 = vmax.xlane.f32.xlu0 %v1145
        %v1147 = vpop.xlane.xlu0 %1146
        %v1148 = vsel %vm1117, %v806, -inf
        %1149 = vmax.xlane.f32.xlu0 %v1148
        %v1150 = vpop.xlane.xlu0 %1149
        %v1151 = vsel %vm1117, %v809, -inf
        %1152 = vmax.xlane.f32.xlu0 %v1151
        %v1153 = vpop.xlane.xlu0 %1152
        %v1154 = vsel %vm1117, %v859, -inf
        %1155 = vmax.xlane.f32.xlu0 %v1154
        %v1156 = vpop.xlane.xlu0 %1155
        %v1157 = vsel %vm1117, %v862, -inf
        %1158 = vmax.xlane.f32.xlu0 %v1157
        %v1159 = vpop.xlane.xlu0 %1158
        %v1160 = vsel %vm1117, %v867, -inf
        %1161 = vmax.xlane.f32.xlu0 %v1160
        %v1162 = vpop.xlane.xlu0 %1161
        %v1163 = vsel %vm1117, %v870, -inf
        %1164 = vmax.xlane.f32.xlu0 %v1163
        %v1165 = vpop.xlane.xlu0 %1164
        %v1166 = vsel %vm1117, %v920, -inf
        %1167 = vmax.xlane.f32.xlu0 %v1166
        %v1168 = vpop.xlane.xlu0 %1167
        %v1169 = vsel %vm1117, %v923, -inf
        %1170 = vmax.xlane.f32.xlu0 %v1169
        %v1171 = vpop.xlane.xlu0 %1170
        %v1172 = vsel %vm1117, %v928, -inf
        %1173 = vmax.xlane.f32.xlu0 %v1172
        %v1174 = vpop.xlane.xlu0 %1173
        %v1175 = vsel %vm1117, %v931, -inf
        %1176 = vmax.xlane.f32.xlu0 %v1175
        %v1177 = vpop.xlane.xlu0 %1176
        %v1178 = vsel %vm1117, %v981, -inf
        %1179 = vmax.xlane.f32.xlu0 %v1178
        %v1180 = vpop.xlane.xlu0 %1179
        %v1181 = vsel %vm1117, %v984, -inf
        %1182 = vmax.xlane.f32.xlu0 %v1181
        %v1183 = vpop.xlane.xlu0 %1182
        %v1184 = vsel %vm1117, %v989, -inf
        %1185 = vmax.xlane.f32.xlu0 %v1184
        %v1186 = vpop.xlane.xlu0 %1185
        %v1187 = vsel %vm1117, %v992, -inf
        %1188 = vmax.xlane.f32.xlu0 %v1187
        %v1189 = vpop.xlane.xlu0 %1188
        %v1190 = vsel %vm1117, %v1042, -inf
        %1191 = vmax.xlane.f32.xlu0 %v1190
        %v1192 = vpop.xlane.xlu0 %1191
        %v1193 = vsel %vm1117, %v1045, -inf
        %1194 = vmax.xlane.f32.xlu0 %v1193
        %v1195 = vpop.xlane.xlu0 %1194
        %v1196 = vsel %vm1117, %v1050, -inf
        %1197 = vmax.xlane.f32.xlu0 %v1196
        %v1198 = vpop.xlane.xlu0 %1197
        %v1199 = vsel %vm1117, %v1053, -inf
        %1200 = vmax.xlane.f32.xlu0 %v1199
        %v1201 = vpop.xlane.xlu0 %1200
        %v1202 = vsel %vm1117, %v1103, -inf
        %1203 = vmax.xlane.f32.xlu0 %v1202
        %v1204 = vpop.xlane.xlu0 %1203
        %v1205 = vsel %vm1117, %v1106, -inf
        %1206 = vmax.xlane.f32.xlu0 %v1205
        %v1207 = vpop.xlane.xlu0 %1206
        %v1208 = vsel %vm1117, %v1111, -inf
        %1209 = vmax.xlane.f32.xlu0 %v1208
        %v1210 = vpop.xlane.xlu0 %1209
        %v1211 = vsel %vm1117, %v1114, -inf
        %1212 = vmax.xlane.f32.xlu0 %v1211
        %v1213 = vpop.xlane.xlu0 %1212
        %v1214 = vsub.f32 %v676, %v1120
        %v1215 = vsub.f32 %v679, %v1123
        %v1216 = vsub.f32 %v684, %v1126
        %v1217 = vsub.f32 %v687, %v1129
        %v1218 = vsub.f32 %v737, %v1132
        %v1219 = vsub.f32 %v740, %v1135
        %v1220 = vsub.f32 %v745, %v1138
        %v1221 = vsub.f32 %v748, %v1141
        %v1222 = vsub.f32 %v798, %v1144
        %v1223 = vsub.f32 %v801, %v1147
        %v1224 = vsub.f32 %v806, %v1150
        %v1225 = vsub.f32 %v809, %v1153
        %v1226 = vsub.f32 %v859, %v1156
        %v1227 = vsub.f32 %v862, %v1159
        %v1228 = vsub.f32 %v867, %v1162
        %v1229 = vsub.f32 %v870, %v1165
        %v1230 = vsub.f32 %v920, %v1168
        %v1231 = vsub.f32 %v923, %v1171
        %v1232 = vsub.f32 %v928, %v1174
        %v1233 = vsub.f32 %v931, %v1177
        %v1234 = vsub.f32 %v981, %v1180
        %v1235 = vsub.f32 %v984, %v1183
        %v1236 = vsub.f32 %v989, %v1186
        %v1237 = vsub.f32 %v992, %v1189
        %v1238 = vsub.f32 %v1042, %v1192
        %v1239 = vsub.f32 %v1045, %v1195
        %v1240 = vsub.f32 %v1050, %v1198
        %v1241 = vsub.f32 %v1053, %v1201
        %v1242 = vsub.f32 %v1103, %v1204
        %v1243 = vsub.f32 %v1106, %v1207
        %v1244 = vsub.f32 %v1111, %v1210
        %v1245 = vsub.f32 %v1114, %v1213
        %v1246 = vmul.f32 %v1214, 1.442695
        %v1247 = vpow.pop %v1246
        %v1248 = vmul.f32 %v1215, 1.442695
        %v1249 = vpow.pop %v1248
        %v1250 = vmul.f32 %v1216, 1.442695
        %v1251 = vpow.pop %v1250
        %v1252 = vmul.f32 %v1217, 1.442695
        %v1253 = vpow.pop %v1252
        %v1254 = vmul.f32 %v1218, 1.442695
        %v1255 = vpow.pop %v1254
        %v1256 = vmul.f32 %v1219, 1.442695
        %v1257 = vpow.pop %v1256
        %v1258 = vmul.f32 %v1220, 1.442695
        %v1259 = vpow.pop %v1258
        %v1260 = vmul.f32 %v1221, 1.442695
        %v1261 = vpow.pop %v1260
        %v1262 = vmul.f32 %v1222, 1.442695
        %v1263 = vpow.pop %v1262
        %v1264 = vmul.f32 %v1223, 1.442695
        %v1265 = vpow.pop %v1264
        %v1266 = vmul.f32 %v1224, 1.442695
        %v1267 = vpow.pop %v1266
        %v1268 = vmul.f32 %v1225, 1.442695
        %v1269 = vpow.pop %v1268
        %v1270 = vmul.f32 %v1226, 1.442695
        %v1271 = vpow.pop %v1270
        %v1272 = vmul.f32 %v1227, 1.442695
        %v1273 = vpow.pop %v1272
        %v1274 = vmul.f32 %v1228, 1.442695
        %v1275 = vpow.pop %v1274
        %v1276 = vmul.f32 %v1229, 1.442695
        %v1277 = vpow.pop %v1276
        %v1278 = vmul.f32 %v1230, 1.442695
        %v1279 = vpow.pop %v1278
        %v1280 = vmul.f32 %v1231, 1.442695
        %v1281 = vpow.pop %v1280
        %v1282 = vmul.f32 %v1232, 1.442695
        %v1283 = vpow.pop %v1282
        %v1284 = vmul.f32 %v1233, 1.442695
        %v1285 = vpow.pop %v1284
        %v1286 = vmul.f32 %v1234, 1.442695
        %v1287 = vpow.pop %v1286
        %v1288 = vmul.f32 %v1235, 1.442695
        %v1289 = vpow.pop %v1288
        %v1290 = vmul.f32 %v1236, 1.442695
        %v1291 = vpow.pop %v1290
        %v1292 = vmul.f32 %v1237, 1.442695
        %v1293 = vpow.pop %v1292
        %v1294 = vmul.f32 %v1238, 1.442695
        %v1295 = vpow.pop %v1294
        %v1296 = vmul.f32 %v1239, 1.442695
        %v1297 = vpow.pop %v1296
        %v1298 = vmul.f32 %v1240, 1.442695
        %v1299 = vpow.pop %v1298
        %v1300 = vmul.f32 %v1241, 1.442695
        %v1301 = vpow.pop %v1300
        %v1302 = vmul.f32 %v1242, 1.442695
        %v1303 = vpow.pop %v1302
        %v1304 = vmul.f32 %v1243, 1.442695
        %v1305 = vpow.pop %v1304
        %v1306 = vmul.f32 %v1244, 1.442695
        %v1307 = vpow.pop %v1306
        %v1308 = vmul.f32 %v1245, 1.442695
        %v1309 = vpow.pop %v1308
        %v1310 = vsel %vm1117, %v1247, 0.0
        %1311 = vadd.xlane.f32.xlu0 %v1310
        %v1312 = vpop.xlane.xlu0 %1311
        %v1313 = vsel %vm1117, %v1249, 0.0
        %1314 = vadd.xlane.f32.xlu0 %v1313
        %v1315 = vpop.xlane.xlu0 %1314
        %v1316 = vsel %vm1117, %v1251, 0.0
        %1317 = vadd.xlane.f32.xlu0 %v1316
        %v1318 = vpop.xlane.xlu0 %1317
        %v1319 = vsel %vm1117, %v1253, 0.0
        %1320 = vadd.xlane.f32.xlu0 %v1319
        %v1321 = vpop.xlane.xlu0 %1320
        %v1322 = vsel %vm1117, %v1255, 0.0
        %1323 = vadd.xlane.f32.xlu0 %v1322
        %v1324 = vpop.xlane.xlu0 %1323
        %v1325 = vsel %vm1117, %v1257, 0.0
        %1326 = vadd.xlane.f32.xlu0 %v1325
        %v1327 = vpop.xlane.xlu0 %1326
        %v1328 = vsel %vm1117, %v1259, 0.0
        %1329 = vadd.xlane.f32.xlu0 %v1328
        %v1330 = vpop.xlane.xlu0 %1329
        %v1331 = vsel %vm1117, %v1261, 0.0
        %1332 = vadd.xlane.f32.xlu0 %v1331
        %v1333 = vpop.xlane.xlu0 %1332
        %v1334 = vsel %vm1117, %v1263, 0.0
        %1335 = vadd.xlane.f32.xlu0 %v1334
        %v1336 = vpop.xlane.xlu0 %1335
        %v1337 = vsel %vm1117, %v1265, 0.0
        %1338 = vadd.xlane.f32.xlu0 %v1337
        %v1339 = vpop.xlane.xlu0 %1338
        %v1340 = vsel %vm1117, %v1267, 0.0
        %1341 = vadd.xlane.f32.xlu0 %v1340
        %v1342 = vpop.xlane.xlu0 %1341
        %v1343 = vsel %vm1117, %v1269, 0.0
        %1344 = vadd.xlane.f32.xlu0 %v1343
        %v1345 = vpop.xlane.xlu0 %1344
        %v1346 = vsel %vm1117, %v1271, 0.0
        %1347 = vadd.xlane.f32.xlu0 %v1346
        %v1348 = vpop.xlane.xlu0 %1347
        %v1349 = vsel %vm1117, %v1273, 0.0
        %1350 = vadd.xlane.f32.xlu0 %v1349
        %v1351 = vpop.xlane.xlu0 %1350
        %v1352 = vsel %vm1117, %v1275, 0.0
        %1353 = vadd.xlane.f32.xlu0 %v1352
        %v1354 = vpop.xlane.xlu0 %1353
        %v1355 = vsel %vm1117, %v1277, 0.0
        %1356 = vadd.xlane.f32.xlu0 %v1355
        %v1357 = vpop.xlane.xlu0 %1356
        %v1358 = vsel %vm1117, %v1279, 0.0
        %1359 = vadd.xlane.f32.xlu0 %v1358
        %v1360 = vpop.xlane.xlu0 %1359
        %v1361 = vsel %vm1117, %v1281, 0.0
        %1362 = vadd.xlane.f32.xlu0 %v1361
        %v1363 = vpop.xlane.xlu0 %1362
        %v1364 = vsel %vm1117, %v1283, 0.0
        %1365 = vadd.xlane.f32.xlu0 %v1364
        %v1366 = vpop.xlane.xlu0 %1365
        %v1367 = vsel %vm1117, %v1285, 0.0
        %1368 = vadd.xlane.f32.xlu0 %v1367
        %v1369 = vpop.xlane.xlu0 %1368
        %v1370 = vsel %vm1117, %v1287, 0.0
        %1371 = vadd.xlane.f32.xlu0 %v1370
        %v1372 = vpop.xlane.xlu0 %1371
        %v1373 = vsel %vm1117, %v1289, 0.0
        %1374 = vadd.xlane.f32.xlu0 %v1373
        %v1375 = vpop.xlane.xlu0 %1374
        %v1376 = vsel %vm1117, %v1291, 0.0
        %1377 = vadd.xlane.f32.xlu0 %v1376
        %v1378 = vpop.xlane.xlu0 %1377
        %v1379 = vsel %vm1117, %v1293, 0.0
        %1380 = vadd.xlane.f32.xlu0 %v1379
        %v1381 = vpop.xlane.xlu0 %1380
        %v1382 = vsel %vm1117, %v1295, 0.0
        %1383 = vadd.xlane.f32.xlu0 %v1382
        %v1384 = vpop.xlane.xlu0 %1383
        %v1385 = vsel %vm1117, %v1297, 0.0
        %1386 = vadd.xlane.f32.xlu0 %v1385
        %v1387 = vpop.xlane.xlu0 %1386
        %v1388 = vsel %vm1117, %v1299, 0.0
        %1389 = vadd.xlane.f32.xlu0 %v1388
        %v1390 = vpop.xlane.xlu0 %1389
        %v1391 = vsel %vm1117, %v1301, 0.0
        %1392 = vadd.xlane.f32.xlu0 %v1391
        %v1393 = vpop.xlane.xlu0 %1392
        %v1394 = vsel %vm1117, %v1303, 0.0
        %1395 = vadd.xlane.f32.xlu0 %v1394
        %v1396 = vpop.xlane.xlu0 %1395
        %v1397 = vsel %vm1117, %v1305, 0.0
        %1398 = vadd.xlane.f32.xlu0 %v1397
        %v1399 = vpop.xlane.xlu0 %1398
        %v1400 = vsel %vm1117, %v1307, 0.0
        %1401 = vadd.xlane.f32.xlu0 %v1400
        %v1402 = vpop.xlane.xlu0 %1401
        %v1403 = vsel %vm1117, %v1309, 0.0
        %1404 = vadd.xlane.f32.xlu0 %v1403
        %v1405 = vpop.xlane.xlu0 %1404
        %v1406 = vrcp.pop %v1312
        %v1407 = vrcp.pop %v1315
        %v1408 = vrcp.pop %v1318
        %v1409 = vrcp.pop %v1321
        %v1410 = vrcp.pop %v1324
        %v1411 = vrcp.pop %v1327
        %v1412 = vrcp.pop %v1330
        %v1413 = vrcp.pop %v1333
        %v1414 = vrcp.pop %v1336
        %v1415 = vrcp.pop %v1339
        %v1416 = vrcp.pop %v1342
        %v1417 = vrcp.pop %v1345
        %v1418 = vrcp.pop %v1348
        %v1419 = vrcp.pop %v1351
        %v1420 = vrcp.pop %v1354
        %v1421 = vrcp.pop %v1357
        %v1422 = vrcp.pop %v1360
        %v1423 = vrcp.pop %v1363
        %v1424 = vrcp.pop %v1366
        %v1425 = vrcp.pop %v1369
        %v1426 = vrcp.pop %v1372
        %v1427 = vrcp.pop %v1375
        %v1428 = vrcp.pop %v1378
        %v1429 = vrcp.pop %v1381
        %v1430 = vrcp.pop %v1384
        %v1431 = vrcp.pop %v1387
        %v1432 = vrcp.pop %v1390
        %v1433 = vrcp.pop %v1393
        %v1434 = vrcp.pop %v1396
        %v1435 = vrcp.pop %v1399
        %v1436 = vrcp.pop %v1402
        %v1437 = vrcp.pop %v1405
        %v1438 = vpack.c.bf16 %v1249, %v1247
        %v1439 = vpack.c.bf16 %v1253, %v1251
        %v1440 = vpack.c.bf16 %v1257, %v1255
        %v1441 = vpack.c.bf16 %v1261, %v1259
        %v1442 = vpack.c.bf16 %v1265, %v1263
        %v1443 = vpack.c.bf16 %v1269, %v1267
        %v1444 = vpack.c.bf16 %v1273, %v1271
        %v1445 = vpack.c.bf16 %v1277, %v1275
        %v1446 = vpack.c.bf16 %v1281, %v1279
        %v1447 = vpack.c.bf16 %v1285, %v1283
        %v1448 = vpack.c.bf16 %v1289, %v1287
        %v1449 = vpack.c.bf16 %v1293, %v1291
        %v1450 = vpack.c.bf16 %v1297, %v1295
        %v1451 = vpack.c.bf16 %v1301, %v1299
        %v1452 = vpack.c.bf16 %v1305, %v1303
        %v1453 = vpack.c.bf16 %v1309, %v1307
        %v1455 = vsel %vm1117, %v1438, 0
        %1457 = vmatprep.subr.bf16.mxu0 0
        %1458 = vmatpush1.bf16.msra.mxu0 0
        %1459 = vmatprep.subr.bf16.mxu0 0
        %1460 = vmatpush1.bf16.msra.mxu0 0
        %1461 = vmatprep.subr.bf16.mxu0 0
        %1462 = vmatpush1.bf16.msra.mxu0 0
        %1463 = vmatprep.subr.bf16.mxu0 0
        %1464 = vmatpush1.bf16.msra.mxu0 0
        %1465 = vmatprep.subr.bf16.mxu0 0
        %1466 = vmatpush1.bf16.msra.mxu0 0
        %1467 = vmatprep.subr.bf16.mxu0 0
        %1468 = vmatpush1.bf16.msra.mxu0 0
        %1469 = vmatprep.subr.bf16.mxu0 0
        %1470 = vmatpush1.bf16.msra.mxu0 0
        %1471 = vmatprep.subr.bf16.mxu0 0
        %1472 = vmatpush1.bf16.msra.mxu0 %v589
        %1473 = vmatprep.subr.bf16.mxu0 0
        %1474 = vmatpush2.bf16.msra.mxu0 0
        %1475 = vmatprep.subr.bf16.mxu0 0
        %1476 = vmatpush2.bf16.msra.mxu0 0
        %1477 = vmatprep.subr.bf16.mxu0 0
        %1478 = vmatpush2.bf16.msra.mxu0 0
        %1479 = vmatprep.subr.bf16.mxu0 0
        %1480 = vmatpush2.bf16.msra.mxu0 0
        %1481 = vmatprep.subr.bf16.mxu0 0
        %1482 = vmatpush2.bf16.msra.mxu0 0
        %1483 = vmatprep.subr.bf16.mxu0 0
        %1484 = vmatpush2.bf16.msra.mxu0 0
        %1485 = vmatprep.subr.bf16.mxu0 0
        %1486 = vmatpush2.bf16.msra.mxu0 0
        %1487 = vmatprep.subr.bf16.mxu0 0
        %1488 = vmatpush2.bf16.msra.mxu0 0
        %1489 = vmatprep.mubr.bf16.mxu0 0
        %1490 = vmatmul.mubr.bf16.gmra.mxu0 %v1455
        %v1491 = vpop.f32.mrf.mxu0
        %v1492 = vadd.f32 0.0, %v1491
        %v1493 = vpop.f32.mrf.mxu0
        %v1494 = vpop.f32.mrf.mxu0
        %v1495 = vpop.f32.mrf.mxu0
        %1496 = vdwg.mxu0
        %v1498 = vsel %vm1117, %v1440, 0
        %1500 = vmatprep.subr.bf16.mxu0 0
        %1501 = vmatpush1.bf16.msra.mxu0 0
        %1502 = vmatprep.subr.bf16.mxu0 0
        %1503 = vmatpush1.bf16.msra.mxu0 0
        %1504 = vmatprep.subr.bf16.mxu0 0
        %1505 = vmatpush1.bf16.msra.mxu0 0
        %1506 = vmatprep.subr.bf16.mxu0 0
        %1507 = vmatpush1.bf16.msra.mxu0 0
        %1508 = vmatprep.subr.bf16.mxu0 0
        %1509 = vmatpush1.bf16.msra.mxu0 0
        %1510 = vmatprep.subr.bf16.mxu0 0
        %1511 = vmatpush1.bf16.msra.mxu0 0
        %1512 = vmatprep.subr.bf16.mxu0 0
        %1513 = vmatpush1.bf16.msra.mxu0 0
        %1514 = vmatprep.subr.bf16.mxu0 0
        %1515 = vmatpush1.bf16.msra.mxu0 %v590
        %1516 = vmatprep.subr.bf16.mxu0 0
        %1517 = vmatpush2.bf16.msra.mxu0 0
        %1518 = vmatprep.subr.bf16.mxu0 0
        %1519 = vmatpush2.bf16.msra.mxu0 0
        %1520 = vmatprep.subr.bf16.mxu0 0
        %1521 = vmatpush2.bf16.msra.mxu0 0
        %1522 = vmatprep.subr.bf16.mxu0 0
        %1523 = vmatpush2.bf16.msra.mxu0 0
        %1524 = vmatprep.subr.bf16.mxu0 0
        %1525 = vmatpush2.bf16.msra.mxu0 0
        %1526 = vmatprep.subr.bf16.mxu0 0
        %1527 = vmatpush2.bf16.msra.mxu0 0
        %1528 = vmatprep.subr.bf16.mxu0 0
        %1529 = vmatpush2.bf16.msra.mxu0 0
        %1530 = vmatprep.subr.bf16.mxu0 0
        %1531 = vmatpush2.bf16.msra.mxu0 0
        %1532 = vmatprep.mubr.bf16.mxu0 0
        %1533 = vmatmul.mubr.bf16.gmra.mxu0 %v1498
        %v1534 = vpop.f32.mrf.mxu0
        %v1535 = vadd.f32 0.0, %v1534
        %v1536 = vpop.f32.mrf.mxu0
        %v1537 = vpop.f32.mrf.mxu0
        %v1538 = vpop.f32.mrf.mxu0
        %1539 = vdwg.mxu0
        %v1541 = vsel %vm1117, %v1442, 0
        %1543 = vmatprep.subr.bf16.mxu0 0
        %1544 = vmatpush1.bf16.msra.mxu0 0
        %1545 = vmatprep.subr.bf16.mxu0 0
        %1546 = vmatpush1.bf16.msra.mxu0 0
        %1547 = vmatprep.subr.bf16.mxu0 0
        %1548 = vmatpush1.bf16.msra.mxu0 0
        %1549 = vmatprep.subr.bf16.mxu0 0
        %1550 = vmatpush1.bf16.msra.mxu0 0
        %1551 = vmatprep.subr.bf16.mxu0 0
        %1552 = vmatpush1.bf16.msra.mxu0 0
        %1553 = vmatprep.subr.bf16.mxu0 0
        %1554 = vmatpush1.bf16.msra.mxu0 0
        %1555 = vmatprep.subr.bf16.mxu0 0
        %1556 = vmatpush1.bf16.msra.mxu0 0
        %1557 = vmatprep.subr.bf16.mxu0 0
        %1558 = vmatpush1.bf16.msra.mxu0 %v591
        %1559 = vmatprep.subr.bf16.mxu0 0
        %1560 = vmatpush2.bf16.msra.mxu0 0
        %1561 = vmatprep.subr.bf16.mxu0 0
        %1562 = vmatpush2.bf16.msra.mxu0 0
        %1563 = vmatprep.subr.bf16.mxu0 0
        %1564 = vmatpush2.bf16.msra.mxu0 0
        %1565 = vmatprep.subr.bf16.mxu0 0
        %1566 = vmatpush2.bf16.msra.mxu0 0
        %1567 = vmatprep.subr.bf16.mxu0 0
        %1568 = vmatpush2.bf16.msra.mxu0 0
        %1569 = vmatprep.subr.bf16.mxu0 0
        %1570 = vmatpush2.bf16.msra.mxu0 0
        %1571 = vmatprep.subr.bf16.mxu0 0
        %1572 = vmatpush2.bf16.msra.mxu0 0
        %1573 = vmatprep.subr.bf16.mxu0 0
        %1574 = vmatpush2.bf16.msra.mxu0 0
        %1575 = vmatprep.mubr.bf16.mxu0 0
        %1576 = vmatmul.mubr.bf16.gmra.mxu0 %v1541
        %v1577 = vpop.f32.mrf.mxu0
        %v1578 = vadd.f32 0.0, %v1577
        %v1579 = vpop.f32.mrf.mxu0
        %v1580 = vpop.f32.mrf.mxu0
        %v1581 = vpop.f32.mrf.mxu0
        %1582 = vdwg.mxu0
        %v1584 = vsel %vm1117, %v1444, 0
        %1586 = vmatprep.subr.bf16.mxu0 0
        %1587 = vmatpush1.bf16.msra.mxu0 0
        %1588 = vmatprep.subr.bf16.mxu0 0
        %1589 = vmatpush1.bf16.msra.mxu0 0
        %1590 = vmatprep.subr.bf16.mxu0 0
        %1591 = vmatpush1.bf16.msra.mxu0 0
        %1592 = vmatprep.subr.bf16.mxu0 0
        %1593 = vmatpush1.bf16.msra.mxu0 0
        %1594 = vmatprep.subr.bf16.mxu0 0
        %1595 = vmatpush1.bf16.msra.mxu0 0
        %1596 = vmatprep.subr.bf16.mxu0 0
        %1597 = vmatpush1.bf16.msra.mxu0 0
        %1598 = vmatprep.subr.bf16.mxu0 0
        %1599 = vmatpush1.bf16.msra.mxu0 0
        %1600 = vmatprep.subr.bf16.mxu0 0
        %1601 = vmatpush1.bf16.msra.mxu0 %v592
        %1602 = vmatprep.subr.bf16.mxu0 0
        %1603 = vmatpush2.bf16.msra.mxu0 0
        %1604 = vmatprep.subr.bf16.mxu0 0
        %1605 = vmatpush2.bf16.msra.mxu0 0
        %1606 = vmatprep.subr.bf16.mxu0 0
        %1607 = vmatpush2.bf16.msra.mxu0 0
        %1608 = vmatprep.subr.bf16.mxu0 0
        %1609 = vmatpush2.bf16.msra.mxu0 0
        %1610 = vmatprep.subr.bf16.mxu0 0
        %1611 = vmatpush2.bf16.msra.mxu0 0
        %1612 = vmatprep.subr.bf16.mxu0 0
        %1613 = vmatpush2.bf16.msra.mxu0 0
        %1614 = vmatprep.subr.bf16.mxu0 0
        %1615 = vmatpush2.bf16.msra.mxu0 0
        %1616 = vmatprep.subr.bf16.mxu0 0
        %1617 = vmatpush2.bf16.msra.mxu0 0
        %1618 = vmatprep.mubr.bf16.mxu0 0
        %1619 = vmatmul.mubr.bf16.gmra.mxu0 %v1584
        %v1620 = vpop.f32.mrf.mxu0
        %v1621 = vadd.f32 0.0, %v1620
        %v1622 = vpop.f32.mrf.mxu0
        %v1623 = vpop.f32.mrf.mxu0
        %v1624 = vpop.f32.mrf.mxu0
        %1625 = vdwg.mxu0
        %v1627 = vsel %vm1117, %v1446, 0
        %1629 = vmatprep.subr.bf16.mxu0 0
        %1630 = vmatpush1.bf16.msra.mxu0 0
        %1631 = vmatprep.subr.bf16.mxu0 0
        %1632 = vmatpush1.bf16.msra.mxu0 0
        %1633 = vmatprep.subr.bf16.mxu0 0
        %1634 = vmatpush1.bf16.msra.mxu0 0
        %1635 = vmatprep.subr.bf16.mxu0 0
        %1636 = vmatpush1.bf16.msra.mxu0 0
        %1637 = vmatprep.subr.bf16.mxu0 0
        %1638 = vmatpush1.bf16.msra.mxu0 0
        %1639 = vmatprep.subr.bf16.mxu0 0
        %1640 = vmatpush1.bf16.msra.mxu0 0
        %1641 = vmatprep.subr.bf16.mxu0 0
        %1642 = vmatpush1.bf16.msra.mxu0 0
        %1643 = vmatprep.subr.bf16.mxu0 0
        %1644 = vmatpush1.bf16.msra.mxu0 %v593
        %1645 = vmatprep.subr.bf16.mxu0 0
        %1646 = vmatpush2.bf16.msra.mxu0 0
        %1647 = vmatprep.subr.bf16.mxu0 0
        %1648 = vmatpush2.bf16.msra.mxu0 0
        %1649 = vmatprep.subr.bf16.mxu0 0
        %1650 = vmatpush2.bf16.msra.mxu0 0
        %1651 = vmatprep.subr.bf16.mxu0 0
        %1652 = vmatpush2.bf16.msra.mxu0 0
        %1653 = vmatprep.subr.bf16.mxu0 0
        %1654 = vmatpush2.bf16.msra.mxu0 0
        %1655 = vmatprep.subr.bf16.mxu0 0
        %1656 = vmatpush2.bf16.msra.mxu0 0
        %1657 = vmatprep.subr.bf16.mxu0 0
        %1658 = vmatpush2.bf16.msra.mxu0 0
        %1659 = vmatprep.subr.bf16.mxu0 0
        %1660 = vmatpush2.bf16.msra.mxu0 0
        %1661 = vmatprep.mubr.bf16.mxu0 0
        %1662 = vmatmul.mubr.bf16.gmra.mxu0 %v1627
        %v1663 = vpop.f32.mrf.mxu0
        %v1664 = vadd.f32 0.0, %v1663
        %v1665 = vpop.f32.mrf.mxu0
        %v1666 = vpop.f32.mrf.mxu0
        %v1667 = vpop.f32.mrf.mxu0
        %1668 = vdwg.mxu0
        %v1670 = vsel %vm1117, %v1448, 0
        %1672 = vmatprep.subr.bf16.mxu0 0
        %1673 = vmatpush1.bf16.msra.mxu0 0
        %1674 = vmatprep.subr.bf16.mxu0 0
        %1675 = vmatpush1.bf16.msra.mxu0 0
        %1676 = vmatprep.subr.bf16.mxu0 0
        %1677 = vmatpush1.bf16.msra.mxu0 0
        %1678 = vmatprep.subr.bf16.mxu0 0
        %1679 = vmatpush1.bf16.msra.mxu0 0
        %1680 = vmatprep.subr.bf16.mxu0 0
        %1681 = vmatpush1.bf16.msra.mxu0 0
        %1682 = vmatprep.subr.bf16.mxu0 0
        %1683 = vmatpush1.bf16.msra.mxu0 0
        %1684 = vmatprep.subr.bf16.mxu0 0
        %1685 = vmatpush1.bf16.msra.mxu0 0
        %1686 = vmatprep.subr.bf16.mxu0 0
        %1687 = vmatpush1.bf16.msra.mxu0 %v594
        %1688 = vmatprep.subr.bf16.mxu0 0
        %1689 = vmatpush2.bf16.msra.mxu0 0
        %1690 = vmatprep.subr.bf16.mxu0 0
        %1691 = vmatpush2.bf16.msra.mxu0 0
        %1692 = vmatprep.subr.bf16.mxu0 0
        %1693 = vmatpush2.bf16.msra.mxu0 0
        %1694 = vmatprep.subr.bf16.mxu0 0
        %1695 = vmatpush2.bf16.msra.mxu0 0
        %1696 = vmatprep.subr.bf16.mxu0 0
        %1697 = vmatpush2.bf16.msra.mxu0 0
        %1698 = vmatprep.subr.bf16.mxu0 0
        %1699 = vmatpush2.bf16.msra.mxu0 0
        %1700 = vmatprep.subr.bf16.mxu0 0
        %1701 = vmatpush2.bf16.msra.mxu0 0
        %1702 = vmatprep.subr.bf16.mxu0 0
        %1703 = vmatpush2.bf16.msra.mxu0 0
        %1704 = vmatprep.mubr.bf16.mxu0 0
        %1705 = vmatmul.mubr.bf16.gmra.mxu0 %v1670
        %v1706 = vpop.f32.mrf.mxu0
        %v1707 = vadd.f32 0.0, %v1706
        %v1708 = vpop.f32.mrf.mxu0
        %v1709 = vpop.f32.mrf.mxu0
        %v1710 = vpop.f32.mrf.mxu0
        %1711 = vdwg.mxu0
        %v1713 = vsel %vm1117, %v1450, 0
        %1715 = vmatprep.subr.bf16.mxu0 0
        %1716 = vmatpush1.bf16.msra.mxu0 0
        %1717 = vmatprep.subr.bf16.mxu0 0
        %1718 = vmatpush1.bf16.msra.mxu0 0
        %1719 = vmatprep.subr.bf16.mxu0 0
        %1720 = vmatpush1.bf16.msra.mxu0 0
        %1721 = vmatprep.subr.bf16.mxu0 0
        %1722 = vmatpush1.bf16.msra.mxu0 0
        %1723 = vmatprep.subr.bf16.mxu0 0
        %1724 = vmatpush1.bf16.msra.mxu0 0
        %1725 = vmatprep.subr.bf16.mxu0 0
        %1726 = vmatpush1.bf16.msra.mxu0 0
        %1727 = vmatprep.subr.bf16.mxu0 0
        %1728 = vmatpush1.bf16.msra.mxu0 0
        %1729 = vmatprep.subr.bf16.mxu0 0
        %1730 = vmatpush1.bf16.msra.mxu0 %v595
        %1731 = vmatprep.subr.bf16.mxu0 0
        %1732 = vmatpush2.bf16.msra.mxu0 0
        %1733 = vmatprep.subr.bf16.mxu0 0
        %1734 = vmatpush2.bf16.msra.mxu0 0
        %1735 = vmatprep.subr.bf16.mxu0 0
        %1736 = vmatpush2.bf16.msra.mxu0 0
        %1737 = vmatprep.subr.bf16.mxu0 0
        %1738 = vmatpush2.bf16.msra.mxu0 0
        %1739 = vmatprep.subr.bf16.mxu0 0
        %1740 = vmatpush2.bf16.msra.mxu0 0
        %1741 = vmatprep.subr.bf16.mxu0 0
        %1742 = vmatpush2.bf16.msra.mxu0 0
        %1743 = vmatprep.subr.bf16.mxu0 0
        %1744 = vmatpush2.bf16.msra.mxu0 0
        %1745 = vmatprep.subr.bf16.mxu0 0
        %1746 = vmatpush2.bf16.msra.mxu0 0
        %1747 = vmatprep.mubr.bf16.mxu0 0
        %1748 = vmatmul.mubr.bf16.gmra.mxu0 %v1713
        %v1749 = vpop.f32.mrf.mxu0
        %v1750 = vadd.f32 0.0, %v1749
        %v1751 = vpop.f32.mrf.mxu0
        %v1752 = vpop.f32.mrf.mxu0
        %v1753 = vpop.f32.mrf.mxu0
        %1754 = vdwg.mxu0
        %v1756 = vsel %vm1117, %v1452, 0
        %1758 = vmatprep.subr.bf16.mxu0 0
        %1759 = vmatpush1.bf16.msra.mxu0 0
        %1760 = vmatprep.subr.bf16.mxu0 0
        %1761 = vmatpush1.bf16.msra.mxu0 0
        %1762 = vmatprep.subr.bf16.mxu0 0
        %1763 = vmatpush1.bf16.msra.mxu0 0
        %1764 = vmatprep.subr.bf16.mxu0 0
        %1765 = vmatpush1.bf16.msra.mxu0 0
        %1766 = vmatprep.subr.bf16.mxu0 0
        %1767 = vmatpush1.bf16.msra.mxu0 0
        %1768 = vmatprep.subr.bf16.mxu0 0
        %1769 = vmatpush1.bf16.msra.mxu0 0
        %1770 = vmatprep.subr.bf16.mxu0 0
        %1771 = vmatpush1.bf16.msra.mxu0 0
        %1772 = vmatprep.subr.bf16.mxu0 0
        %1773 = vmatpush1.bf16.msra.mxu0 %v596
        %1774 = vmatprep.subr.bf16.mxu0 0
        %1775 = vmatpush2.bf16.msra.mxu0 0
        %1776 = vmatprep.subr.bf16.mxu0 0
        %1777 = vmatpush2.bf16.msra.mxu0 0
        %1778 = vmatprep.subr.bf16.mxu0 0
        %1779 = vmatpush2.bf16.msra.mxu0 0
        %1780 = vmatprep.subr.bf16.mxu0 0
        %1781 = vmatpush2.bf16.msra.mxu0 0
        %1782 = vmatprep.subr.bf16.mxu0 0
        %1783 = vmatpush2.bf16.msra.mxu0 0
        %1784 = vmatprep.subr.bf16.mxu0 0
        %1785 = vmatpush2.bf16.msra.mxu0 0
        %1786 = vmatprep.subr.bf16.mxu0 0
        %1787 = vmatpush2.bf16.msra.mxu0 0
        %1788 = vmatprep.subr.bf16.mxu0 0
        %1789 = vmatpush2.bf16.msra.mxu0 0
        %1790 = vmatprep.mubr.bf16.mxu0 0
        %1791 = vmatmul.mubr.bf16.gmra.mxu0 %v1756
        %v1792 = vpop.f32.mrf.mxu0
        %v1793 = vadd.f32 0.0, %v1792
        %v1794 = vpop.f32.mrf.mxu0
        %v1795 = vpop.f32.mrf.mxu0
        %v1796 = vpop.f32.mrf.mxu0
        %1797 = vdwg.mxu0
        %v1798 = vmul.f32 %v1492, %v1406
        %v1799 = vmul.f32 %v1535, %v1410
        %v1800 = vmul.f32 %v1578, %v1414
        %v1801 = vmul.f32 %v1621, %v1418
        %v1802 = vmul.f32 %v1664, %v1422
        %v1803 = vmul.f32 %v1707, %v1426
        %v1804 = vmul.f32 %v1750, %v1430
        %v1805 = vmul.f32 %v1793, %v1434
        %vm1806 = vcmask 261120
        %1807 = vst.msk [vmem:[#allocation2] sm:$0xff] %vm1806, %v1798
        %1808 = vst.msk [vmem:[#allocation2 + $0x8] sm:$0xff] %vm1806, %v1799
        %1809 = vst.msk [vmem:[#allocation2 + $0x10] sm:$0xff] %vm1806, %v1800
        %1810 = vst.msk [vmem:[#allocation2 + $0x18] sm:$0xff] %vm1806, %v1801
        %1811 = vst.msk [vmem:[#allocation2 + $0x20] sm:$0xff] %vm1806, %v1802
        %1812 = vst.msk [vmem:[#allocation2 + $0x28] sm:$0xff] %vm1806, %v1803
        %1813 = vst.msk [vmem:[#allocation2 + $0x30] sm:$0xff] %vm1806, %v1804
        %1814 = vst.msk [vmem:[#allocation2 + $0x38] sm:$0xff] %vm1806, %v1805
        %v1816 = vrot.slane %v1438, 4
        %1818 = vrot.lane.b32.xlu0 %v589, 96
        %v1819 = vpop.permute.xlu0 %1818
        %v1822 = vsel %vm1117, %v1816, 0
        %1824 = vmatprep.subr.bf16.mxu0 0
        %1825 = vmatpush1.bf16.msra.mxu0 0
        %1826 = vmatprep.subr.bf16.mxu0 0
        %1827 = vmatpush1.bf16.msra.mxu0 0
        %1828 = vmatprep.subr.bf16.mxu0 0
        %1829 = vmatpush1.bf16.msra.mxu0 0
        %1830 = vmatprep.subr.bf16.mxu0 0
        %1831 = vmatpush1.bf16.msra.mxu0 0
        %1832 = vmatprep.subr.bf16.mxu0 0
        %1833 = vmatpush1.bf16.msra.mxu0 0
        %1834 = vmatprep.subr.bf16.mxu0 0
        %1835 = vmatpush1.bf16.msra.mxu0 0
        %1836 = vmatprep.subr.bf16.mxu0 0
        %1837 = vmatpush1.bf16.msra.mxu0 0
        %1838 = vmatprep.subr.bf16.mxu0 0
        %1839 = vmatpush1.bf16.msra.mxu0 %v1819
        %1840 = vmatprep.subr.bf16.mxu0 0
        %1841 = vmatpush2.bf16.msra.mxu0 0
        %1842 = vmatprep.subr.bf16.mxu0 0
        %1843 = vmatpush2.bf16.msra.mxu0 0
        %1844 = vmatprep.subr.bf16.mxu0 0
        %1845 = vmatpush2.bf16.msra.mxu0 0
        %1846 = vmatprep.subr.bf16.mxu0 0
        %1847 = vmatpush2.bf16.msra.mxu0 0
        %1848 = vmatprep.subr.bf16.mxu0 0
        %1849 = vmatpush2.bf16.msra.mxu0 0
        %1850 = vmatprep.subr.bf16.mxu0 0
        %1851 = vmatpush2.bf16.msra.mxu0 0
        %1852 = vmatprep.subr.bf16.mxu0 0
        %1853 = vmatpush2.bf16.msra.mxu0 0
        %1854 = vmatprep.subr.bf16.mxu0 0
        %1855 = vmatpush2.bf16.msra.mxu0 0
        %1856 = vmatprep.mubr.bf16.mxu0 0
        %1857 = vmatmul.mubr.bf16.gmra.mxu0 %v1822
        %v1858 = vpop.f32.mrf.mxu0
        %v1859 = vadd.f32 0.0, %v1858
        %v1860 = vpop.f32.mrf.mxu0
        %v1861 = vpop.f32.mrf.mxu0
        %v1862 = vpop.f32.mrf.mxu0
        %1863 = vdwg.mxu0
        %v1865 = vrot.slane %v1440, 4
        %1867 = vrot.lane.b32.xlu0 %v590, 96
        %v1868 = vpop.permute.xlu0 %1867
        %v1871 = vsel %vm1117, %v1865, 0
        %1873 = vmatprep.subr.bf16.mxu0 0
        %1874 = vmatpush1.bf16.msra.mxu0 0
        %1875 = vmatprep.subr.bf16.mxu0 0
        %1876 = vmatpush1.bf16.msra.mxu0 0
        %1877 = vmatprep.subr.bf16.mxu0 0
        %1878 = vmatpush1.bf16.msra.mxu0 0
        %1879 = vmatprep.subr.bf16.mxu0 0
        %1880 = vmatpush1.bf16.msra.mxu0 0
        %1881 = vmatprep.subr.bf16.mxu0 0
        %1882 = vmatpush1.bf16.msra.mxu0 0
        %1883 = vmatprep.subr.bf16.mxu0 0
        %1884 = vmatpush1.bf16.msra.mxu0 0
        %1885 = vmatprep.subr.bf16.mxu0 0
        %1886 = vmatpush1.bf16.msra.mxu0 0
        %1887 = vmatprep.subr.bf16.mxu0 0
        %1888 = vmatpush1.bf16.msra.mxu0 %v1868
        %1889 = vmatprep.subr.bf16.mxu0 0
        %1890 = vmatpush2.bf16.msra.mxu0 0
        %1891 = vmatprep.subr.bf16.mxu0 0
        %1892 = vmatpush2.bf16.msra.mxu0 0
        %1893 = vmatprep.subr.bf16.mxu0 0
        %1894 = vmatpush2.bf16.msra.mxu0 0
        %1895 = vmatprep.subr.bf16.mxu0 0
        %1896 = vmatpush2.bf16.msra.mxu0 0
        %1897 = vmatprep.subr.bf16.mxu0 0
        %1898 = vmatpush2.bf16.msra.mxu0 0
        %1899 = vmatprep.subr.bf16.mxu0 0
        %1900 = vmatpush2.bf16.msra.mxu0 0
        %1901 = vmatprep.subr.bf16.mxu0 0
        %1902 = vmatpush2.bf16.msra.mxu0 0
        %1903 = vmatprep.subr.bf16.mxu0 0
        %1904 = vmatpush2.bf16.msra.mxu0 0
        %1905 = vmatprep.mubr.bf16.mxu0 0
        %1906 = vmatmul.mubr.bf16.gmra.mxu0 %v1871
        %v1907 = vpop.f32.mrf.mxu0
        %v1908 = vadd.f32 0.0, %v1907
        %v1909 = vpop.f32.mrf.mxu0
        %v1910 = vpop.f32.mrf.mxu0
        %v1911 = vpop.f32.mrf.mxu0
        %1912 = vdwg.mxu0
        %v1914 = vrot.slane %v1442, 4
        %1916 = vrot.lane.b32.xlu0 %v591, 96
        %v1917 = vpop.permute.xlu0 %1916
        %v1920 = vsel %vm1117, %v1914, 0
        %1922 = vmatprep.subr.bf16.mxu0 0
        %1923 = vmatpush1.bf16.msra.mxu0 0
        %1924 = vmatprep.subr.bf16.mxu0 0
        %1925 = vmatpush1.bf16.msra.mxu0 0
        %1926 = vmatprep.subr.bf16.mxu0 0
        %1927 = vmatpush1.bf16.msra.mxu0 0
        %1928 = vmatprep.subr.bf16.mxu0 0
        %1929 = vmatpush1.bf16.msra.mxu0 0
        %1930 = vmatprep.subr.bf16.mxu0 0
        %1931 = vmatpush1.bf16.msra.mxu0 0
        %1932 = vmatprep.subr.bf16.mxu0 0
        %1933 = vmatpush1.bf16.msra.mxu0 0
        %1934 = vmatprep.subr.bf16.mxu0 0
        %1935 = vmatpush1.bf16.msra.mxu0 0
        %1936 = vmatprep.subr.bf16.mxu0 0
        %1937 = vmatpush1.bf16.msra.mxu0 %v1917
        %1938 = vmatprep.subr.bf16.mxu0 0
        %1939 = vmatpush2.bf16.msra.mxu0 0
        %1940 = vmatprep.subr.bf16.mxu0 0
        %1941 = vmatpush2.bf16.msra.mxu0 0
        %1942 = vmatprep.subr.bf16.mxu0 0
        %1943 = vmatpush2.bf16.msra.mxu0 0
        %1944 = vmatprep.subr.bf16.mxu0 0
        %1945 = vmatpush2.bf16.msra.mxu0 0
        %1946 = vmatprep.subr.bf16.mxu0 0
        %1947 = vmatpush2.bf16.msra.mxu0 0
        %1948 = vmatprep.subr.bf16.mxu0 0
        %1949 = vmatpush2.bf16.msra.mxu0 0
        %1950 = vmatprep.subr.bf16.mxu0 0
        %1951 = vmatpush2.bf16.msra.mxu0 0
        %1952 = vmatprep.subr.bf16.mxu0 0
        %1953 = vmatpush2.bf16.msra.mxu0 0
        %1954 = vmatprep.mubr.bf16.mxu0 0
        %1955 = vmatmul.mubr.bf16.gmra.mxu0 %v1920
        %v1956 = vpop.f32.mrf.mxu0
        %v1957 = vadd.f32 0.0, %v1956
        %v1958 = vpop.f32.mrf.mxu0
        %v1959 = vpop.f32.mrf.mxu0
        %v1960 = vpop.f32.mrf.mxu0
        %1961 = vdwg.mxu0
        %v1963 = vrot.slane %v1444, 4
        %1965 = vrot.lane.b32.xlu0 %v592, 96
        %v1966 = vpop.permute.xlu0 %1965
        %v1969 = vsel %vm1117, %v1963, 0
        %1971 = vmatprep.subr.bf16.mxu0 0
        %1972 = vmatpush1.bf16.msra.mxu0 0
        %1973 = vmatprep.subr.bf16.mxu0 0
        %1974 = vmatpush1.bf16.msra.mxu0 0
        %1975 = vmatprep.subr.bf16.mxu0 0
        %1976 = vmatpush1.bf16.msra.mxu0 0
        %1977 = vmatprep.subr.bf16.mxu0 0
        %1978 = vmatpush1.bf16.msra.mxu0 0
        %1979 = vmatprep.subr.bf16.mxu0 0
        %1980 = vmatpush1.bf16.msra.mxu0 0
        %1981 = vmatprep.subr.bf16.mxu0 0
        %1982 = vmatpush1.bf16.msra.mxu0 0
        %1983 = vmatprep.subr.bf16.mxu0 0
        %1984 = vmatpush1.bf16.msra.mxu0 0
        %1985 = vmatprep.subr.bf16.mxu0 0
        %1986 = vmatpush1.bf16.msra.mxu0 %v1966
        %1987 = vmatprep.subr.bf16.mxu0 0
        %1988 = vmatpush2.bf16.msra.mxu0 0
        %1989 = vmatprep.subr.bf16.mxu0 0
        %1990 = vmatpush2.bf16.msra.mxu0 0
        %1991 = vmatprep.subr.bf16.mxu0 0
        %1992 = vmatpush2.bf16.msra.mxu0 0
        %1993 = vmatprep.subr.bf16.mxu0 0
        %1994 = vmatpush2.bf16.msra.mxu0 0
        %1995 = vmatprep.subr.bf16.mxu0 0
        %1996 = vmatpush2.bf16.msra.mxu0 0
        %1997 = vmatprep.subr.bf16.mxu0 0
        %1998 = vmatpush2.bf16.msra.mxu0 0
        %1999 = vmatprep.subr.bf16.mxu0 0
        %2000 = vmatpush2.bf16.msra.mxu0 0
        %2001 = vmatprep.subr.bf16.mxu0 0
        %2002 = vmatpush2.bf16.msra.mxu0 0
        %2003 = vmatprep.mubr.bf16.mxu0 0
        %2004 = vmatmul.mubr.bf16.gmra.mxu0 %v1969
        %v2005 = vpop.f32.mrf.mxu0
        %v2006 = vadd.f32 0.0, %v2005
        %v2007 = vpop.f32.mrf.mxu0
        %v2008 = vpop.f32.mrf.mxu0
        %v2009 = vpop.f32.mrf.mxu0
        %2010 = vdwg.mxu0
        %v2012 = vrot.slane %v1446, 4
        %2014 = vrot.lane.b32.xlu0 %v593, 96
        %v2015 = vpop.permute.xlu0 %2014
        %v2018 = vsel %vm1117, %v2012, 0
        %2020 = vmatprep.subr.bf16.mxu0 0
        %2021 = vmatpush1.bf16.msra.mxu0 0
        %2022 = vmatprep.subr.bf16.mxu0 0
        %2023 = vmatpush1.bf16.msra.mxu0 0
        %2024 = vmatprep.subr.bf16.mxu0 0
        %2025 = vmatpush1.bf16.msra.mxu0 0
        %2026 = vmatprep.subr.bf16.mxu0 0
        %2027 = vmatpush1.bf16.msra.mxu0 0
        %2028 = vmatprep.subr.bf16.mxu0 0
        %2029 = vmatpush1.bf16.msra.mxu0 0
        %2030 = vmatprep.subr.bf16.mxu0 0
        %2031 = vmatpush1.bf16.msra.mxu0 0
        %2032 = vmatprep.subr.bf16.mxu0 0
        %2033 = vmatpush1.bf16.msra.mxu0 0
        %2034 = vmatprep.subr.bf16.mxu0 0
        %2035 = vmatpush1.bf16.msra.mxu0 %v2015
        %2036 = vmatprep.subr.bf16.mxu0 0
        %2037 = vmatpush2.bf16.msra.mxu0 0
        %2038 = vmatprep.subr.bf16.mxu0 0
        %2039 = vmatpush2.bf16.msra.mxu0 0
        %2040 = vmatprep.subr.bf16.mxu0 0
        %2041 = vmatpush2.bf16.msra.mxu0 0
        %2042 = vmatprep.subr.bf16.mxu0 0
        %2043 = vmatpush2.bf16.msra.mxu0 0
        %2044 = vmatprep.subr.bf16.mxu0 0
        %2045 = vmatpush2.bf16.msra.mxu0 0
        %2046 = vmatprep.subr.bf16.mxu0 0
        %2047 = vmatpush2.bf16.msra.mxu0 0
        %2048 = vmatprep.subr.bf16.mxu0 0
        %2049 = vmatpush2.bf16.msra.mxu0 0
        %2050 = vmatprep.subr.bf16.mxu0 0
        %2051 = vmatpush2.bf16.msra.mxu0 0
        %2052 = vmatprep.mubr.bf16.mxu0 0
        %2053 = vmatmul.mubr.bf16.gmra.mxu0 %v2018
        %v2054 = vpop.f32.mrf.mxu0
        %v2055 = vadd.f32 0.0, %v2054
        %v2056 = vpop.f32.mrf.mxu0
        %v2057 = vpop.f32.mrf.mxu0
        %v2058 = vpop.f32.mrf.mxu0
        %2059 = vdwg.mxu0
        %v2061 = vrot.slane %v1448, 4
        %2063 = vrot.lane.b32.xlu0 %v594, 96
        %v2064 = vpop.permute.xlu0 %2063
        %v2067 = vsel %vm1117, %v2061, 0
        %2069 = vmatprep.subr.bf16.mxu0 0
        %2070 = vmatpush1.bf16.msra.mxu0 0
        %2071 = vmatprep.subr.bf16.mxu0 0
        %2072 = vmatpush1.bf16.msra.mxu0 0
        %2073 = vmatprep.subr.bf16.mxu0 0
        %2074 = vmatpush1.bf16.msra.mxu0 0
        %2075 = vmatprep.subr.bf16.mxu0 0
        %2076 = vmatpush1.bf16.msra.mxu0 0
        %2077 = vmatprep.subr.bf16.mxu0 0
        %2078 = vmatpush1.bf16.msra.mxu0 0
        %2079 = vmatprep.subr.bf16.mxu0 0
        %2080 = vmatpush1.bf16.msra.mxu0 0
        %2081 = vmatprep.subr.bf16.mxu0 0
        %2082 = vmatpush1.bf16.msra.mxu0 0
        %2083 = vmatprep.subr.bf16.mxu0 0
        %2084 = vmatpush1.bf16.msra.mxu0 %v2064
        %2085 = vmatprep.subr.bf16.mxu0 0
        %2086 = vmatpush2.bf16.msra.mxu0 0
        %2087 = vmatprep.subr.bf16.mxu0 0
        %2088 = vmatpush2.bf16.msra.mxu0 0
        %2089 = vmatprep.subr.bf16.mxu0 0
        %2090 = vmatpush2.bf16.msra.mxu0 0
        %2091 = vmatprep.subr.bf16.mxu0 0
        %2092 = vmatpush2.bf16.msra.mxu0 0
        %2093 = vmatprep.subr.bf16.mxu0 0
        %2094 = vmatpush2.bf16.msra.mxu0 0
        %2095 = vmatprep.subr.bf16.mxu0 0
        %2096 = vmatpush2.bf16.msra.mxu0 0
        %2097 = vmatprep.subr.bf16.mxu0 0
        %2098 = vmatpush2.bf16.msra.mxu0 0
        %2099 = vmatprep.subr.bf16.mxu0 0
        %2100 = vmatpush2.bf16.msra.mxu0 0
        %2101 = vmatprep.mubr.bf16.mxu0 0
        %2102 = vmatmul.mubr.bf16.gmra.mxu0 %v2067
        %v2103 = vpop.f32.mrf.mxu0
        %v2104 = vadd.f32 0.0, %v2103
        %v2105 = vpop.f32.mrf.mxu0
        %v2106 = vpop.f32.mrf.mxu0
        %v2107 = vpop.f32.mrf.mxu0
        %2108 = vdwg.mxu0
        %v2110 = vrot.slane %v1450, 4
        %2112 = vrot.lane.b32.xlu0 %v595, 96
        %v2113 = vpop.permute.xlu0 %2112
        %v2116 = vsel %vm1117, %v2110, 0
        %2118 = vmatprep.subr.bf16.mxu0 0
        %2119 = vmatpush1.bf16.msra.mxu0 0
        %2120 = vmatprep.subr.bf16.mxu0 0
        %2121 = vmatpush1.bf16.msra.mxu0 0
        %2122 = vmatprep.subr.bf16.mxu0 0
        %2123 = vmatpush1.bf16.msra.mxu0 0
        %2124 = vmatprep.subr.bf16.mxu0 0
        %2125 = vmatpush1.bf16.msra.mxu0 0
        %2126 = vmatprep.subr.bf16.mxu0 0
        %2127 = vmatpush1.bf16.msra.mxu0 0
        %2128 = vmatprep.subr.bf16.mxu0 0
        %2129 = vmatpush1.bf16.msra.mxu0 0
        %2130 = vmatprep.subr.bf16.mxu0 0
        %2131 = vmatpush1.bf16.msra.mxu0 0
        %2132 = vmatprep.subr.bf16.mxu0 0
        %2133 = vmatpush1.bf16.msra.mxu0 %v2113
        %2134 = vmatprep.subr.bf16.mxu0 0
        %2135 = vmatpush2.bf16.msra.mxu0 0
        %2136 = vmatprep.subr.bf16.mxu0 0
        %2137 = vmatpush2.bf16.msra.mxu0 0
        %2138 = vmatprep.subr.bf16.mxu0 0
        %2139 = vmatpush2.bf16.msra.mxu0 0
        %2140 = vmatprep.subr.bf16.mxu0 0
        %2141 = vmatpush2.bf16.msra.mxu0 0
        %2142 = vmatprep.subr.bf16.mxu0 0
        %2143 = vmatpush2.bf16.msra.mxu0 0
        %2144 = vmatprep.subr.bf16.mxu0 0
        %2145 = vmatpush2.bf16.msra.mxu0 0
        %2146 = vmatprep.subr.bf16.mxu0 0
        %2147 = vmatpush2.bf16.msra.mxu0 0
        %2148 = vmatprep.subr.bf16.mxu0 0
        %2149 = vmatpush2.bf16.msra.mxu0 0
        %2150 = vmatprep.mubr.bf16.mxu0 0
        %2151 = vmatmul.mubr.bf16.gmra.mxu0 %v2116
        %v2152 = vpop.f32.mrf.mxu0
        %v2153 = vadd.f32 0.0, %v2152
        %v2154 = vpop.f32.mrf.mxu0
        %v2155 = vpop.f32.mrf.mxu0
        %v2156 = vpop.f32.mrf.mxu0
        %2157 = vdwg.mxu0
        %v2159 = vrot.slane %v1452, 4
        %2161 = vrot.lane.b32.xlu0 %v596, 96
        %v2162 = vpop.permute.xlu0 %2161
        %v2165 = vsel %vm1117, %v2159, 0
        %2167 = vmatprep.subr.bf16.mxu0 0
        %2168 = vmatpush1.bf16.msra.mxu0 0
        %2169 = vmatprep.subr.bf16.mxu0 0
        %2170 = vmatpush1.bf16.msra.mxu0 0
        %2171 = vmatprep.subr.bf16.mxu0 0
        %2172 = vmatpush1.bf16.msra.mxu0 0
        %2173 = vmatprep.subr.bf16.mxu0 0
        %2174 = vmatpush1.bf16.msra.mxu0 0
        %2175 = vmatprep.subr.bf16.mxu0 0
        %2176 = vmatpush1.bf16.msra.mxu0 0
        %2177 = vmatprep.subr.bf16.mxu0 0
        %2178 = vmatpush1.bf16.msra.mxu0 0
        %2179 = vmatprep.subr.bf16.mxu0 0
        %2180 = vmatpush1.bf16.msra.mxu0 0
        %2181 = vmatprep.subr.bf16.mxu0 0
        %2182 = vmatpush1.bf16.msra.mxu0 %v2162
        %2183 = vmatprep.subr.bf16.mxu0 0
        %2184 = vmatpush2.bf16.msra.mxu0 0
        %2185 = vmatprep.subr.bf16.mxu0 0
        %2186 = vmatpush2.bf16.msra.mxu0 0
        %2187 = vmatprep.subr.bf16.mxu0 0
        %2188 = vmatpush2.bf16.msra.mxu0 0
        %2189 = vmatprep.subr.bf16.mxu0 0
        %2190 = vmatpush2.bf16.msra.mxu0 0
        %2191 = vmatprep.subr.bf16.mxu0 0
        %2192 = vmatpush2.bf16.msra.mxu0 0
        %2193 = vmatprep.subr.bf16.mxu0 0
        %2194 = vmatpush2.bf16.msra.mxu0 0
        %2195 = vmatprep.subr.bf16.mxu0 0
        %2196 = vmatpush2.bf16.msra.mxu0 0
        %2197 = vmatprep.subr.bf16.mxu0 0
        %2198 = vmatpush2.bf16.msra.mxu0 0
        %2199 = vmatprep.mubr.bf16.mxu0 0
        %2200 = vmatmul.mubr.bf16.gmra.mxu0 %v2165
        %v2201 = vpop.f32.mrf.mxu0
        %v2202 = vadd.f32 0.0, %v2201
        %v2203 = vpop.f32.mrf.mxu0
        %v2204 = vpop.f32.mrf.mxu0
        %v2205 = vpop.f32.mrf.mxu0
        %2206 = vdwg.mxu0
        %v2207 = vmul.f32 %v1859, %v1407
        %v2208 = vmul.f32 %v1908, %v1411
        %v2209 = vmul.f32 %v1957, %v1415
        %v2210 = vmul.f32 %v2006, %v1419
        %v2211 = vmul.f32 %v2055, %v1423
        %v2212 = vmul.f32 %v2104, %v1427
        %v2213 = vmul.f32 %v2153, %v1431
        %v2214 = vmul.f32 %v2202, %v1435
        %2223 = vrot.lane.b32.xlu0 %v2207, 32
        %v2224 = vpop.permute.xlu0 %2223
        %2225 = vrot.lane.b32.xlu0 %v2208, 32
        %v2226 = vpop.permute.xlu0 %2225
        %2227 = vrot.lane.b32.xlu0 %v2209, 32
        %v2228 = vpop.permute.xlu0 %2227
        %2229 = vrot.lane.b32.xlu0 %v2210, 32
        %v2230 = vpop.permute.xlu0 %2229
        %2231 = vrot.lane.b32.xlu0 %v2211, 32
        %v2232 = vpop.permute.xlu0 %2231
        %2233 = vrot.lane.b32.xlu0 %v2212, 32
        %v2234 = vpop.permute.xlu0 %2233
        %2235 = vrot.lane.b32.xlu0 %v2213, 32
        %v2236 = vpop.permute.xlu0 %2235
        %2237 = vrot.lane.b32.xlu0 %v2214, 32
        %v2238 = vpop.permute.xlu0 %2237
        %vm2247 = vcmask 523520
        %2248 = vst.msk [vmem:[#allocation2] sm:$0xff] %vm2247, %v2224
        %2249 = vst.msk [vmem:[#allocation2 + $0x8] sm:$0xff] %vm2247, %v2226
        %2250 = vst.msk [vmem:[#allocation2 + $0x10] sm:$0xff] %vm2247, %v2228
        %2251 = vst.msk [vmem:[#allocation2 + $0x18] sm:$0xff] %vm2247, %v2230
        %2252 = vst.msk [vmem:[#allocation2 + $0x20] sm:$0xff] %vm2247, %v2232
        %2253 = vst.msk [vmem:[#allocation2 + $0x28] sm:$0xff] %vm2247, %v2234
        %2254 = vst.msk [vmem:[#allocation2 + $0x30] sm:$0xff] %vm2247, %v2236
        %2255 = vst.msk [vmem:[#allocation2 + $0x38] sm:$0xff] %vm2247, %v2238
        %2256 = vrot.lane.b32.xlu0 %v589, 64
        %v2257 = vpop.permute.xlu0 %2256
        %v2260 = vsel %vm1117, %v1439, 0
        %2262 = vmatprep.subr.bf16.mxu0 0
        %2263 = vmatpush1.bf16.msra.mxu0 0
        %2264 = vmatprep.subr.bf16.mxu0 0
        %2265 = vmatpush1.bf16.msra.mxu0 0
        %2266 = vmatprep.subr.bf16.mxu0 0
        %2267 = vmatpush1.bf16.msra.mxu0 0
        %2268 = vmatprep.subr.bf16.mxu0 0
        %2269 = vmatpush1.bf16.msra.mxu0 0
        %2270 = vmatprep.subr.bf16.mxu0 0
        %2271 = vmatpush1.bf16.msra.mxu0 0
        %2272 = vmatprep.subr.bf16.mxu0 0
        %2273 = vmatpush1.bf16.msra.mxu0 0
        %2274 = vmatprep.subr.bf16.mxu0 0
        %2275 = vmatpush1.bf16.msra.mxu0 0
        %2276 = vmatprep.subr.bf16.mxu0 0
        %2277 = vmatpush1.bf16.msra.mxu0 %v2257
        %2278 = vmatprep.subr.bf16.mxu0 0
        %2279 = vmatpush2.bf16.msra.mxu0 0
        %2280 = vmatprep.subr.bf16.mxu0 0
        %2281 = vmatpush2.bf16.msra.mxu0 0
        %2282 = vmatprep.subr.bf16.mxu0 0
        %2283 = vmatpush2.bf16.msra.mxu0 0
        %2284 = vmatprep.subr.bf16.mxu0 0
        %2285 = vmatpush2.bf16.msra.mxu0 0
        %2286 = vmatprep.subr.bf16.mxu0 0
        %2287 = vmatpush2.bf16.msra.mxu0 0
        %2288 = vmatprep.subr.bf16.mxu0 0
        %2289 = vmatpush2.bf16.msra.mxu0 0
        %2290 = vmatprep.subr.bf16.mxu0 0
        %2291 = vmatpush2.bf16.msra.mxu0 0
        %2292 = vmatprep.subr.bf16.mxu0 0
        %2293 = vmatpush2.bf16.msra.mxu0 0
        %2294 = vmatprep.mubr.bf16.mxu0 0
        %2295 = vmatmul.mubr.bf16.gmra.mxu0 %v2260
        %v2296 = vpop.f32.mrf.mxu0
        %v2297 = vadd.f32 0.0, %v2296
        %v2298 = vpop.f32.mrf.mxu0
        %v2299 = vpop.f32.mrf.mxu0
        %v2300 = vpop.f32.mrf.mxu0
        %2301 = vdwg.mxu0
        %2302 = vrot.lane.b32.xlu0 %v590, 64
        %v2303 = vpop.permute.xlu0 %2302
        %v2306 = vsel %vm1117, %v1441, 0
        %2308 = vmatprep.subr.bf16.mxu0 0
        %2309 = vmatpush1.bf16.msra.mxu0 0
        %2310 = vmatprep.subr.bf16.mxu0 0
        %2311 = vmatpush1.bf16.msra.mxu0 0
        %2312 = vmatprep.subr.bf16.mxu0 0
        %2313 = vmatpush1.bf16.msra.mxu0 0
        %2314 = vmatprep.subr.bf16.mxu0 0
        %2315 = vmatpush1.bf16.msra.mxu0 0
        %2316 = vmatprep.subr.bf16.mxu0 0
        %2317 = vmatpush1.bf16.msra.mxu0 0
        %2318 = vmatprep.subr.bf16.mxu0 0
        %2319 = vmatpush1.bf16.msra.mxu0 0
        %2320 = vmatprep.subr.bf16.mxu0 0
        %2321 = vmatpush1.bf16.msra.mxu0 0
        %2322 = vmatprep.subr.bf16.mxu0 0
        %2323 = vmatpush1.bf16.msra.mxu0 %v2303
        %2324 = vmatprep.subr.bf16.mxu0 0
        %2325 = vmatpush2.bf16.msra.mxu0 0
        %2326 = vmatprep.subr.bf16.mxu0 0
        %2327 = vmatpush2.bf16.msra.mxu0 0
        %2328 = vmatprep.subr.bf16.mxu0 0
        %2329 = vmatpush2.bf16.msra.mxu0 0
        %2330 = vmatprep.subr.bf16.mxu0 0
        %2331 = vmatpush2.bf16.msra.mxu0 0
        %2332 = vmatprep.subr.bf16.mxu0 0
        %2333 = vmatpush2.bf16.msra.mxu0 0
        %2334 = vmatprep.subr.bf16.mxu0 0
        %2335 = vmatpush2.bf16.msra.mxu0 0
        %2336 = vmatprep.subr.bf16.mxu0 0
        %2337 = vmatpush2.bf16.msra.mxu0 0
        %2338 = vmatprep.subr.bf16.mxu0 0
        %2339 = vmatpush2.bf16.msra.mxu0 0
        %2340 = vmatprep.mubr.bf16.mxu0 0
        %2341 = vmatmul.mubr.bf16.gmra.mxu0 %v2306
        %v2342 = vpop.f32.mrf.mxu0
        %v2343 = vadd.f32 0.0, %v2342
        %v2344 = vpop.f32.mrf.mxu0
        %v2345 = vpop.f32.mrf.mxu0
        %v2346 = vpop.f32.mrf.mxu0
        %2347 = vdwg.mxu0
        %2348 = vrot.lane.b32.xlu0 %v591, 64
        %v2349 = vpop.permute.xlu0 %2348
        %v2352 = vsel %vm1117, %v1443, 0
        %2354 = vmatprep.subr.bf16.mxu0 0
        %2355 = vmatpush1.bf16.msra.mxu0 0
        %2356 = vmatprep.subr.bf16.mxu0 0
        %2357 = vmatpush1.bf16.msra.mxu0 0
        %2358 = vmatprep.subr.bf16.mxu0 0
        %2359 = vmatpush1.bf16.msra.mxu0 0
        %2360 = vmatprep.subr.bf16.mxu0 0
        %2361 = vmatpush1.bf16.msra.mxu0 0
        %2362 = vmatprep.subr.bf16.mxu0 0
        %2363 = vmatpush1.bf16.msra.mxu0 0
        %2364 = vmatprep.subr.bf16.mxu0 0
        %2365 = vmatpush1.bf16.msra.mxu0 0
        %2366 = vmatprep.subr.bf16.mxu0 0
        %2367 = vmatpush1.bf16.msra.mxu0 0
        %2368 = vmatprep.subr.bf16.mxu0 0
        %2369 = vmatpush1.bf16.msra.mxu0 %v2349
        %2370 = vmatprep.subr.bf16.mxu0 0
        %2371 = vmatpush2.bf16.msra.mxu0 0
        %2372 = vmatprep.subr.bf16.mxu0 0
        %2373 = vmatpush2.bf16.msra.mxu0 0
        %2374 = vmatprep.subr.bf16.mxu0 0
        %2375 = vmatpush2.bf16.msra.mxu0 0
        %2376 = vmatprep.subr.bf16.mxu0 0
        %2377 = vmatpush2.bf16.msra.mxu0 0
        %2378 = vmatprep.subr.bf16.mxu0 0
        %2379 = vmatpush2.bf16.msra.mxu0 0
        %2380 = vmatprep.subr.bf16.mxu0 0
        %2381 = vmatpush2.bf16.msra.mxu0 0
        %2382 = vmatprep.subr.bf16.mxu0 0
        %2383 = vmatpush2.bf16.msra.mxu0 0
        %2384 = vmatprep.subr.bf16.mxu0 0
        %2385 = vmatpush2.bf16.msra.mxu0 0
        %2386 = vmatprep.mubr.bf16.mxu0 0
        %2387 = vmatmul.mubr.bf16.gmra.mxu0 %v2352
        %v2388 = vpop.f32.mrf.mxu0
        %v2389 = vadd.f32 0.0, %v2388
        %v2390 = vpop.f32.mrf.mxu0
        %v2391 = vpop.f32.mrf.mxu0
        %v2392 = vpop.f32.mrf.mxu0
        %2393 = vdwg.mxu0
        %2394 = vrot.lane.b32.xlu0 %v592, 64
        %v2395 = vpop.permute.xlu0 %2394
        %v2398 = vsel %vm1117, %v1445, 0
        %2400 = vmatprep.subr.bf16.mxu0 0
        %2401 = vmatpush1.bf16.msra.mxu0 0
        %2402 = vmatprep.subr.bf16.mxu0 0
        %2403 = vmatpush1.bf16.msra.mxu0 0
        %2404 = vmatprep.subr.bf16.mxu0 0
        %2405 = vmatpush1.bf16.msra.mxu0 0
        %2406 = vmatprep.subr.bf16.mxu0 0
        %2407 = vmatpush1.bf16.msra.mxu0 0
        %2408 = vmatprep.subr.bf16.mxu0 0
        %2409 = vmatpush1.bf16.msra.mxu0 0
        %2410 = vmatprep.subr.bf16.mxu0 0
        %2411 = vmatpush1.bf16.msra.mxu0 0
        %2412 = vmatprep.subr.bf16.mxu0 0
        %2413 = vmatpush1.bf16.msra.mxu0 0
        %2414 = vmatprep.subr.bf16.mxu0 0
        %2415 = vmatpush1.bf16.msra.mxu0 %v2395
        %2416 = vmatprep.subr.bf16.mxu0 0
        %2417 = vmatpush2.bf16.msra.mxu0 0
        %2418 = vmatprep.subr.bf16.mxu0 0
        %2419 = vmatpush2.bf16.msra.mxu0 0
        %2420 = vmatprep.subr.bf16.mxu0 0
        %2421 = vmatpush2.bf16.msra.mxu0 0
        %2422 = vmatprep.subr.bf16.mxu0 0
        %2423 = vmatpush2.bf16.msra.mxu0 0
        %2424 = vmatprep.subr.bf16.mxu0 0
        %2425 = vmatpush2.bf16.msra.mxu0 0
        %2426 = vmatprep.subr.bf16.mxu0 0
        %2427 = vmatpush2.bf16.msra.mxu0 0
        %2428 = vmatprep.subr.bf16.mxu0 0
        %2429 = vmatpush2.bf16.msra.mxu0 0
        %2430 = vmatprep.subr.bf16.mxu0 0
        %2431 = vmatpush2.bf16.msra.mxu0 0
        %2432 = vmatprep.mubr.bf16.mxu0 0
        %2433 = vmatmul.mubr.bf16.gmra.mxu0 %v2398
        %v2434 = vpop.f32.mrf.mxu0
        %v2435 = vadd.f32 0.0, %v2434
        %v2436 = vpop.f32.mrf.mxu0
        %v2437 = vpop.f32.mrf.mxu0
        %v2438 = vpop.f32.mrf.mxu0
        %2439 = vdwg.mxu0
        %2440 = vrot.lane.b32.xlu0 %v593, 64
        %v2441 = vpop.permute.xlu0 %2440
        %v2444 = vsel %vm1117, %v1447, 0
        %2446 = vmatprep.subr.bf16.mxu0 0
        %2447 = vmatpush1.bf16.msra.mxu0 0
        %2448 = vmatprep.subr.bf16.mxu0 0
        %2449 = vmatpush1.bf16.msra.mxu0 0
        %2450 = vmatprep.subr.bf16.mxu0 0
        %2451 = vmatpush1.bf16.msra.mxu0 0
        %2452 = vmatprep.subr.bf16.mxu0 0
        %2453 = vmatpush1.bf16.msra.mxu0 0
        %2454 = vmatprep.subr.bf16.mxu0 0
        %2455 = vmatpush1.bf16.msra.mxu0 0
        %2456 = vmatprep.subr.bf16.mxu0 0
        %2457 = vmatpush1.bf16.msra.mxu0 0
        %2458 = vmatprep.subr.bf16.mxu0 0
        %2459 = vmatpush1.bf16.msra.mxu0 0
        %2460 = vmatprep.subr.bf16.mxu0 0
        %2461 = vmatpush1.bf16.msra.mxu0 %v2441
        %2462 = vmatprep.subr.bf16.mxu0 0
        %2463 = vmatpush2.bf16.msra.mxu0 0
        %2464 = vmatprep.subr.bf16.mxu0 0
        %2465 = vmatpush2.bf16.msra.mxu0 0
        %2466 = vmatprep.subr.bf16.mxu0 0
        %2467 = vmatpush2.bf16.msra.mxu0 0
        %2468 = vmatprep.subr.bf16.mxu0 0
        %2469 = vmatpush2.bf16.msra.mxu0 0
        %2470 = vmatprep.subr.bf16.mxu0 0
        %2471 = vmatpush2.bf16.msra.mxu0 0
        %2472 = vmatprep.subr.bf16.mxu0 0
        %2473 = vmatpush2.bf16.msra.mxu0 0
        %2474 = vmatprep.subr.bf16.mxu0 0
        %2475 = vmatpush2.bf16.msra.mxu0 0
        %2476 = vmatprep.subr.bf16.mxu0 0
        %2477 = vmatpush2.bf16.msra.mxu0 0
        %2478 = vmatprep.mubr.bf16.mxu0 0
        %2479 = vmatmul.mubr.bf16.gmra.mxu0 %v2444
        %v2480 = vpop.f32.mrf.mxu0
        %v2481 = vadd.f32 0.0, %v2480
        %v2482 = vpop.f32.mrf.mxu0
        %v2483 = vpop.f32.mrf.mxu0
        %v2484 = vpop.f32.mrf.mxu0
        %2485 = vdwg.mxu0
        %2486 = vrot.lane.b32.xlu0 %v594, 64
        %v2487 = vpop.permute.xlu0 %2486
        %v2490 = vsel %vm1117, %v1449, 0
        %2492 = vmatprep.subr.bf16.mxu0 0
        %2493 = vmatpush1.bf16.msra.mxu0 0
        %2494 = vmatprep.subr.bf16.mxu0 0
        %2495 = vmatpush1.bf16.msra.mxu0 0
        %2496 = vmatprep.subr.bf16.mxu0 0
        %2497 = vmatpush1.bf16.msra.mxu0 0
        %2498 = vmatprep.subr.bf16.mxu0 0
        %2499 = vmatpush1.bf16.msra.mxu0 0
        %2500 = vmatprep.subr.bf16.mxu0 0
        %2501 = vmatpush1.bf16.msra.mxu0 0
        %2502 = vmatprep.subr.bf16.mxu0 0
        %2503 = vmatpush1.bf16.msra.mxu0 0
        %2504 = vmatprep.subr.bf16.mxu0 0
        %2505 = vmatpush1.bf16.msra.mxu0 0
        %2506 = vmatprep.subr.bf16.mxu0 0
        %2507 = vmatpush1.bf16.msra.mxu0 %v2487
        %2508 = vmatprep.subr.bf16.mxu0 0
        %2509 = vmatpush2.bf16.msra.mxu0 0
        %2510 = vmatprep.subr.bf16.mxu0 0
        %2511 = vmatpush2.bf16.msra.mxu0 0
        %2512 = vmatprep.subr.bf16.mxu0 0
        %2513 = vmatpush2.bf16.msra.mxu0 0
        %2514 = vmatprep.subr.bf16.mxu0 0
        %2515 = vmatpush2.bf16.msra.mxu0 0
        %2516 = vmatprep.subr.bf16.mxu0 0
        %2517 = vmatpush2.bf16.msra.mxu0 0
        %2518 = vmatprep.subr.bf16.mxu0 0
        %2519 = vmatpush2.bf16.msra.mxu0 0
        %2520 = vmatprep.subr.bf16.mxu0 0
        %2521 = vmatpush2.bf16.msra.mxu0 0
        %2522 = vmatprep.subr.bf16.mxu0 0
        %2523 = vmatpush2.bf16.msra.mxu0 0
        %2524 = vmatprep.mubr.bf16.mxu0 0
        %2525 = vmatmul.mubr.bf16.gmra.mxu0 %v2490
        %v2526 = vpop.f32.mrf.mxu0
        %v2527 = vadd.f32 0.0, %v2526
        %v2528 = vpop.f32.mrf.mxu0
        %v2529 = vpop.f32.mrf.mxu0
        %v2530 = vpop.f32.mrf.mxu0
        %2531 = vdwg.mxu0
        %2532 = vrot.lane.b32.xlu0 %v595, 64
        %v2533 = vpop.permute.xlu0 %2532
        %v2536 = vsel %vm1117, %v1451, 0
        %2538 = vmatprep.subr.bf16.mxu0 0
        %2539 = vmatpush1.bf16.msra.mxu0 0
        %2540 = vmatprep.subr.bf16.mxu0 0
        %2541 = vmatpush1.bf16.msra.mxu0 0
        %2542 = vmatprep.subr.bf16.mxu0 0
        %2543 = vmatpush1.bf16.msra.mxu0 0
        %2544 = vmatprep.subr.bf16.mxu0 0
        %2545 = vmatpush1.bf16.msra.mxu0 0
        %2546 = vmatprep.subr.bf16.mxu0 0
        %2547 = vmatpush1.bf16.msra.mxu0 0
        %2548 = vmatprep.subr.bf16.mxu0 0
        %2549 = vmatpush1.bf16.msra.mxu0 0
        %2550 = vmatprep.subr.bf16.mxu0 0
        %2551 = vmatpush1.bf16.msra.mxu0 0
        %2552 = vmatprep.subr.bf16.mxu0 0
        %2553 = vmatpush1.bf16.msra.mxu0 %v2533
        %2554 = vmatprep.subr.bf16.mxu0 0
        %2555 = vmatpush2.bf16.msra.mxu0 0
        %2556 = vmatprep.subr.bf16.mxu0 0
        %2557 = vmatpush2.bf16.msra.mxu0 0
        %2558 = vmatprep.subr.bf16.mxu0 0
        %2559 = vmatpush2.bf16.msra.mxu0 0
        %2560 = vmatprep.subr.bf16.mxu0 0
        %2561 = vmatpush2.bf16.msra.mxu0 0
        %2562 = vmatprep.subr.bf16.mxu0 0
        %2563 = vmatpush2.bf16.msra.mxu0 0
        %2564 = vmatprep.subr.bf16.mxu0 0
        %2565 = vmatpush2.bf16.msra.mxu0 0
        %2566 = vmatprep.subr.bf16.mxu0 0
        %2567 = vmatpush2.bf16.msra.mxu0 0
        %2568 = vmatprep.subr.bf16.mxu0 0
        %2569 = vmatpush2.bf16.msra.mxu0 0
        %2570 = vmatprep.mubr.bf16.mxu0 0
        %2571 = vmatmul.mubr.bf16.gmra.mxu0 %v2536
        %v2572 = vpop.f32.mrf.mxu0
        %v2573 = vadd.f32 0.0, %v2572
        %v2574 = vpop.f32.mrf.mxu0
        %v2575 = vpop.f32.mrf.mxu0
        %v2576 = vpop.f32.mrf.mxu0
        %2577 = vdwg.mxu0
        %2578 = vrot.lane.b32.xlu0 %v596, 64
        %v2579 = vpop.permute.xlu0 %2578
        %v2582 = vsel %vm1117, %v1453, 0
        %2584 = vmatprep.subr.bf16.mxu0 0
        %2585 = vmatpush1.bf16.msra.mxu0 0
        %2586 = vmatprep.subr.bf16.mxu0 0
        %2587 = vmatpush1.bf16.msra.mxu0 0
        %2588 = vmatprep.subr.bf16.mxu0 0
        %2589 = vmatpush1.bf16.msra.mxu0 0
        %2590 = vmatprep.subr.bf16.mxu0 0
        %2591 = vmatpush1.bf16.msra.mxu0 0
        %2592 = vmatprep.subr.bf16.mxu0 0
        %2593 = vmatpush1.bf16.msra.mxu0 0
        %2594 = vmatprep.subr.bf16.mxu0 0
        %2595 = vmatpush1.bf16.msra.mxu0 0
        %2596 = vmatprep.subr.bf16.mxu0 0
        %2597 = vmatpush1.bf16.msra.mxu0 0
        %2598 = vmatprep.subr.bf16.mxu0 0
        %2599 = vmatpush1.bf16.msra.mxu0 %v2579
        %2600 = vmatprep.subr.bf16.mxu0 0
        %2601 = vmatpush2.bf16.msra.mxu0 0
        %2602 = vmatprep.subr.bf16.mxu0 0
        %2603 = vmatpush2.bf16.msra.mxu0 0
        %2604 = vmatprep.subr.bf16.mxu0 0
        %2605 = vmatpush2.bf16.msra.mxu0 0
        %2606 = vmatprep.subr.bf16.mxu0 0
        %2607 = vmatpush2.bf16.msra.mxu0 0
        %2608 = vmatprep.subr.bf16.mxu0 0
        %2609 = vmatpush2.bf16.msra.mxu0 0
        %2610 = vmatprep.subr.bf16.mxu0 0
        %2611 = vmatpush2.bf16.msra.mxu0 0
        %2612 = vmatprep.subr.bf16.mxu0 0
        %2613 = vmatpush2.bf16.msra.mxu0 0
        %2614 = vmatprep.subr.bf16.mxu0 0
        %2615 = vmatpush2.bf16.msra.mxu0 0
        %2616 = vmatprep.mubr.bf16.mxu0 0
        %2617 = vmatmul.mubr.bf16.gmra.mxu0 %v2582
        %v2618 = vpop.f32.mrf.mxu0
        %v2619 = vadd.f32 0.0, %v2618
        %v2620 = vpop.f32.mrf.mxu0
        %v2621 = vpop.f32.mrf.mxu0
        %v2622 = vpop.f32.mrf.mxu0
        %2623 = vdwg.mxu0
        %v2624 = vmul.f32 %v2297, %v1408
        %v2625 = vmul.f32 %v2343, %v1412
        %v2626 = vmul.f32 %v2389, %v1416
        %v2627 = vmul.f32 %v2435, %v1420
        %v2628 = vmul.f32 %v2481, %v1424
        %v2629 = vmul.f32 %v2527, %v1428
        %v2630 = vmul.f32 %v2573, %v1432
        %v2631 = vmul.f32 %v2619, %v1436
        %2640 = vrot.lane.b32.xlu0 %v2624, 64
        %v2641 = vpop.permute.xlu0 %2640
        %2642 = vrot.lane.b32.xlu0 %v2625, 64
        %v2643 = vpop.permute.xlu0 %2642
        %2644 = vrot.lane.b32.xlu0 %v2626, 64
        %v2645 = vpop.permute.xlu0 %2644
        %2646 = vrot.lane.b32.xlu0 %v2627, 64
        %v2647 = vpop.permute.xlu0 %2646
        %2648 = vrot.lane.b32.xlu0 %v2628, 64
        %v2649 = vpop.permute.xlu0 %2648
        %2650 = vrot.lane.b32.xlu0 %v2629, 64
        %v2651 = vpop.permute.xlu0 %2650
        %2652 = vrot.lane.b32.xlu0 %v2630, 64
        %v2653 = vpop.permute.xlu0 %2652
        %2654 = vrot.lane.b32.xlu0 %v2631, 64
        %v2655 = vpop.permute.xlu0 %2654
        %vm2664 = vcmask 785920
        %2665 = vst.msk [vmem:[#allocation2] sm:$0xff] %vm2664, %v2641
        %2666 = vst.msk [vmem:[#allocation2 + $0x8] sm:$0xff] %vm2664, %v2643
        %2667 = vst.msk [vmem:[#allocation2 + $0x10] sm:$0xff] %vm2664, %v2645
        %2668 = vst.msk [vmem:[#allocation2 + $0x18] sm:$0xff] %vm2664, %v2647
        %2669 = vst.msk [vmem:[#allocation2 + $0x20] sm:$0xff] %vm2664, %v2649
        %2670 = vst.msk [vmem:[#allocation2 + $0x28] sm:$0xff] %vm2664, %v2651
        %2671 = vst.msk [vmem:[#allocation2 + $0x30] sm:$0xff] %vm2664, %v2653
        %2672 = vst.msk [vmem:[#allocation2 + $0x38] sm:$0xff] %vm2664, %v2655
        %v2674 = vrot.slane %v1439, 4
        %2675 = vrot.lane.b32.xlu0 %v589, 32
        %v2676 = vpop.permute.xlu0 %2675
        %v2679 = vsel %vm1117, %v2674, 0
        %2681 = vmatprep.subr.bf16.mxu0 0
        %2682 = vmatpush1.bf16.msra.mxu0 0
        %2683 = vmatprep.subr.bf16.mxu0 0
        %2684 = vmatpush1.bf16.msra.mxu0 0
        %2685 = vmatprep.subr.bf16.mxu0 0
        %2686 = vmatpush1.bf16.msra.mxu0 0
        %2687 = vmatprep.subr.bf16.mxu0 0
        %2688 = vmatpush1.bf16.msra.mxu0 0
        %2689 = vmatprep.subr.bf16.mxu0 0
        %2690 = vmatpush1.bf16.msra.mxu0 0
        %2691 = vmatprep.subr.bf16.mxu0 0
        %2692 = vmatpush1.bf16.msra.mxu0 0
        %2693 = vmatprep.subr.bf16.mxu0 0
        %2694 = vmatpush1.bf16.msra.mxu0 0
        %2695 = vmatprep.subr.bf16.mxu0 0
        %2696 = vmatpush1.bf16.msra.mxu0 %v2676
        %2697 = vmatprep.subr.bf16.mxu0 0
        %2698 = vmatpush2.bf16.msra.mxu0 0
        %2699 = vmatprep.subr.bf16.mxu0 0
        %2700 = vmatpush2.bf16.msra.mxu0 0
        %2701 = vmatprep.subr.bf16.mxu0 0
        %2702 = vmatpush2.bf16.msra.mxu0 0
        %2703 = vmatprep.subr.bf16.mxu0 0
        %2704 = vmatpush2.bf16.msra.mxu0 0
        %2705 = vmatprep.subr.bf16.mxu0 0
        %2706 = vmatpush2.bf16.msra.mxu0 0
        %2707 = vmatprep.subr.bf16.mxu0 0
        %2708 = vmatpush2.bf16.msra.mxu0 0
        %2709 = vmatprep.subr.bf16.mxu0 0
        %2710 = vmatpush2.bf16.msra.mxu0 0
        %2711 = vmatprep.subr.bf16.mxu0 0
        %2712 = vmatpush2.bf16.msra.mxu0 0
        %2713 = vmatprep.mubr.bf16.mxu0 0
        %2714 = vmatmul.mubr.bf16.gmra.mxu0 %v2679
        %v2715 = vpop.f32.mrf.mxu0
        %v2716 = vadd.f32 0.0, %v2715
        %v2717 = vpop.f32.mrf.mxu0
        %v2718 = vpop.f32.mrf.mxu0
        %v2719 = vpop.f32.mrf.mxu0
        %2720 = vdwg.mxu0
        %v2722 = vrot.slane %v1441, 4
        %2723 = vrot.lane.b32.xlu0 %v590, 32
        %v2724 = vpop.permute.xlu0 %2723
        %v2727 = vsel %vm1117, %v2722, 0
        %2729 = vmatprep.subr.bf16.mxu0 0
        %2730 = vmatpush1.bf16.msra.mxu0 0
        %2731 = vmatprep.subr.bf16.mxu0 0
        %2732 = vmatpush1.bf16.msra.mxu0 0
        %2733 = vmatprep.subr.bf16.mxu0 0
        %2734 = vmatpush1.bf16.msra.mxu0 0
        %2735 = vmatprep.subr.bf16.mxu0 0
        %2736 = vmatpush1.bf16.msra.mxu0 0
        %2737 = vmatprep.subr.bf16.mxu0 0
        %2738 = vmatpush1.bf16.msra.mxu0 0
        %2739 = vmatprep.subr.bf16.mxu0 0
        %2740 = vmatpush1.bf16.msra.mxu0 0
        %2741 = vmatprep.subr.bf16.mxu0 0
        %2742 = vmatpush1.bf16.msra.mxu0 0
        %2743 = vmatprep.subr.bf16.mxu0 0
        %2744 = vmatpush1.bf16.msra.mxu0 %v2724
        %2745 = vmatprep.subr.bf16.mxu0 0
        %2746 = vmatpush2.bf16.msra.mxu0 0
        %2747 = vmatprep.subr.bf16.mxu0 0
        %2748 = vmatpush2.bf16.msra.mxu0 0
        %2749 = vmatprep.subr.bf16.mxu0 0
        %2750 = vmatpush2.bf16.msra.mxu0 0
        %2751 = vmatprep.subr.bf16.mxu0 0
        %2752 = vmatpush2.bf16.msra.mxu0 0
        %2753 = vmatprep.subr.bf16.mxu0 0
        %2754 = vmatpush2.bf16.msra.mxu0 0
        %2755 = vmatprep.subr.bf16.mxu0 0
        %2756 = vmatpush2.bf16.msra.mxu0 0
        %2757 = vmatprep.subr.bf16.mxu0 0
        %2758 = vmatpush2.bf16.msra.mxu0 0
        %2759 = vmatprep.subr.bf16.mxu0 0
        %2760 = vmatpush2.bf16.msra.mxu0 0
        %2761 = vmatprep.mubr.bf16.mxu0 0
        %2762 = vmatmul.mubr.bf16.gmra.mxu0 %v2727
        %v2763 = vpop.f32.mrf.mxu0
        %v2764 = vadd.f32 0.0, %v2763
        %v2765 = vpop.f32.mrf.mxu0
        %v2766 = vpop.f32.mrf.mxu0
        %v2767 = vpop.f32.mrf.mxu0
        %2768 = vdwg.mxu0
        %v2770 = vrot.slane %v1443, 4
        %2771 = vrot.lane.b32.xlu0 %v591, 32
        %v2772 = vpop.permute.xlu0 %2771
        %v2775 = vsel %vm1117, %v2770, 0
        %2777 = vmatprep.subr.bf16.mxu0 0
        %2778 = vmatpush1.bf16.msra.mxu0 0
        %2779 = vmatprep.subr.bf16.mxu0 0
        %2780 = vmatpush1.bf16.msra.mxu0 0
        %2781 = vmatprep.subr.bf16.mxu0 0
        %2782 = vmatpush1.bf16.msra.mxu0 0
        %2783 = vmatprep.subr.bf16.mxu0 0
        %2784 = vmatpush1.bf16.msra.mxu0 0
        %2785 = vmatprep.subr.bf16.mxu0 0
        %2786 = vmatpush1.bf16.msra.mxu0 0
        %2787 = vmatprep.subr.bf16.mxu0 0
        %2788 = vmatpush1.bf16.msra.mxu0 0
        %2789 = vmatprep.subr.bf16.mxu0 0
        %2790 = vmatpush1.bf16.msra.mxu0 0
        %2791 = vmatprep.subr.bf16.mxu0 0
        %2792 = vmatpush1.bf16.msra.mxu0 %v2772
        %2793 = vmatprep.subr.bf16.mxu0 0
        %2794 = vmatpush2.bf16.msra.mxu0 0
        %2795 = vmatprep.subr.bf16.mxu0 0
        %2796 = vmatpush2.bf16.msra.mxu0 0
        %2797 = vmatprep.subr.bf16.mxu0 0
        %2798 = vmatpush2.bf16.msra.mxu0 0
        %2799 = vmatprep.subr.bf16.mxu0 0
        %2800 = vmatpush2.bf16.msra.mxu0 0
        %2801 = vmatprep.subr.bf16.mxu0 0
        %2802 = vmatpush2.bf16.msra.mxu0 0
        %2803 = vmatprep.subr.bf16.mxu0 0
        %2804 = vmatpush2.bf16.msra.mxu0 0
        %2805 = vmatprep.subr.bf16.mxu0 0
        %2806 = vmatpush2.bf16.msra.mxu0 0
        %2807 = vmatprep.subr.bf16.mxu0 0
        %2808 = vmatpush2.bf16.msra.mxu0 0
        %2809 = vmatprep.mubr.bf16.mxu0 0
        %2810 = vmatmul.mubr.bf16.gmra.mxu0 %v2775
        %v2811 = vpop.f32.mrf.mxu0
        %v2812 = vadd.f32 0.0, %v2811
        %v2813 = vpop.f32.mrf.mxu0
        %v2814 = vpop.f32.mrf.mxu0
        %v2815 = vpop.f32.mrf.mxu0
        %2816 = vdwg.mxu0
        %v2818 = vrot.slane %v1445, 4
        %2819 = vrot.lane.b32.xlu0 %v592, 32
        %v2820 = vpop.permute.xlu0 %2819
        %v2823 = vsel %vm1117, %v2818, 0
        %2825 = vmatprep.subr.bf16.mxu0 0
        %2826 = vmatpush1.bf16.msra.mxu0 0
        %2827 = vmatprep.subr.bf16.mxu0 0
        %2828 = vmatpush1.bf16.msra.mxu0 0
        %2829 = vmatprep.subr.bf16.mxu0 0
        %2830 = vmatpush1.bf16.msra.mxu0 0
        %2831 = vmatprep.subr.bf16.mxu0 0
        %2832 = vmatpush1.bf16.msra.mxu0 0
        %2833 = vmatprep.subr.bf16.mxu0 0
        %2834 = vmatpush1.bf16.msra.mxu0 0
        %2835 = vmatprep.subr.bf16.mxu0 0
        %2836 = vmatpush1.bf16.msra.mxu0 0
        %2837 = vmatprep.subr.bf16.mxu0 0
        %2838 = vmatpush1.bf16.msra.mxu0 0
        %2839 = vmatprep.subr.bf16.mxu0 0
        %2840 = vmatpush1.bf16.msra.mxu0 %v2820
        %2841 = vmatprep.subr.bf16.mxu0 0
        %2842 = vmatpush2.bf16.msra.mxu0 0
        %2843 = vmatprep.subr.bf16.mxu0 0
        %2844 = vmatpush2.bf16.msra.mxu0 0
        %2845 = vmatprep.subr.bf16.mxu0 0
        %2846 = vmatpush2.bf16.msra.mxu0 0
        %2847 = vmatprep.subr.bf16.mxu0 0
        %2848 = vmatpush2.bf16.msra.mxu0 0
        %2849 = vmatprep.subr.bf16.mxu0 0
        %2850 = vmatpush2.bf16.msra.mxu0 0
        %2851 = vmatprep.subr.bf16.mxu0 0
        %2852 = vmatpush2.bf16.msra.mxu0 0
        %2853 = vmatprep.subr.bf16.mxu0 0
        %2854 = vmatpush2.bf16.msra.mxu0 0
        %2855 = vmatprep.subr.bf16.mxu0 0
        %2856 = vmatpush2.bf16.msra.mxu0 0
        %2857 = vmatprep.mubr.bf16.mxu0 0
        %2858 = vmatmul.mubr.bf16.gmra.mxu0 %v2823
        %v2859 = vpop.f32.mrf.mxu0
        %v2860 = vadd.f32 0.0, %v2859
        %v2861 = vpop.f32.mrf.mxu0
        %v2862 = vpop.f32.mrf.mxu0
        %v2863 = vpop.f32.mrf.mxu0
        %2864 = vdwg.mxu0
        %v2866 = vrot.slane %v1447, 4
        %2867 = vrot.lane.b32.xlu0 %v593, 32
        %v2868 = vpop.permute.xlu0 %2867
        %v2871 = vsel %vm1117, %v2866, 0
        %2873 = vmatprep.subr.bf16.mxu0 0
        %2874 = vmatpush1.bf16.msra.mxu0 0
        %2875 = vmatprep.subr.bf16.mxu0 0
        %2876 = vmatpush1.bf16.msra.mxu0 0
        %2877 = vmatprep.subr.bf16.mxu0 0
        %2878 = vmatpush1.bf16.msra.mxu0 0
        %2879 = vmatprep.subr.bf16.mxu0 0
        %2880 = vmatpush1.bf16.msra.mxu0 0
        %2881 = vmatprep.subr.bf16.mxu0 0
        %2882 = vmatpush1.bf16.msra.mxu0 0
        %2883 = vmatprep.subr.bf16.mxu0 0
        %2884 = vmatpush1.bf16.msra.mxu0 0
        %2885 = vmatprep.subr.bf16.mxu0 0
        %2886 = vmatpush1.bf16.msra.mxu0 0
        %2887 = vmatprep.subr.bf16.mxu0 0
        %2888 = vmatpush1.bf16.msra.mxu0 %v2868
        %2889 = vmatprep.subr.bf16.mxu0 0
        %2890 = vmatpush2.bf16.msra.mxu0 0
        %2891 = vmatprep.subr.bf16.mxu0 0
        %2892 = vmatpush2.bf16.msra.mxu0 0
        %2893 = vmatprep.subr.bf16.mxu0 0
        %2894 = vmatpush2.bf16.msra.mxu0 0
        %2895 = vmatprep.subr.bf16.mxu0 0
        %2896 = vmatpush2.bf16.msra.mxu0 0
        %2897 = vmatprep.subr.bf16.mxu0 0
        %2898 = vmatpush2.bf16.msra.mxu0 0
        %2899 = vmatprep.subr.bf16.mxu0 0
        %2900 = vmatpush2.bf16.msra.mxu0 0
        %2901 = vmatprep.subr.bf16.mxu0 0
        %2902 = vmatpush2.bf16.msra.mxu0 0
        %2903 = vmatprep.subr.bf16.mxu0 0
        %2904 = vmatpush2.bf16.msra.mxu0 0
        %2905 = vmatprep.mubr.bf16.mxu0 0
        %2906 = vmatmul.mubr.bf16.gmra.mxu0 %v2871
        %v2907 = vpop.f32.mrf.mxu0
        %v2908 = vadd.f32 0.0, %v2907
        %v2909 = vpop.f32.mrf.mxu0
        %v2910 = vpop.f32.mrf.mxu0
        %v2911 = vpop.f32.mrf.mxu0
        %2912 = vdwg.mxu0
        %v2914 = vrot.slane %v1449, 4
        %2915 = vrot.lane.b32.xlu0 %v594, 32
        %v2916 = vpop.permute.xlu0 %2915
        %v2919 = vsel %vm1117, %v2914, 0
        %2921 = vmatprep.subr.bf16.mxu0 0
        %2922 = vmatpush1.bf16.msra.mxu0 0
        %2923 = vmatprep.subr.bf16.mxu0 0
        %2924 = vmatpush1.bf16.msra.mxu0 0
        %2925 = vmatprep.subr.bf16.mxu0 0
        %2926 = vmatpush1.bf16.msra.mxu0 0
        %2927 = vmatprep.subr.bf16.mxu0 0
        %2928 = vmatpush1.bf16.msra.mxu0 0
        %2929 = vmatprep.subr.bf16.mxu0 0
        %2930 = vmatpush1.bf16.msra.mxu0 0
        %2931 = vmatprep.subr.bf16.mxu0 0
        %2932 = vmatpush1.bf16.msra.mxu0 0
        %2933 = vmatprep.subr.bf16.mxu0 0
        %2934 = vmatpush1.bf16.msra.mxu0 0
        %2935 = vmatprep.subr.bf16.mxu0 0
        %2936 = vmatpush1.bf16.msra.mxu0 %v2916
        %2937 = vmatprep.subr.bf16.mxu0 0
        %2938 = vmatpush2.bf16.msra.mxu0 0
        %2939 = vmatprep.subr.bf16.mxu0 0
        %2940 = vmatpush2.bf16.msra.mxu0 0
        %2941 = vmatprep.subr.bf16.mxu0 0
        %2942 = vmatpush2.bf16.msra.mxu0 0
        %2943 = vmatprep.subr.bf16.mxu0 0
        %2944 = vmatpush2.bf16.msra.mxu0 0
        %2945 = vmatprep.subr.bf16.mxu0 0
        %2946 = vmatpush2.bf16.msra.mxu0 0
        %2947 = vmatprep.subr.bf16.mxu0 0
        %2948 = vmatpush2.bf16.msra.mxu0 0
        %2949 = vmatprep.subr.bf16.mxu0 0
        %2950 = vmatpush2.bf16.msra.mxu0 0
        %2951 = vmatprep.subr.bf16.mxu0 0
        %2952 = vmatpush2.bf16.msra.mxu0 0
        %2953 = vmatprep.mubr.bf16.mxu0 0
        %2954 = vmatmul.mubr.bf16.gmra.mxu0 %v2919
        %v2955 = vpop.f32.mrf.mxu0
        %v2956 = vadd.f32 0.0, %v2955
        %v2957 = vpop.f32.mrf.mxu0
        %v2958 = vpop.f32.mrf.mxu0
        %v2959 = vpop.f32.mrf.mxu0
        %2960 = vdwg.mxu0
        %v2962 = vrot.slane %v1451, 4
        %2963 = vrot.lane.b32.xlu0 %v595, 32
        %v2964 = vpop.permute.xlu0 %2963
        %v2967 = vsel %vm1117, %v2962, 0
        %2969 = vmatprep.subr.bf16.mxu0 0
        %2970 = vmatpush1.bf16.msra.mxu0 0
        %2971 = vmatprep.subr.bf16.mxu0 0
        %2972 = vmatpush1.bf16.msra.mxu0 0
        %2973 = vmatprep.subr.bf16.mxu0 0
        %2974 = vmatpush1.bf16.msra.mxu0 0
        %2975 = vmatprep.subr.bf16.mxu0 0
        %2976 = vmatpush1.bf16.msra.mxu0 0
        %2977 = vmatprep.subr.bf16.mxu0 0
        %2978 = vmatpush1.bf16.msra.mxu0 0
        %2979 = vmatprep.subr.bf16.mxu0 0
        %2980 = vmatpush1.bf16.msra.mxu0 0
        %2981 = vmatprep.subr.bf16.mxu0 0
        %2982 = vmatpush1.bf16.msra.mxu0 0
        %2983 = vmatprep.subr.bf16.mxu0 0
        %2984 = vmatpush1.bf16.msra.mxu0 %v2964
        %2985 = vmatprep.subr.bf16.mxu0 0
        %2986 = vmatpush2.bf16.msra.mxu0 0
        %2987 = vmatprep.subr.bf16.mxu0 0
        %2988 = vmatpush2.bf16.msra.mxu0 0
        %2989 = vmatprep.subr.bf16.mxu0 0
        %2990 = vmatpush2.bf16.msra.mxu0 0
        %2991 = vmatprep.subr.bf16.mxu0 0
        %2992 = vmatpush2.bf16.msra.mxu0 0
        %2993 = vmatprep.subr.bf16.mxu0 0
        %2994 = vmatpush2.bf16.msra.mxu0 0
        %2995 = vmatprep.subr.bf16.mxu0 0
        %2996 = vmatpush2.bf16.msra.mxu0 0
        %2997 = vmatprep.subr.bf16.mxu0 0
        %2998 = vmatpush2.bf16.msra.mxu0 0
        %2999 = vmatprep.subr.bf16.mxu0 0
        %3000 = vmatpush2.bf16.msra.mxu0 0
        %3001 = vmatprep.mubr.bf16.mxu0 0
        %3002 = vmatmul.mubr.bf16.gmra.mxu0 %v2967
        %v3003 = vpop.f32.mrf.mxu0
        %v3004 = vadd.f32 0.0, %v3003
        %v3005 = vpop.f32.mrf.mxu0
        %v3006 = vpop.f32.mrf.mxu0
        %v3007 = vpop.f32.mrf.mxu0
        %3008 = vdwg.mxu0
        %v3010 = vrot.slane %v1453, 4
        %3011 = vrot.lane.b32.xlu0 %v596, 32
        %v3012 = vpop.permute.xlu0 %3011
        %v3015 = vsel %vm1117, %v3010, 0
        %3017 = vmatprep.subr.bf16.mxu0 0
        %3018 = vmatpush1.bf16.msra.mxu0 0
        %3019 = vmatprep.subr.bf16.mxu0 0
        %3020 = vmatpush1.bf16.msra.mxu0 0
        %3021 = vmatprep.subr.bf16.mxu0 0
        %3022 = vmatpush1.bf16.msra.mxu0 0
        %3023 = vmatprep.subr.bf16.mxu0 0
        %3024 = vmatpush1.bf16.msra.mxu0 0
        %3025 = vmatprep.subr.bf16.mxu0 0
        %3026 = vmatpush1.bf16.msra.mxu0 0
        %3027 = vmatprep.subr.bf16.mxu0 0
        %3028 = vmatpush1.bf16.msra.mxu0 0
        %3029 = vmatprep.subr.bf16.mxu0 0
        %3030 = vmatpush1.bf16.msra.mxu0 0
        %3031 = vmatprep.subr.bf16.mxu0 0
        %3032 = vmatpush1.bf16.msra.mxu0 %v3012
        %3033 = vmatprep.subr.bf16.mxu0 0
        %3034 = vmatpush2.bf16.msra.mxu0 0
        %3035 = vmatprep.subr.bf16.mxu0 0
        %3036 = vmatpush2.bf16.msra.mxu0 0
        %3037 = vmatprep.subr.bf16.mxu0 0
        %3038 = vmatpush2.bf16.msra.mxu0 0
        %3039 = vmatprep.subr.bf16.mxu0 0
        %3040 = vmatpush2.bf16.msra.mxu0 0
        %3041 = vmatprep.subr.bf16.mxu0 0
        %3042 = vmatpush2.bf16.msra.mxu0 0
        %3043 = vmatprep.subr.bf16.mxu0 0
        %3044 = vmatpush2.bf16.msra.mxu0 0
        %3045 = vmatprep.subr.bf16.mxu0 0
        %3046 = vmatpush2.bf16.msra.mxu0 0
        %3047 = vmatprep.subr.bf16.mxu0 0
        %3048 = vmatpush2.bf16.msra.mxu0 0
        %3049 = vmatprep.mubr.bf16.mxu0 0
        %3050 = vmatmul.mubr.bf16.gmra.mxu0 %v3015
        %v3051 = vpop.f32.mrf.mxu0
        %v3052 = vadd.f32 0.0, %v3051
        %v3053 = vpop.f32.mrf.mxu0
        %v3054 = vpop.f32.mrf.mxu0
        %v3055 = vpop.f32.mrf.mxu0
        %3056 = vdwg.mxu0
        %v3057 = vmul.f32 %v2716, %v1409
        %v3058 = vmul.f32 %v2764, %v1413
        %v3059 = vmul.f32 %v2812, %v1417
        %v3060 = vmul.f32 %v2860, %v1421
        %v3061 = vmul.f32 %v2908, %v1425
        %v3062 = vmul.f32 %v2956, %v1429
        %v3063 = vmul.f32 %v3004, %v1433
        %v3064 = vmul.f32 %v3052, %v1437
        %3073 = vrot.lane.b32.xlu0 %v3057, 96
        %v3074 = vpop.permute.xlu0 %3073
        %3075 = vrot.lane.b32.xlu0 %v3058, 96
        %v3076 = vpop.permute.xlu0 %3075
        %3077 = vrot.lane.b32.xlu0 %v3059, 96
        %v3078 = vpop.permute.xlu0 %3077
        %3079 = vrot.lane.b32.xlu0 %v3060, 96
        %v3080 = vpop.permute.xlu0 %3079
        %3081 = vrot.lane.b32.xlu0 %v3061, 96
        %v3082 = vpop.permute.xlu0 %3081
        %3083 = vrot.lane.b32.xlu0 %v3062, 96
        %v3084 = vpop.permute.xlu0 %3083
        %3085 = vrot.lane.b32.xlu0 %v3063, 96
        %v3086 = vpop.permute.xlu0 %3085
        %3087 = vrot.lane.b32.xlu0 %v3064, 96
        %v3088 = vpop.permute.xlu0 %3087
        %vm3097 = vcmask 1048320
        %3098 = vst.msk [vmem:[#allocation2] sm:$0xff] %vm3097, %v3074
        %3099 = vst.msk [vmem:[#allocation2 + $0x8] sm:$0xff] %vm3097, %v3076
        %3100 = vst.msk [vmem:[#allocation2 + $0x10] sm:$0xff] %vm3097, %v3078
        %3101 = vst.msk [vmem:[#allocation2 + $0x18] sm:$0xff] %vm3097, %v3080
        %3102 = vst.msk [vmem:[#allocation2 + $0x20] sm:$0xff] %vm3097, %v3082
        %3103 = vst.msk [vmem:[#allocation2 + $0x28] sm:$0xff] %vm3097, %v3084
        %3104 = vst.msk [vmem:[#allocation2 + $0x30] sm:$0xff] %vm3097, %v3086
        %3105 = vst.msk [vmem:[#allocation2 + $0x38] sm:$0xff] %vm3097, %v3088
        %v3106 = vld [vmem:[#allocation2] sm:$0xff]
        %v3107 = vld [vmem:[#allocation2 + $0x8] sm:$0xff]
        %v3108 = vld [vmem:[#allocation2 + $0x10] sm:$0xff]
        %v3109 = vld [vmem:[#allocation2 + $0x18] sm:$0xff]
        %v3110 = vld [vmem:[#allocation2 + $0x20] sm:$0xff]
        %v3111 = vld [vmem:[#allocation2 + $0x28] sm:$0xff]
        %v3112 = vld [vmem:[#allocation2 + $0x30] sm:$0xff]
        %v3113 = vld [vmem:[#allocation2 + $0x38] sm:$0xff]
        %v3114 = vld [vmem:[#allocation6] sm:$0xff]
        %v3115 = vld [vmem:[#allocation6 + $0x8] sm:$0xff]
        %v3116 = vld [vmem:[#allocation6 + $0x10] sm:$0xff]
        %v3117 = vld [vmem:[#allocation6 + $0x18] sm:$0xff]
        %v3118 = vld [vmem:[#allocation6 + $0x20] sm:$0xff]
        %v3119 = vld [vmem:[#allocation6 + $0x28] sm:$0xff]
        %v3120 = vld [vmem:[#allocation6 + $0x30] sm:$0xff]
        %v3121 = vld [vmem:[#allocation6 + $0x38] sm:$0xff]
        %v3122 = vadd.f32 %v3106, %v3114
        %v3123 = vadd.f32 %v3107, %v3115
        %v3124 = vadd.f32 %v3108, %v3116
        %v3125 = vadd.f32 %v3109, %v3117
        %v3126 = vadd.f32 %v3110, %v3118
        %v3127 = vadd.f32 %v3111, %v3119
        %v3128 = vadd.f32 %v3112, %v3120
        %v3129 = vadd.f32 %v3113, %v3121
        %v3130 = vpack.c.bf16 %v3123, %v3122
        %v3131 = vpack.c.bf16 %v3125, %v3124
        %v3132 = vpack.c.bf16 %v3127, %v3126
        %v3133 = vpack.c.bf16 %v3129, %v3128
        %v3134 = vld [vmem:[#allocation10] sm:$0xf]
        %v3135 = vld [vmem:[#allocation10 + $0x4] sm:$0xf]
        %v3136 = vld [vmem:[#allocation10 + $0x8] sm:$0xf]
        %v3137 = vld [vmem:[#allocation10 + $0xc] sm:$0xf]
        %v3138 = vld [vmem:[#allocation10 + $0x10] sm:$0xf]
        %v3139 = vld [vmem:[#allocation10 + $0x14] sm:$0xf]
        %v3140 = vld [vmem:[#allocation10 + $0x18] sm:$0xf]
        %v3141 = vld [vmem:[#allocation10 + $0x1c] sm:$0xf]
        %v3142 = vld [vmem:[#allocation10 + $0x20] sm:$0xf]
        %v3143 = vld [vmem:[#allocation10 + $0x24] sm:$0xf]
        %v3144 = vld [vmem:[#allocation10 + $0x28] sm:$0xf]
        %v3145 = vld [vmem:[#allocation10 + $0x2c] sm:$0xf]
        %v3146 = vld [vmem:[#allocation10 + $0x30] sm:$0xf]
        %v3147 = vld [vmem:[#allocation10 + $0x34] sm:$0xf]
        %v3148 = vld [vmem:[#allocation10 + $0x38] sm:$0xf]
        %v3149 = vld [vmem:[#allocation10 + $0x3c] sm:$0xf]
        %v3150 = vld [vmem:[%s6] sm:$0x1]
        %v3152 = vlaneseq
        %v3153 = vshrl.u32 %v3152, 7
        %v3154 = vsub.s32 0, %v3153
        %v3155 = vrot.slane %v3150, %v3154
        %v3173 = vunpack.c.l.b16 %v3134
        %v3174 = vunpack.c.l.b16 %v3135
        %v3175 = vunpack.c.l.b16 %v3136
        %v3176 = vunpack.c.l.b16 %v3137
        %v3177 = vunpack.c.l.b16 %v3138
        %v3178 = vunpack.c.l.b16 %v3139
        %v3179 = vunpack.c.l.b16 %v3140
        %v3180 = vunpack.c.l.b16 %v3141
        %v3181 = vunpack.c.l.b16 %v3142
        %v3182 = vunpack.c.l.b16 %v3143
        %v3183 = vunpack.c.l.b16 %v3144
        %v3184 = vunpack.c.l.b16 %v3145
        %v3185 = vunpack.c.l.b16 %v3146
        %v3186 = vunpack.c.l.b16 %v3147
        %v3187 = vunpack.c.l.b16 %v3148
        %v3188 = vunpack.c.l.b16 %v3149
        %v3189 = vpack.c.b16 %v3174, %v3173
        %v3190 = vpack.c.b16 %v3176, %v3175
        %v3191 = vpack.c.b16 %v3178, %v3177
        %v3192 = vpack.c.b16 %v3180, %v3179
        %v3193 = vpack.c.b16 %v3182, %v3181
        %v3194 = vpack.c.b16 %v3184, %v3183
        %v3195 = vpack.c.b16 %v3186, %v3185
        %v3196 = vpack.c.b16 %v3188, %v3187
        %3205 = vmatprep.subr.bf16.mxu0 0
        %3206 = vmatpush1.bf16.msra.mxu0 %v3196
        %3207 = vmatprep.subr.bf16.mxu0 0
        %3208 = vmatpush1.bf16.msra.mxu0 %v3195
        %3209 = vmatprep.subr.bf16.mxu0 0
        %3210 = vmatpush1.bf16.msra.mxu0 %v3194
        %3211 = vmatprep.subr.bf16.mxu0 0
        %3212 = vmatpush1.bf16.msra.mxu0 %v3193
        %3213 = vmatprep.subr.bf16.mxu0 0
        %3214 = vmatpush1.bf16.msra.mxu0 %v3192
        %3215 = vmatprep.subr.bf16.mxu0 0
        %3216 = vmatpush1.bf16.msra.mxu0 %v3191
        %3217 = vmatprep.subr.bf16.mxu0 0
        %3218 = vmatpush1.bf16.msra.mxu0 %v3190
        %3219 = vmatprep.subr.bf16.mxu0 0
        %3220 = vmatpush1.bf16.msra.mxu0 %v3189
        %3221 = vmatprep.subr.bf16.mxu0 0
        %3222 = vmatpush2.bf16.msra.mxu0 0
        %3223 = vmatprep.subr.bf16.mxu0 0
        %3224 = vmatpush2.bf16.msra.mxu0 0
        %3225 = vmatprep.subr.bf16.mxu0 0
        %3226 = vmatpush2.bf16.msra.mxu0 0
        %3227 = vmatprep.subr.bf16.mxu0 0
        %3228 = vmatpush2.bf16.msra.mxu0 0
        %3229 = vmatprep.subr.bf16.mxu0 0
        %3230 = vmatpush2.bf16.msra.mxu0 0
        %3231 = vmatprep.subr.bf16.mxu0 0
        %3232 = vmatpush2.bf16.msra.mxu0 0
        %3233 = vmatprep.subr.bf16.mxu0 0
        %3234 = vmatpush2.bf16.msra.mxu0 0
        %3235 = vmatprep.subr.bf16.mxu0 0
        %3236 = vmatpush2.bf16.msra.mxu0 0
        %3237 = vmatprep.mubr.bf16.mxu0 0
        %3238 = vmatmul.mubr.bf16.gmra.mxu0 %v3130
        %v3239 = vpop.f32.mrf.mxu0
        %v3240 = vadd.f32 %v3155, %v3239
        %v3241 = vpop.f32.mrf.mxu0
        %v3242 = vpop.f32.mrf.mxu0
        %v3243 = vadd.f32 %v3155, %v3242
        %v3244 = vpop.f32.mrf.mxu0
        %3245 = vmatprep.mubr.bf16.mxu0 0
        %3246 = vmatmul.mubr.bf16.gmra.mxu0 %v3131
        %v3247 = vpop.f32.mrf.mxu0
        %v3248 = vadd.f32 %v3155, %v3247
        %v3249 = vpop.f32.mrf.mxu0
        %v3250 = vpop.f32.mrf.mxu0
        %v3251 = vadd.f32 %v3155, %v3250
        %v3252 = vpop.f32.mrf.mxu0
        %3253 = vmatprep.mubr.bf16.mxu0 0
        %3254 = vmatmul.mubr.bf16.gmra.mxu0 %v3132
        %v3255 = vpop.f32.mrf.mxu0
        %v3256 = vadd.f32 %v3155, %v3255
        %v3257 = vpop.f32.mrf.mxu0
        %v3258 = vpop.f32.mrf.mxu0
        %v3259 = vadd.f32 %v3155, %v3258
        %v3260 = vpop.f32.mrf.mxu0
        %3261 = vmatprep.mubr.bf16.mxu0 0
        %3262 = vmatmul.mubr.bf16.gmra.mxu0 %v3133
        %v3263 = vpop.f32.mrf.mxu0
        %v3264 = vadd.f32 %v3155, %v3263
        %v3265 = vpop.f32.mrf.mxu0
        %v3266 = vpop.f32.mrf.mxu0
        %v3267 = vadd.f32 %v3155, %v3266
        %v3268 = vpop.f32.mrf.mxu0
        %3269 = vdwg.mxu0
        %v3270 = vmax.f32 %v3240, 0.0
        %v3271 = vmax.f32 %v3243, 0.0
        %v3272 = vmax.f32 %v3248, 0.0
        %v3273 = vmax.f32 %v3251, 0.0
        %v3274 = vmax.f32 %v3256, 0.0
        %v3275 = vmax.f32 %v3259, 0.0
        %v3276 = vmax.f32 %v3264, 0.0
        %v3277 = vmax.f32 %v3267, 0.0
        %v3278 = vadd.f32 %v3122, %v3270
        %v3279 = vadd.f32 %v3123, %v3271
        %v3280 = vadd.f32 %v3124, %v3272
        %v3281 = vadd.f32 %v3125, %v3273
        %v3282 = vadd.f32 %v3126, %v3274
        %v3283 = vadd.f32 %v3127, %v3275
        %v3284 = vadd.f32 %v3128, %v3276
        %v3285 = vadd.f32 %v3129, %v3277
        %3286 = vst [vmem:[%s353] sm:$0xff] %v3278
        %3287 = vst [vmem:[%s353 + $0x8] sm:$0xff] %v3279
        %3288 = vst [vmem:[%s353 + $0x10] sm:$0xff] %v3280
        %3289 = vst [vmem:[%s353 + $0x18] sm:$0xff] %v3281
        %3290 = vst [vmem:[%s353 + $0x20] sm:$0xff] %v3282
        %3291 = vst [vmem:[%s353 + $0x28] sm:$0xff] %v3283
        %3292 = vst [vmem:[%s353 + $0x30] sm:$0xff] %v3284
        %3293 = vst [vmem:[%s353 + $0x38] sm:$0xff] %v3285
        %s3294 = sand.u32 %s184, 1
        %s3295 = scalar_lea.sflag [#allocation5], %s3294
        %s3296 = sand.u32 %s184, 1
        %s3297 = smul.addr %s3296, 64
        %s3298 = scalar_lea.vmem [#allocation12], %s3297
        // Predicated region
        $region69: #{tpu_custom_call.1} parent=47 // pred_check
          %p3299 = pneg %p194
        $region70: #{tpu_custom_call.1} parent=47 // pred_check_branch
          %3301 = sbr.rel (%p3299) target = $region72
        $region71: #{tpu_custom_call.1} parent=47 // pred_region
          %s3302 = smul.u32 8, %s24
          %s3304 = ssub.s32 1024, 1024
          %3305 = vsyncadd %s3295, %s3304
          %s3306 = smul.addr %s3302, 128
          %s3307 = scalar_lea.hbm %s7, %s3306
          %s3308 = sshll.u32 %s3298, 4
          %s3309 = int_to_ptr.vmem [resolvable:$true] %s3308
          %3314 = dma.vmem_to_hbm [thread:$0]  %s3309, 1024, %s3307, %s3295, 128, 128, 8
        $region72: #{tpu_custom_call.1} parent=47 // pred_fallthru
          _
      $region48: #{tpu_custom_call.1} parent=5 // pred_fallthru
        _
      %p3315 = scmp.le.s32.totalorder 2, %s19
      // Predicated region
      $region73: #{tpu_custom_call.1} parent=5 // pred_check
        %p3316 = pneg %p3315
      $region74: #{tpu_custom_call.1} parent=5 // pred_check_branch
        %3318 = sbr.rel (%p3316) target = $region76
      $region75: #{tpu_custom_call.1} parent=5 // pred_region
        %s3319 = ssub.s32 %s19, 2
        // Predicated region
        $region77: #{tpu_custom_call.1} parent=75 // pred_check
          %p3320 = pneg %p200
        $region78: #{tpu_custom_call.1} parent=75 // pred_check_branch
          %3322 = sbr.rel (%p3320) target = $region80
        $region79: #{tpu_custom_call.1} parent=75 // pred_region
          %s3323 = sand.u32 %s185, 1
          %s3324 = scalar_lea.sflag [#allocation5], %s3323
          %s3325 = sand.u32 %s185, 1
          %s3326 = smul.addr %s3325, 64
          %s3327 = scalar_lea.vmem [#allocation12], %s3326
          %3328 = dma.done %s3324, 1024
        $region80: #{tpu_custom_call.1} parent=75 // pred_fallthru
          _
      $region76: #{tpu_custom_call.1} parent=5 // pred_fallthru
        _
    $region6: #{tpu_custom_call.1} parent=1 // loop_footer
      %s23 = sadd.s32 1, %s19
    $region7: #{tpu_custom_call.1} parent=1 // loop_footer_branch
      %18 = sbr.rel target = $region3
    $region8: #{tpu_custom_call.1} parent=1 // loop_exit
      _
    %3329 = vsyncpa [#allocation4], 1
    %s3330 = scalar_lea.sflag [#allocation4], 1
    %3331 = vsyncpa %s3330, 1
    %3332 = vsyncpa [#allocation7], 1
    %3333 = vsyncpa [#allocation11], 1
    %3334 = vsyncpa [#allocation5], 1
    %s3335 = scalar_lea.sflag [#allocation5], 1
    %3336 = vsyncpa %s3335, 1

</llo_original>
